<compile_context>
chip_gen: v7x
topology: tpu7x:2x2x1
jax: 0.10.0
libtpu: 0.0.40
codegen_flags: <defaults>
</compile_context>

<pallas_src>
import functools

import jax
import jax.numpy as jnp
from jax.experimental import pallas as pl
from jax.experimental.pallas import tpu as pltpu


# ----------------------------- fused Pallas kernel ---------------------------

def _spaceatt_kernel(low_ref, high_ref,
                     wq_s, bq_s,
                     wk_s, bk_s,
                     w1k_s, b1k_s, w2k_s, b2k_s,
                     wv_s, bv_s,
                     w1v_s, b1v_s, w2v_s, b2v_s,
                     ws_s, bs_s,
                     out_ref, *, C, c2, c2h, H, W):
    """One batch element per grid step.

    low_ref / high_ref : (C, H, W) VMEM blocks
    *_s                : flattened f32 weights/biases in SMEM (BN already folded)
    out_ref            : (C, H, W) VMEM block
    """
    inv_hw = 1.0 / float(H * W)

    # Load per-channel (H, W) spatial maps (leading-dim ref indexing).
    low = [low_ref[c] for c in range(C)]
    high = [high_ref[c] for c in range(C)]

    def project(x, w_s, b_s, oc):
        # 1x1 conv, output channel oc: sum_k w[oc, k] * x[k] + b[oc]
        acc = x[0] * w_s[oc * C + 0]
        for k in range(1, C):
            acc = acc + x[k] * w_s[oc * C + k]
        return acc + b_s[oc]

    q = [project(low, wq_s, bq_s, oc) for oc in range(c2)]     # BN folded into wq/bq
    k0 = [project(low, wk_s, bk_s, oc) for oc in range(c2)]
    v0 = [project(high, wv_s, bv_s, oc) for oc in range(c2)]

    def channelatt(x_list, w1_s, b1_s, w2_s, b2_s):
        # AdaptiveAvgPool2d(1): global mean per channel -> (1, 1)
        gp = [jnp.sum(jnp.sum(x_list[c], axis=1, keepdims=True),
                      axis=0, keepdims=True) * inv_hw
              for c in range(c2)]
        # 3x3 conv (padding=1) on a 1x1 map reduces to its centre tap -> small MLP.
        h1 = []
        for j in range(c2h):
            a = gp[0] * w1_s[j * c2 + 0]
            for c in range(1, c2):
                a = a + gp[c] * w1_s[j * c2 + c]
            h1.append(jnp.maximum(a + b1_s[j], 0.0))
        gated = []
        for c in range(c2):
            a = h1[0] * w2_s[c * c2h + 0]
            for j in range(1, c2h):
                a = a + h1[j] * w2_s[c * c2h + j]
            se = 1.0 / (1.0 + jnp.exp(-(a + b2_s[c])))          # sigmoid, (1, 1)
            gated.append(x_list[c] * se)                        # broadcast over (H, W)
        return gated

    k = channelatt(k0, w1k_s, b1k_s, w2k_s, b2k_s)
    v = channelatt(v0, w1v_s, b1v_s, w2v_s, b2v_s)

    # att[c] = K[c] @ Q[c] @ V[c]   (per-channel (H, W) matmul chain on the MXU)
    att = []
    for c in range(c2):
        kq = jnp.dot(k[c], q[c], preferred_element_type=jnp.float32)
        att.append(jnp.dot(kq, v[c], preferred_element_type=jnp.float32))

    # `sig` head: 1x1 conv (BN folded) + ReLU, written channel by channel.
    for oc in range(C):
        acc = att[0] * ws_s[oc * c2 + 0]
        for c in range(1, c2):
            acc = acc + att[c] * ws_s[oc * c2 + c]
        out_ref[oc] = jnp.maximum(acc + bs_s[oc], 0.0)


# ------------------------------- wrapper -------------------------------------

def spaceatt_forward(low, high, p):
    b, C, H, W = low.shape
    assert H == W and H % 4 == 0, "module requires square input with h % 4 == 0"
    c2 = p["wq"].shape[0]
    c2h = p["w1k"].shape[0]
    HW = H * W

    low_f = low.astype(jnp.float32)
    high_f = high.astype(jnp.float32)

    flat = lambda a: jnp.asarray(a, jnp.float32).ravel()
    w_args = (flat(p["wq"]), flat(p["bq"]),
              flat(p["wk"]), flat(p["bk"]),
              flat(p["w1k"]), flat(p["b1k"]), flat(p["w2k"]), flat(p["b2k"]),
              flat(p["wv"]), flat(p["bv"]),
              flat(p["w1v"]), flat(p["b1v"]), flat(p["w2v"]), flat(p["b2v"]),
              flat(p["ws"]), flat(p["bs"]))

    batch_spec = pl.BlockSpec((None, C, H, W), lambda i: (i, 0, 0, 0))
    smem_spec = pl.BlockSpec(memory_space=pltpu.MemorySpace.SMEM)

    flops = b * (3 * 2 * c2 * C * HW          # three 1x1 conv projections
                 + c2 * 2 * (2 * H * H * W)   # K@Q and (KQ)@V per channel
                 + 2 * C * c2 * HW)           # sig head
    transcendentals = b * 2 * c2              # the two Channelatt sigmoids
    bytes_accessed = 4 * (3 * b * C * HW + sum(int(a.size) for a in w_args))

    kernel = functools.partial(_spaceatt_kernel, C=C, c2=c2, c2h=c2h, H=H, W=W)

    out = pl.pallas_call(
        kernel,
        grid=(b,),
        in_specs=[batch_spec, batch_spec] + [smem_spec] * len(w_args),
        out_specs=pl.BlockSpec((None, C, H, W), lambda i: (i, 0, 0, 0)),
        out_shape=jax.ShapeDtypeStruct((b, C, H, W), jnp.float32),
        compiler_params=pltpu.CompilerParams(dimension_semantics=("parallel",)),
        cost_estimate=pl.CostEstimate(flops=flops,
                                      transcendentals=transcendentals,
                                      bytes_accessed=bytes_accessed),
    )(low_f, high_f, *w_args)
    return out


# --------------------------- parameter construction --------------------------

def init_params(key, C, decay=2):
    c2 = C // decay
    c2h = max(c2 // 2, 1)                 # Channelatt(in_channel//decay) hidden width
    ks = jax.random.split(key, 24)
    n = lambda k, shape, s=0.1: (s * jax.random.normal(k, shape)).astype(jnp.float32)

    # Q: Conv2d(C, c2, 1) + BatchNorm2d(c2)
    wq_raw = n(ks[0], (c2, C)); bq_raw = n(ks[1], (c2,), 0.05)
    g_q = 1.0 + n(ks[2], (c2,)); be_q = n(ks[3], (c2,), 0.05)
    mu_q = n(ks[4], (c2,), 0.05); var_q = 0.5 + jnp.abs(n(ks[5], (c2,)))

    # K: Conv2d(C, c2, 1) + Channelatt(c2)
    wk_raw = n(ks[6], (c2, C)); bk_raw = n(ks[7], (c2,), 0.05)
    w1k = n(ks[8], (c2h, c2, 3, 3)); b1k = n(ks[9], (c2h,), 0.05)
    w2k = n(ks[10], (c2, c2h, 3, 3)); b2k = n(ks[11], (c2,), 0.05)

    # V: Conv2d(C, c2, 1) + Channelatt(c2)
    wv_raw = n(ks[12], (c2, C)); bv_raw = n(ks[13], (c2,), 0.05)
    w1v = n(ks[14], (c2h, c2, 3, 3)); b1v = n(ks[15], (c2h,), 0.05)
    w2v = n(ks[16], (c2, c2h, 3, 3)); b2v = n(ks[17], (c2,), 0.05)

    # sig: Conv2d(c2, C, 1) + BatchNorm2d(C) (+ ReLU)
    ws_raw = n(ks[18], (C, c2)); bs_raw = n(ks[19], (C,), 0.05)
    g_s = 1.0 + n(ks[20], (C,)); be_s = n(ks[21], (C,), 0.05)
    mu_s = n(ks[22], (C,), 0.05); var_s = 0.5 + jnp.abs(n(ks[23], (C,)))

    def fold_bn(w, bias, gamma, beta, mean, var, eps=1e-5):
        scale = gamma / jnp.sqrt(var + eps)
        return w * scale[:, None], bias * scale + beta - mean * scale

    wq, bq = fold_bn(wq_raw, bq_raw, g_q, be_q, mu_q, var_q)
    ws, bs = fold_bn(ws_raw, bs_raw, g_s, be_s, mu_s, var_s)

    # Channelatt convs run on a 1x1 map -> only the centre tap of the 3x3 matters.
    return dict(
        wq=wq, bq=bq,
        wk=wk_raw, bk=bk_raw,
        w1k=w1k[:, :, 1, 1], b1k=b1k, w2k=w2k[:, :, 1, 1], b2k=b2k,
        wv=wv_raw, bv=bv_raw,
        w1v=w1v[:, :, 1, 1], b1v=b1v, w2v=w2v[:, :, 1, 1], b2v=b2v,
        ws=ws, bs=bs,
    )


# ------------------------------ pure-JAX reference ---------------------------

def reference(low, high, p):
    hp = jax.lax.Precision.HIGHEST

    def conv1x1(x, w, bias):
        return jnp.einsum("oi,bihw->bohw", w, x, precision=hp) + bias[None, :, None, None]

    def chanatt(x0, w1, b1, w2, b2):
        gp = jnp.mean(x0, axis=(2, 3))                      # (b, c2)
        h1 = jnp.maximum(gp @ w1.T + b1, 0.0)               # (b, c2h)
        se = jax.nn.sigmoid(h1 @ w2.T + b2)                 # (b, c2)
        return x0 * se[:, :, None, None]

    Q = conv1x1(low, p["wq"], p["bq"])
    K = chanatt(conv1x1(low, p["wk"], p["bk"]), p["w1k"], p["b1k"], p["w2k"], p["b2k"])
    V = chanatt(conv1x1(high, p["wv"], p["bv"]), p["w1v"], p["b1v"], p["w2v"], p["b2v"])
    att = jnp.einsum("bcij,bcjk->bcik",
                     jnp.einsum("bcij,bcjk->bcik", K, Q, precision=hp),
                     V, precision=hp)
    return jnp.maximum(conv1x1(att, p["ws"], p["bs"]), 0.0)


# ---------------------------------- main --------------------------------------

if __name__ == "__main__":
    key = jax.random.PRNGKey(0)
    k_low, k_high, k_par = jax.random.split(key, 3)

    B, C, H, W = 2, 8, 16, 16          # in_channel=8, decay=2 -> c2=4; H == W, H % 4 == 0
    low = jax.random.normal(k_low, (B, C, H, W), dtype=jnp.float32)
    high = jax.random.normal(k_high, (B, C, H, W), dtype=jnp.float32)
    params = init_params(k_par, C, decay=2)

    out = spaceatt_forward(low, high, params)
    out = jax.block_until_ready(out)

    ref = reference(low, high, params)
    assert out.shape == (B, C, H, W)
    # The in-kernel K@Q@V chain runs at default MXU precision (per perf review the
    # 'highest' multi-pass mode was dropped), so tolerances are correspondingly loose.
    if not bool(jnp.allclose(out, ref, atol=1e-2, rtol=1e-2)):
        raise AssertionError(
            f"mismatch: max abs diff = {float(jnp.max(jnp.abs(out - ref)))}")
    print("KERNEL_OK")
</pallas_src>

<mosaic_0001>
module attributes {stable_mosaic.version = 11 : i64} {
  func.func @_spaceatt_kernel(%arg0: i32, %arg1: memref<1x8x16x16xf32, #tpu.memory_space<vmem>>, %arg2: memref<1x8x16x16xf32, #tpu.memory_space<vmem>>, %arg3: memref<32xf32, #tpu.memory_space<smem>>, %arg4: memref<4xf32, #tpu.memory_space<smem>>, %arg5: memref<32xf32, #tpu.memory_space<smem>>, %arg6: memref<4xf32, #tpu.memory_space<smem>>, %arg7: memref<8xf32, #tpu.memory_space<smem>>, %arg8: memref<2xf32, #tpu.memory_space<smem>>, %arg9: memref<8xf32, #tpu.memory_space<smem>>, %arg10: memref<4xf32, #tpu.memory_space<smem>>, %arg11: memref<32xf32, #tpu.memory_space<smem>>, %arg12: memref<4xf32, #tpu.memory_space<smem>>, %arg13: memref<8xf32, #tpu.memory_space<smem>>, %arg14: memref<2xf32, #tpu.memory_space<smem>>, %arg15: memref<8xf32, #tpu.memory_space<smem>>, %arg16: memref<4xf32, #tpu.memory_space<smem>>, %arg17: memref<32xf32, #tpu.memory_space<smem>>, %arg18: memref<8xf32, #tpu.memory_space<smem>>, %arg19: memref<1x8x16x16xf32, #tpu.memory_space<vmem>>) attributes {dimension_semantics = [#tpu.dimension_semantics<parallel>], iteration_bounds = array<i64: 2>, scalar_prefetch = 0 : i64, scratch_operands = 0 : i64, tpu.core_type = #tpu.core_type<tc>, window_params = [{transform_indices = @transform_0, window_bounds = array<i64: 1, 8, 16, 16>}, {transform_indices = @transform_1, window_bounds = array<i64: 1, 8, 16, 16>}, {transform_indices = @transform_2, window_bounds = array<i64: 32>}, {transform_indices = @transform_3, window_bounds = array<i64: 4>}, {transform_indices = @transform_4, window_bounds = array<i64: 32>}, {transform_indices = @transform_5, window_bounds = array<i64: 4>}, {transform_indices = @transform_6, window_bounds = array<i64: 8>}, {transform_indices = @transform_7, window_bounds = array<i64: 2>}, {transform_indices = @transform_8, window_bounds = array<i64: 8>}, {transform_indices = @transform_9, window_bounds = array<i64: 4>}, {transform_indices = @transform_10, window_bounds = array<i64: 32>}, {transform_indices = @transform_11, window_bounds = array<i64: 4>}, {transform_indices = @transform_12, window_bounds = array<i64: 8>}, {transform_indices = @transform_13, window_bounds = array<i64: 2>}, {transform_indices = @transform_14, window_bounds = array<i64: 8>}, {transform_indices = @transform_15, window_bounds = array<i64: 4>}, {transform_indices = @transform_16, window_bounds = array<i64: 32>}, {transform_indices = @transform_17, window_bounds = array<i64: 8>}, {transform_indices = @transform_18, window_bounds = array<i64: 1, 8, 16, 16>}]} {
    %c0 = arith.constant 0 : index
    %c0_0 = arith.constant 0 : index
    %c0_1 = arith.constant 0 : index
    %c0_2 = arith.constant 0 : index
    %0 = vector.load %arg1[%c0, %c0_0, %c0_1, %c0_2] : memref<1x8x16x16xf32, #tpu.memory_space<vmem>>, vector<1x1x16x16xf32>
    %1 = vector.shape_cast %0 : vector<1x1x16x16xf32> to vector<16x16xf32>
    %c0_3 = arith.constant 0 : index
    %c1 = arith.constant 1 : index
    %c0_4 = arith.constant 0 : index
    %c0_5 = arith.constant 0 : index
    %2 = vector.load %arg1[%c0_3, %c1, %c0_4, %c0_5] : memref<1x8x16x16xf32, #tpu.memory_space<vmem>>, vector<1x1x16x16xf32>
    %3 = vector.shape_cast %2 : vector<1x1x16x16xf32> to vector<16x16xf32>
    %c0_6 = arith.constant 0 : index
    %c2 = arith.constant 2 : index
    %c0_7 = arith.constant 0 : index
    %c0_8 = arith.constant 0 : index
    %4 = vector.load %arg1[%c0_6, %c2, %c0_7, %c0_8] : memref<1x8x16x16xf32, #tpu.memory_space<vmem>>, vector<1x1x16x16xf32>
    %5 = vector.shape_cast %4 : vector<1x1x16x16xf32> to vector<16x16xf32>
    %c0_9 = arith.constant 0 : index
    %c3 = arith.constant 3 : index
    %c0_10 = arith.constant 0 : index
    %c0_11 = arith.constant 0 : index
    %6 = vector.load %arg1[%c0_9, %c3, %c0_10, %c0_11] : memref<1x8x16x16xf32, #tpu.memory_space<vmem>>, vector<1x1x16x16xf32>
    %7 = vector.shape_cast %6 : vector<1x1x16x16xf32> to vector<16x16xf32>
    %c0_12 = arith.constant 0 : index
    %c4 = arith.constant 4 : index
    %c0_13 = arith.constant 0 : index
    %c0_14 = arith.constant 0 : index
    %8 = vector.load %arg1[%c0_12, %c4, %c0_13, %c0_14] : memref<1x8x16x16xf32, #tpu.memory_space<vmem>>, vector<1x1x16x16xf32>
    %9 = vector.shape_cast %8 : vector<1x1x16x16xf32> to vector<16x16xf32>
    %c0_15 = arith.constant 0 : index
    %c5 = arith.constant 5 : index
    %c0_16 = arith.constant 0 : index
    %c0_17 = arith.constant 0 : index
    %10 = vector.load %arg1[%c0_15, %c5, %c0_16, %c0_17] : memref<1x8x16x16xf32, #tpu.memory_space<vmem>>, vector<1x1x16x16xf32>
    %11 = vector.shape_cast %10 : vector<1x1x16x16xf32> to vector<16x16xf32>
    %c0_18 = arith.constant 0 : index
    %c6 = arith.constant 6 : index
    %c0_19 = arith.constant 0 : index
    %c0_20 = arith.constant 0 : index
    %12 = vector.load %arg1[%c0_18, %c6, %c0_19, %c0_20] : memref<1x8x16x16xf32, #tpu.memory_space<vmem>>, vector<1x1x16x16xf32>
    %13 = vector.shape_cast %12 : vector<1x1x16x16xf32> to vector<16x16xf32>
    %c0_21 = arith.constant 0 : index
    %c7 = arith.constant 7 : index
    %c0_22 = arith.constant 0 : index
    %c0_23 = arith.constant 0 : index
    %14 = vector.load %arg1[%c0_21, %c7, %c0_22, %c0_23] : memref<1x8x16x16xf32, #tpu.memory_space<vmem>>, vector<1x1x16x16xf32>
    %15 = vector.shape_cast %14 : vector<1x1x16x16xf32> to vector<16x16xf32>
    %c0_24 = arith.constant 0 : index
    %c0_25 = arith.constant 0 : index
    %c0_26 = arith.constant 0 : index
    %c0_27 = arith.constant 0 : index
    %16 = vector.load %arg2[%c0_24, %c0_25, %c0_26, %c0_27] : memref<1x8x16x16xf32, #tpu.memory_space<vmem>>, vector<1x1x16x16xf32>
    %17 = vector.shape_cast %16 : vector<1x1x16x16xf32> to vector<16x16xf32>
    %c0_28 = arith.constant 0 : index
    %c1_29 = arith.constant 1 : index
    %c0_30 = arith.constant 0 : index
    %c0_31 = arith.constant 0 : index
    %18 = vector.load %arg2[%c0_28, %c1_29, %c0_30, %c0_31] : memref<1x8x16x16xf32, #tpu.memory_space<vmem>>, vector<1x1x16x16xf32>
    %19 = vector.shape_cast %18 : vector<1x1x16x16xf32> to vector<16x16xf32>
    %c0_32 = arith.constant 0 : index
    %c2_33 = arith.constant 2 : index
    %c0_34 = arith.constant 0 : index
    %c0_35 = arith.constant 0 : index
    %20 = vector.load %arg2[%c0_32, %c2_33, %c0_34, %c0_35] : memref<1x8x16x16xf32, #tpu.memory_space<vmem>>, vector<1x1x16x16xf32>
    %21 = vector.shape_cast %20 : vector<1x1x16x16xf32> to vector<16x16xf32>
    %c0_36 = arith.constant 0 : index
    %c3_37 = arith.constant 3 : index
    %c0_38 = arith.constant 0 : index
    %c0_39 = arith.constant 0 : index
    %22 = vector.load %arg2[%c0_36, %c3_37, %c0_38, %c0_39] : memref<1x8x16x16xf32, #tpu.memory_space<vmem>>, vector<1x1x16x16xf32>
    %23 = vector.shape_cast %22 : vector<1x1x16x16xf32> to vector<16x16xf32>
    %c0_40 = arith.constant 0 : index
    %c4_41 = arith.constant 4 : index
    %c0_42 = arith.constant 0 : index
    %c0_43 = arith.constant 0 : index
    %24 = vector.load %arg2[%c0_40, %c4_41, %c0_42, %c0_43] : memref<1x8x16x16xf32, #tpu.memory_space<vmem>>, vector<1x1x16x16xf32>
    %25 = vector.shape_cast %24 : vector<1x1x16x16xf32> to vector<16x16xf32>
    %c0_44 = arith.constant 0 : index
    %c5_45 = arith.constant 5 : index
    %c0_46 = arith.constant 0 : index
    %c0_47 = arith.constant 0 : index
    %26 = vector.load %arg2[%c0_44, %c5_45, %c0_46, %c0_47] : memref<1x8x16x16xf32, #tpu.memory_space<vmem>>, vector<1x1x16x16xf32>
    %27 = vector.shape_cast %26 : vector<1x1x16x16xf32> to vector<16x16xf32>
    %c0_48 = arith.constant 0 : index
    %c6_49 = arith.constant 6 : index
    %c0_50 = arith.constant 0 : index
    %c0_51 = arith.constant 0 : index
    %28 = vector.load %arg2[%c0_48, %c6_49, %c0_50, %c0_51] : memref<1x8x16x16xf32, #tpu.memory_space<vmem>>, vector<1x1x16x16xf32>
    %29 = vector.shape_cast %28 : vector<1x1x16x16xf32> to vector<16x16xf32>
    %c0_52 = arith.constant 0 : index
    %c7_53 = arith.constant 7 : index
    %c0_54 = arith.constant 0 : index
    %c0_55 = arith.constant 0 : index
    %30 = vector.load %arg2[%c0_52, %c7_53, %c0_54, %c0_55] : memref<1x8x16x16xf32, #tpu.memory_space<vmem>>, vector<1x1x16x16xf32>
    %31 = vector.shape_cast %30 : vector<1x1x16x16xf32> to vector<16x16xf32>
    %c0_56 = arith.constant 0 : index
    %32 = memref.load %arg3[%c0_56] : memref<32xf32, #tpu.memory_space<smem>>
    %33 = vector.broadcast %32 : f32 to vector<16x16xf32>
    %34 = arith.mulf %1, %33 : vector<16x16xf32>
    %c1_57 = arith.constant 1 : index
    %35 = memref.load %arg3[%c1_57] : memref<32xf32, #tpu.memory_space<smem>>
    %36 = vector.broadcast %35 : f32 to vector<16x16xf32>
    %37 = arith.mulf %3, %36 : vector<16x16xf32>
    %38 = arith.addf %34, %37 : vector<16x16xf32>
    %c2_58 = arith.constant 2 : index
    %39 = memref.load %arg3[%c2_58] : memref<32xf32, #tpu.memory_space<smem>>
    %40 = vector.broadcast %39 : f32 to vector<16x16xf32>
    %41 = arith.mulf %5, %40 : vector<16x16xf32>
    %42 = arith.addf %38, %41 : vector<16x16xf32>
    %c3_59 = arith.constant 3 : index
    %43 = memref.load %arg3[%c3_59] : memref<32xf32, #tpu.memory_space<smem>>
    %44 = vector.broadcast %43 : f32 to vector<16x16xf32>
    %45 = arith.mulf %7, %44 : vector<16x16xf32>
    %46 = arith.addf %42, %45 : vector<16x16xf32>
    %c4_60 = arith.constant 4 : index
    %47 = memref.load %arg3[%c4_60] : memref<32xf32, #tpu.memory_space<smem>>
    %48 = vector.broadcast %47 : f32 to vector<16x16xf32>
    %49 = arith.mulf %9, %48 : vector<16x16xf32>
    %50 = arith.addf %46, %49 : vector<16x16xf32>
    %c5_61 = arith.constant 5 : index
    %51 = memref.load %arg3[%c5_61] : memref<32xf32, #tpu.memory_space<smem>>
    %52 = vector.broadcast %51 : f32 to vector<16x16xf32>
    %53 = arith.mulf %11, %52 : vector<16x16xf32>
    %54 = arith.addf %50, %53 : vector<16x16xf32>
    %c6_62 = arith.constant 6 : index
    %55 = memref.load %arg3[%c6_62] : memref<32xf32, #tpu.memory_space<smem>>
    %56 = vector.broadcast %55 : f32 to vector<16x16xf32>
    %57 = arith.mulf %13, %56 : vector<16x16xf32>
    %58 = arith.addf %54, %57 : vector<16x16xf32>
    %c7_63 = arith.constant 7 : index
    %59 = memref.load %arg3[%c7_63] : memref<32xf32, #tpu.memory_space<smem>>
    %60 = vector.broadcast %59 : f32 to vector<16x16xf32>
    %61 = arith.mulf %15, %60 : vector<16x16xf32>
    %62 = arith.addf %58, %61 : vector<16x16xf32>
    %c0_64 = arith.constant 0 : index
    %63 = memref.load %arg4[%c0_64] : memref<4xf32, #tpu.memory_space<smem>>
    %64 = vector.broadcast %63 : f32 to vector<16x16xf32>
    %65 = arith.addf %62, %64 : vector<16x16xf32>
    %c8 = arith.constant 8 : index
    %66 = memref.load %arg3[%c8] : memref<32xf32, #tpu.memory_space<smem>>
    %67 = vector.broadcast %66 : f32 to vector<16x16xf32>
    %68 = arith.mulf %1, %67 : vector<16x16xf32>
    %c9 = arith.constant 9 : index
    %69 = memref.load %arg3[%c9] : memref<32xf32, #tpu.memory_space<smem>>
    %70 = vector.broadcast %69 : f32 to vector<16x16xf32>
    %71 = arith.mulf %3, %70 : vector<16x16xf32>
    %72 = arith.addf %68, %71 : vector<16x16xf32>
    %c10 = arith.constant 10 : index
    %73 = memref.load %arg3[%c10] : memref<32xf32, #tpu.memory_space<smem>>
    %74 = vector.broadcast %73 : f32 to vector<16x16xf32>
    %75 = arith.mulf %5, %74 : vector<16x16xf32>
    %76 = arith.addf %72, %75 : vector<16x16xf32>
    %c11 = arith.constant 11 : index
    %77 = memref.load %arg3[%c11] : memref<32xf32, #tpu.memory_space<smem>>
    %78 = vector.broadcast %77 : f32 to vector<16x16xf32>
    %79 = arith.mulf %7, %78 : vector<16x16xf32>
    %80 = arith.addf %76, %79 : vector<16x16xf32>
    %c12 = arith.constant 12 : index
    %81 = memref.load %arg3[%c12] : memref<32xf32, #tpu.memory_space<smem>>
    %82 = vector.broadcast %81 : f32 to vector<16x16xf32>
    %83 = arith.mulf %9, %82 : vector<16x16xf32>
    %84 = arith.addf %80, %83 : vector<16x16xf32>
    %c13 = arith.constant 13 : index
    %85 = memref.load %arg3[%c13] : memref<32xf32, #tpu.memory_space<smem>>
    %86 = vector.broadcast %85 : f32 to vector<16x16xf32>
    %87 = arith.mulf %11, %86 : vector<16x16xf32>
    %88 = arith.addf %84, %87 : vector<16x16xf32>
    %c14 = arith.constant 14 : index
    %89 = memref.load %arg3[%c14] : memref<32xf32, #tpu.memory_space<smem>>
    %90 = vector.broadcast %89 : f32 to vector<16x16xf32>
    %91 = arith.mulf %13, %90 : vector<16x16xf32>
    %92 = arith.addf %88, %91 : vector<16x16xf32>
    %c15 = arith.constant 15 : index
    %93 = memref.load %arg3[%c15] : memref<32xf32, #tpu.memory_space<smem>>
    %94 = vector.broadcast %93 : f32 to vector<16x16xf32>
    %95 = arith.mulf %15, %94 : vector<16x16xf32>
    %96 = arith.addf %92, %95 : vector<16x16xf32>
    %c1_65 = arith.constant 1 : index
    %97 = memref.load %arg4[%c1_65] : memref<4xf32, #tpu.memory_space<smem>>
    %98 = vector.broadcast %97 : f32 to vector<16x16xf32>
    %99 = arith.addf %96, %98 : vector<16x16xf32>
    %c16 = arith.constant 16 : index
    %100 = memref.load %arg3[%c16] : memref<32xf32, #tpu.memory_space<smem>>
    %101 = vector.broadcast %100 : f32 to vector<16x16xf32>
    %102 = arith.mulf %1, %101 : vector<16x16xf32>
    %c17 = arith.constant 17 : index
    %103 = memref.load %arg3[%c17] : memref<32xf32, #tpu.memory_space<smem>>
    %104 = vector.broadcast %103 : f32 to vector<16x16xf32>
    %105 = arith.mulf %3, %104 : vector<16x16xf32>
    %106 = arith.addf %102, %105 : vector<16x16xf32>
    %c18 = arith.constant 18 : index
    %107 = memref.load %arg3[%c18] : memref<32xf32, #tpu.memory_space<smem>>
    %108 = vector.broadcast %107 : f32 to vector<16x16xf32>
    %109 = arith.mulf %5, %108 : vector<16x16xf32>
    %110 = arith.addf %106, %109 : vector<16x16xf32>
    %c19 = arith.constant 19 : index
    %111 = memref.load %arg3[%c19] : memref<32xf32, #tpu.memory_space<smem>>
    %112 = vector.broadcast %111 : f32 to vector<16x16xf32>
    %113 = arith.mulf %7, %112 : vector<16x16xf32>
    %114 = arith.addf %110, %113 : vector<16x16xf32>
    %c20 = arith.constant 20 : index
    %115 = memref.load %arg3[%c20] : memref<32xf32, #tpu.memory_space<smem>>
    %116 = vector.broadcast %115 : f32 to vector<16x16xf32>
    %117 = arith.mulf %9, %116 : vector<16x16xf32>
    %118 = arith.addf %114, %117 : vector<16x16xf32>
    %c21 = arith.constant 21 : index
    %119 = memref.load %arg3[%c21] : memref<32xf32, #tpu.memory_space<smem>>
    %120 = vector.broadcast %119 : f32 to vector<16x16xf32>
    %121 = arith.mulf %11, %120 : vector<16x16xf32>
    %122 = arith.addf %118, %121 : vector<16x16xf32>
    %c22 = arith.constant 22 : index
    %123 = memref.load %arg3[%c22] : memref<32xf32, #tpu.memory_space<smem>>
    %124 = vector.broadcast %123 : f32 to vector<16x16xf32>
    %125 = arith.mulf %13, %124 : vector<16x16xf32>
    %126 = arith.addf %122, %125 : vector<16x16xf32>
    %c23 = arith.constant 23 : index
    %127 = memref.load %arg3[%c23] : memref<32xf32, #tpu.memory_space<smem>>
    %128 = vector.broadcast %127 : f32 to vector<16x16xf32>
    %129 = arith.mulf %15, %128 : vector<16x16xf32>
    %130 = arith.addf %126, %129 : vector<16x16xf32>
    %c2_66 = arith.constant 2 : index
    %131 = memref.load %arg4[%c2_66] : memref<4xf32, #tpu.memory_space<smem>>
    %132 = vector.broadcast %131 : f32 to vector<16x16xf32>
    %133 = arith.addf %130, %132 : vector<16x16xf32>
    %c24 = arith.constant 24 : index
    %134 = memref.load %arg3[%c24] : memref<32xf32, #tpu.memory_space<smem>>
    %135 = vector.broadcast %134 : f32 to vector<16x16xf32>
    %136 = arith.mulf %1, %135 : vector<16x16xf32>
    %c25 = arith.constant 25 : index
    %137 = memref.load %arg3[%c25] : memref<32xf32, #tpu.memory_space<smem>>
    %138 = vector.broadcast %137 : f32 to vector<16x16xf32>
    %139 = arith.mulf %3, %138 : vector<16x16xf32>
    %140 = arith.addf %136, %139 : vector<16x16xf32>
    %c26 = arith.constant 26 : index
    %141 = memref.load %arg3[%c26] : memref<32xf32, #tpu.memory_space<smem>>
    %142 = vector.broadcast %141 : f32 to vector<16x16xf32>
    %143 = arith.mulf %5, %142 : vector<16x16xf32>
    %144 = arith.addf %140, %143 : vector<16x16xf32>
    %c27 = arith.constant 27 : index
    %145 = memref.load %arg3[%c27] : memref<32xf32, #tpu.memory_space<smem>>
    %146 = vector.broadcast %145 : f32 to vector<16x16xf32>
    %147 = arith.mulf %7, %146 : vector<16x16xf32>
    %148 = arith.addf %144, %147 : vector<16x16xf32>
    %c28 = arith.constant 28 : index
    %149 = memref.load %arg3[%c28] : memref<32xf32, #tpu.memory_space<smem>>
    %150 = vector.broadcast %149 : f32 to vector<16x16xf32>
    %151 = arith.mulf %9, %150 : vector<16x16xf32>
    %152 = arith.addf %148, %151 : vector<16x16xf32>
    %c29 = arith.constant 29 : index
    %153 = memref.load %arg3[%c29] : memref<32xf32, #tpu.memory_space<smem>>
    %154 = vector.broadcast %153 : f32 to vector<16x16xf32>
    %155 = arith.mulf %11, %154 : vector<16x16xf32>
    %156 = arith.addf %152, %155 : vector<16x16xf32>
    %c30 = arith.constant 30 : index
    %157 = memref.load %arg3[%c30] : memref<32xf32, #tpu.memory_space<smem>>
    %158 = vector.broadcast %157 : f32 to vector<16x16xf32>
    %159 = arith.mulf %13, %158 : vector<16x16xf32>
    %160 = arith.addf %156, %159 : vector<16x16xf32>
    %c31 = arith.constant 31 : index
    %161 = memref.load %arg3[%c31] : memref<32xf32, #tpu.memory_space<smem>>
    %162 = vector.broadcast %161 : f32 to vector<16x16xf32>
    %163 = arith.mulf %15, %162 : vector<16x16xf32>
    %164 = arith.addf %160, %163 : vector<16x16xf32>
    %c3_67 = arith.constant 3 : index
    %165 = memref.load %arg4[%c3_67] : memref<4xf32, #tpu.memory_space<smem>>
    %166 = vector.broadcast %165 : f32 to vector<16x16xf32>
    %167 = arith.addf %164, %166 : vector<16x16xf32>
    %c0_68 = arith.constant 0 : index
    %168 = memref.load %arg5[%c0_68] : memref<32xf32, #tpu.memory_space<smem>>
    %169 = vector.broadcast %168 : f32 to vector<16x16xf32>
    %170 = arith.mulf %1, %169 : vector<16x16xf32>
    %c1_69 = arith.constant 1 : index
    %171 = memref.load %arg5[%c1_69] : memref<32xf32, #tpu.memory_space<smem>>
    %172 = vector.broadcast %171 : f32 to vector<16x16xf32>
    %173 = arith.mulf %3, %172 : vector<16x16xf32>
    %174 = arith.addf %170, %173 : vector<16x16xf32>
    %c2_70 = arith.constant 2 : index
    %175 = memref.load %arg5[%c2_70] : memref<32xf32, #tpu.memory_space<smem>>
    %176 = vector.broadcast %175 : f32 to vector<16x16xf32>
    %177 = arith.mulf %5, %176 : vector<16x16xf32>
    %178 = arith.addf %174, %177 : vector<16x16xf32>
    %c3_71 = arith.constant 3 : index
    %179 = memref.load %arg5[%c3_71] : memref<32xf32, #tpu.memory_space<smem>>
    %180 = vector.broadcast %179 : f32 to vector<16x16xf32>
    %181 = arith.mulf %7, %180 : vector<16x16xf32>
    %182 = arith.addf %178, %181 : vector<16x16xf32>
    %c4_72 = arith.constant 4 : index
    %183 = memref.load %arg5[%c4_72] : memref<32xf32, #tpu.memory_space<smem>>
    %184 = vector.broadcast %183 : f32 to vector<16x16xf32>
    %185 = arith.mulf %9, %184 : vector<16x16xf32>
    %186 = arith.addf %182, %185 : vector<16x16xf32>
    %c5_73 = arith.constant 5 : index
    %187 = memref.load %arg5[%c5_73] : memref<32xf32, #tpu.memory_space<smem>>
    %188 = vector.broadcast %187 : f32 to vector<16x16xf32>
    %189 = arith.mulf %11, %188 : vector<16x16xf32>
    %190 = arith.addf %186, %189 : vector<16x16xf32>
    %c6_74 = arith.constant 6 : index
    %191 = memref.load %arg5[%c6_74] : memref<32xf32, #tpu.memory_space<smem>>
    %192 = vector.broadcast %191 : f32 to vector<16x16xf32>
    %193 = arith.mulf %13, %192 : vector<16x16xf32>
    %194 = arith.addf %190, %193 : vector<16x16xf32>
    %c7_75 = arith.constant 7 : index
    %195 = memref.load %arg5[%c7_75] : memref<32xf32, #tpu.memory_space<smem>>
    %196 = vector.broadcast %195 : f32 to vector<16x16xf32>
    %197 = arith.mulf %15, %196 : vector<16x16xf32>
    %198 = arith.addf %194, %197 : vector<16x16xf32>
    %c0_76 = arith.constant 0 : index
    %199 = memref.load %arg6[%c0_76] : memref<4xf32, #tpu.memory_space<smem>>
    %200 = vector.broadcast %199 : f32 to vector<16x16xf32>
    %201 = arith.addf %198, %200 : vector<16x16xf32>
    %c8_77 = arith.constant 8 : index
    %202 = memref.load %arg5[%c8_77] : memref<32xf32, #tpu.memory_space<smem>>
    %203 = vector.broadcast %202 : f32 to vector<16x16xf32>
    %204 = arith.mulf %1, %203 : vector<16x16xf32>
    %c9_78 = arith.constant 9 : index
    %205 = memref.load %arg5[%c9_78] : memref<32xf32, #tpu.memory_space<smem>>
    %206 = vector.broadcast %205 : f32 to vector<16x16xf32>
    %207 = arith.mulf %3, %206 : vector<16x16xf32>
    %208 = arith.addf %204, %207 : vector<16x16xf32>
    %c10_79 = arith.constant 10 : index
    %209 = memref.load %arg5[%c10_79] : memref<32xf32, #tpu.memory_space<smem>>
    %210 = vector.broadcast %209 : f32 to vector<16x16xf32>
    %211 = arith.mulf %5, %210 : vector<16x16xf32>
    %212 = arith.addf %208, %211 : vector<16x16xf32>
    %c11_80 = arith.constant 11 : index
    %213 = memref.load %arg5[%c11_80] : memref<32xf32, #tpu.memory_space<smem>>
    %214 = vector.broadcast %213 : f32 to vector<16x16xf32>
    %215 = arith.mulf %7, %214 : vector<16x16xf32>
    %216 = arith.addf %212, %215 : vector<16x16xf32>
    %c12_81 = arith.constant 12 : index
    %217 = memref.load %arg5[%c12_81] : memref<32xf32, #tpu.memory_space<smem>>
    %218 = vector.broadcast %217 : f32 to vector<16x16xf32>
    %219 = arith.mulf %9, %218 : vector<16x16xf32>
    %220 = arith.addf %216, %219 : vector<16x16xf32>
    %c13_82 = arith.constant 13 : index
    %221 = memref.load %arg5[%c13_82] : memref<32xf32, #tpu.memory_space<smem>>
    %222 = vector.broadcast %221 : f32 to vector<16x16xf32>
    %223 = arith.mulf %11, %222 : vector<16x16xf32>
    %224 = arith.addf %220, %223 : vector<16x16xf32>
    %c14_83 = arith.constant 14 : index
    %225 = memref.load %arg5[%c14_83] : memref<32xf32, #tpu.memory_space<smem>>
    %226 = vector.broadcast %225 : f32 to vector<16x16xf32>
    %227 = arith.mulf %13, %226 : vector<16x16xf32>
    %228 = arith.addf %224, %227 : vector<16x16xf32>
    %c15_84 = arith.constant 15 : index
    %229 = memref.load %arg5[%c15_84] : memref<32xf32, #tpu.memory_space<smem>>
    %230 = vector.broadcast %229 : f32 to vector<16x16xf32>
    %231 = arith.mulf %15, %230 : vector<16x16xf32>
    %232 = arith.addf %228, %231 : vector<16x16xf32>
    %c1_85 = arith.constant 1 : index
    %233 = memref.load %arg6[%c1_85] : memref<4xf32, #tpu.memory_space<smem>>
    %234 = vector.broadcast %233 : f32 to vector<16x16xf32>
    %235 = arith.addf %232, %234 : vector<16x16xf32>
    %c16_86 = arith.constant 16 : index
    %236 = memref.load %arg5[%c16_86] : memref<32xf32, #tpu.memory_space<smem>>
    %237 = vector.broadcast %236 : f32 to vector<16x16xf32>
    %238 = arith.mulf %1, %237 : vector<16x16xf32>
    %c17_87 = arith.constant 17 : index
    %239 = memref.load %arg5[%c17_87] : memref<32xf32, #tpu.memory_space<smem>>
    %240 = vector.broadcast %239 : f32 to vector<16x16xf32>
    %241 = arith.mulf %3, %240 : vector<16x16xf32>
    %242 = arith.addf %238, %241 : vector<16x16xf32>
    %c18_88 = arith.constant 18 : index
    %243 = memref.load %arg5[%c18_88] : memref<32xf32, #tpu.memory_space<smem>>
    %244 = vector.broadcast %243 : f32 to vector<16x16xf32>
    %245 = arith.mulf %5, %244 : vector<16x16xf32>
    %246 = arith.addf %242, %245 : vector<16x16xf32>
    %c19_89 = arith.constant 19 : index
    %247 = memref.load %arg5[%c19_89] : memref<32xf32, #tpu.memory_space<smem>>
    %248 = vector.broadcast %247 : f32 to vector<16x16xf32>
    %249 = arith.mulf %7, %248 : vector<16x16xf32>
    %250 = arith.addf %246, %249 : vector<16x16xf32>
    %c20_90 = arith.constant 20 : index
    %251 = memref.load %arg5[%c20_90] : memref<32xf32, #tpu.memory_space<smem>>
    %252 = vector.broadcast %251 : f32 to vector<16x16xf32>
    %253 = arith.mulf %9, %252 : vector<16x16xf32>
    %254 = arith.addf %250, %253 : vector<16x16xf32>
    %c21_91 = arith.constant 21 : index
    %255 = memref.load %arg5[%c21_91] : memref<32xf32, #tpu.memory_space<smem>>
    %256 = vector.broadcast %255 : f32 to vector<16x16xf32>
    %257 = arith.mulf %11, %256 : vector<16x16xf32>
    %258 = arith.addf %254, %257 : vector<16x16xf32>
    %c22_92 = arith.constant 22 : index
    %259 = memref.load %arg5[%c22_92] : memref<32xf32, #tpu.memory_space<smem>>
    %260 = vector.broadcast %259 : f32 to vector<16x16xf32>
    %261 = arith.mulf %13, %260 : vector<16x16xf32>
    %262 = arith.addf %258, %261 : vector<16x16xf32>
    %c23_93 = arith.constant 23 : index
    %263 = memref.load %arg5[%c23_93] : memref<32xf32, #tpu.memory_space<smem>>
    %264 = vector.broadcast %263 : f32 to vector<16x16xf32>
    %265 = arith.mulf %15, %264 : vector<16x16xf32>
    %266 = arith.addf %262, %265 : vector<16x16xf32>
    %c2_94 = arith.constant 2 : index
    %267 = memref.load %arg6[%c2_94] : memref<4xf32, #tpu.memory_space<smem>>
    %268 = vector.broadcast %267 : f32 to vector<16x16xf32>
    %269 = arith.addf %266, %268 : vector<16x16xf32>
    %c24_95 = arith.constant 24 : index
    %270 = memref.load %arg5[%c24_95] : memref<32xf32, #tpu.memory_space<smem>>
    %271 = vector.broadcast %270 : f32 to vector<16x16xf32>
    %272 = arith.mulf %1, %271 : vector<16x16xf32>
    %c25_96 = arith.constant 25 : index
    %273 = memref.load %arg5[%c25_96] : memref<32xf32, #tpu.memory_space<smem>>
    %274 = vector.broadcast %273 : f32 to vector<16x16xf32>
    %275 = arith.mulf %3, %274 : vector<16x16xf32>
    %276 = arith.addf %272, %275 : vector<16x16xf32>
    %c26_97 = arith.constant 26 : index
    %277 = memref.load %arg5[%c26_97] : memref<32xf32, #tpu.memory_space<smem>>
    %278 = vector.broadcast %277 : f32 to vector<16x16xf32>
    %279 = arith.mulf %5, %278 : vector<16x16xf32>
    %280 = arith.addf %276, %279 : vector<16x16xf32>
    %c27_98 = arith.constant 27 : index
    %281 = memref.load %arg5[%c27_98] : memref<32xf32, #tpu.memory_space<smem>>
    %282 = vector.broadcast %281 : f32 to vector<16x16xf32>
    %283 = arith.mulf %7, %282 : vector<16x16xf32>
    %284 = arith.addf %280, %283 : vector<16x16xf32>
    %c28_99 = arith.constant 28 : index
    %285 = memref.load %arg5[%c28_99] : memref<32xf32, #tpu.memory_space<smem>>
    %286 = vector.broadcast %285 : f32 to vector<16x16xf32>
    %287 = arith.mulf %9, %286 : vector<16x16xf32>
    %288 = arith.addf %284, %287 : vector<16x16xf32>
    %c29_100 = arith.constant 29 : index
    %289 = memref.load %arg5[%c29_100] : memref<32xf32, #tpu.memory_space<smem>>
    %290 = vector.broadcast %289 : f32 to vector<16x16xf32>
    %291 = arith.mulf %11, %290 : vector<16x16xf32>
    %292 = arith.addf %288, %291 : vector<16x16xf32>
    %c30_101 = arith.constant 30 : index
    %293 = memref.load %arg5[%c30_101] : memref<32xf32, #tpu.memory_space<smem>>
    %294 = vector.broadcast %293 : f32 to vector<16x16xf32>
    %295 = arith.mulf %13, %294 : vector<16x16xf32>
    %296 = arith.addf %292, %295 : vector<16x16xf32>
    %c31_102 = arith.constant 31 : index
    %297 = memref.load %arg5[%c31_102] : memref<32xf32, #tpu.memory_space<smem>>
    %298 = vector.broadcast %297 : f32 to vector<16x16xf32>
    %299 = arith.mulf %15, %298 : vector<16x16xf32>
    %300 = arith.addf %296, %299 : vector<16x16xf32>
    %c3_103 = arith.constant 3 : index
    %301 = memref.load %arg6[%c3_103] : memref<4xf32, #tpu.memory_space<smem>>
    %302 = vector.broadcast %301 : f32 to vector<16x16xf32>
    %303 = arith.addf %300, %302 : vector<16x16xf32>
    %c0_104 = arith.constant 0 : index
    %304 = memref.load %arg11[%c0_104] : memref<32xf32, #tpu.memory_space<smem>>
    %305 = vector.broadcast %304 : f32 to vector<16x16xf32>
    %306 = arith.mulf %17, %305 : vector<16x16xf32>
    %c1_105 = arith.constant 1 : index
    %307 = memref.load %arg11[%c1_105] : memref<32xf32, #tpu.memory_space<smem>>
    %308 = vector.broadcast %307 : f32 to vector<16x16xf32>
    %309 = arith.mulf %19, %308 : vector<16x16xf32>
    %310 = arith.addf %306, %309 : vector<16x16xf32>
    %c2_106 = arith.constant 2 : index
    %311 = memref.load %arg11[%c2_106] : memref<32xf32, #tpu.memory_space<smem>>
    %312 = vector.broadcast %311 : f32 to vector<16x16xf32>
    %313 = arith.mulf %21, %312 : vector<16x16xf32>
    %314 = arith.addf %310, %313 : vector<16x16xf32>
    %c3_107 = arith.constant 3 : index
    %315 = memref.load %arg11[%c3_107] : memref<32xf32, #tpu.memory_space<smem>>
    %316 = vector.broadcast %315 : f32 to vector<16x16xf32>
    %317 = arith.mulf %23, %316 : vector<16x16xf32>
    %318 = arith.addf %314, %317 : vector<16x16xf32>
    %c4_108 = arith.constant 4 : index
    %319 = memref.load %arg11[%c4_108] : memref<32xf32, #tpu.memory_space<smem>>
    %320 = vector.broadcast %319 : f32 to vector<16x16xf32>
    %321 = arith.mulf %25, %320 : vector<16x16xf32>
    %322 = arith.addf %318, %321 : vector<16x16xf32>
    %c5_109 = arith.constant 5 : index
    %323 = memref.load %arg11[%c5_109] : memref<32xf32, #tpu.memory_space<smem>>
    %324 = vector.broadcast %323 : f32 to vector<16x16xf32>
    %325 = arith.mulf %27, %324 : vector<16x16xf32>
    %326 = arith.addf %322, %325 : vector<16x16xf32>
    %c6_110 = arith.constant 6 : index
    %327 = memref.load %arg11[%c6_110] : memref<32xf32, #tpu.memory_space<smem>>
    %328 = vector.broadcast %327 : f32 to vector<16x16xf32>
    %329 = arith.mulf %29, %328 : vector<16x16xf32>
    %330 = arith.addf %326, %329 : vector<16x16xf32>
    %c7_111 = arith.constant 7 : index
    %331 = memref.load %arg11[%c7_111] : memref<32xf32, #tpu.memory_space<smem>>
    %332 = vector.broadcast %331 : f32 to vector<16x16xf32>
    %333 = arith.mulf %31, %332 : vector<16x16xf32>
    %334 = arith.addf %330, %333 : vector<16x16xf32>
    %c0_112 = arith.constant 0 : index
    %335 = memref.load %arg12[%c0_112] : memref<4xf32, #tpu.memory_space<smem>>
    %336 = vector.broadcast %335 : f32 to vector<16x16xf32>
    %337 = arith.addf %334, %336 : vector<16x16xf32>
    %c8_113 = arith.constant 8 : index
    %338 = memref.load %arg11[%c8_113] : memref<32xf32, #tpu.memory_space<smem>>
    %339 = vector.broadcast %338 : f32 to vector<16x16xf32>
    %340 = arith.mulf %17, %339 : vector<16x16xf32>
    %c9_114 = arith.constant 9 : index
    %341 = memref.load %arg11[%c9_114] : memref<32xf32, #tpu.memory_space<smem>>
    %342 = vector.broadcast %341 : f32 to vector<16x16xf32>
    %343 = arith.mulf %19, %342 : vector<16x16xf32>
    %344 = arith.addf %340, %343 : vector<16x16xf32>
    %c10_115 = arith.constant 10 : index
    %345 = memref.load %arg11[%c10_115] : memref<32xf32, #tpu.memory_space<smem>>
    %346 = vector.broadcast %345 : f32 to vector<16x16xf32>
    %347 = arith.mulf %21, %346 : vector<16x16xf32>
    %348 = arith.addf %344, %347 : vector<16x16xf32>
    %c11_116 = arith.constant 11 : index
    %349 = memref.load %arg11[%c11_116] : memref<32xf32, #tpu.memory_space<smem>>
    %350 = vector.broadcast %349 : f32 to vector<16x16xf32>
    %351 = arith.mulf %23, %350 : vector<16x16xf32>
    %352 = arith.addf %348, %351 : vector<16x16xf32>
    %c12_117 = arith.constant 12 : index
    %353 = memref.load %arg11[%c12_117] : memref<32xf32, #tpu.memory_space<smem>>
    %354 = vector.broadcast %353 : f32 to vector<16x16xf32>
    %355 = arith.mulf %25, %354 : vector<16x16xf32>
    %356 = arith.addf %352, %355 : vector<16x16xf32>
    %c13_118 = arith.constant 13 : index
    %357 = memref.load %arg11[%c13_118] : memref<32xf32, #tpu.memory_space<smem>>
    %358 = vector.broadcast %357 : f32 to vector<16x16xf32>
    %359 = arith.mulf %27, %358 : vector<16x16xf32>
    %360 = arith.addf %356, %359 : vector<16x16xf32>
    %c14_119 = arith.constant 14 : index
    %361 = memref.load %arg11[%c14_119] : memref<32xf32, #tpu.memory_space<smem>>
    %362 = vector.broadcast %361 : f32 to vector<16x16xf32>
    %363 = arith.mulf %29, %362 : vector<16x16xf32>
    %364 = arith.addf %360, %363 : vector<16x16xf32>
    %c15_120 = arith.constant 15 : index
    %365 = memref.load %arg11[%c15_120] : memref<32xf32, #tpu.memory_space<smem>>
    %366 = vector.broadcast %365 : f32 to vector<16x16xf32>
    %367 = arith.mulf %31, %366 : vector<16x16xf32>
    %368 = arith.addf %364, %367 : vector<16x16xf32>
    %c1_121 = arith.constant 1 : index
    %369 = memref.load %arg12[%c1_121] : memref<4xf32, #tpu.memory_space<smem>>
    %370 = vector.broadcast %369 : f32 to vector<16x16xf32>
    %371 = arith.addf %368, %370 : vector<16x16xf32>
    %c16_122 = arith.constant 16 : index
    %372 = memref.load %arg11[%c16_122] : memref<32xf32, #tpu.memory_space<smem>>
    %373 = vector.broadcast %372 : f32 to vector<16x16xf32>
    %374 = arith.mulf %17, %373 : vector<16x16xf32>
    %c17_123 = arith.constant 17 : index
    %375 = memref.load %arg11[%c17_123] : memref<32xf32, #tpu.memory_space<smem>>
    %376 = vector.broadcast %375 : f32 to vector<16x16xf32>
    %377 = arith.mulf %19, %376 : vector<16x16xf32>
    %378 = arith.addf %374, %377 : vector<16x16xf32>
    %c18_124 = arith.constant 18 : index
    %379 = memref.load %arg11[%c18_124] : memref<32xf32, #tpu.memory_space<smem>>
    %380 = vector.broadcast %379 : f32 to vector<16x16xf32>
    %381 = arith.mulf %21, %380 : vector<16x16xf32>
    %382 = arith.addf %378, %381 : vector<16x16xf32>
    %c19_125 = arith.constant 19 : index
    %383 = memref.load %arg11[%c19_125] : memref<32xf32, #tpu.memory_space<smem>>
    %384 = vector.broadcast %383 : f32 to vector<16x16xf32>
    %385 = arith.mulf %23, %384 : vector<16x16xf32>
    %386 = arith.addf %382, %385 : vector<16x16xf32>
    %c20_126 = arith.constant 20 : index
    %387 = memref.load %arg11[%c20_126] : memref<32xf32, #tpu.memory_space<smem>>
    %388 = vector.broadcast %387 : f32 to vector<16x16xf32>
    %389 = arith.mulf %25, %388 : vector<16x16xf32>
    %390 = arith.addf %386, %389 : vector<16x16xf32>
    %c21_127 = arith.constant 21 : index
    %391 = memref.load %arg11[%c21_127] : memref<32xf32, #tpu.memory_space<smem>>
    %392 = vector.broadcast %391 : f32 to vector<16x16xf32>
    %393 = arith.mulf %27, %392 : vector<16x16xf32>
    %394 = arith.addf %390, %393 : vector<16x16xf32>
    %c22_128 = arith.constant 22 : index
    %395 = memref.load %arg11[%c22_128] : memref<32xf32, #tpu.memory_space<smem>>
    %396 = vector.broadcast %395 : f32 to vector<16x16xf32>
    %397 = arith.mulf %29, %396 : vector<16x16xf32>
    %398 = arith.addf %394, %397 : vector<16x16xf32>
    %c23_129 = arith.constant 23 : index
    %399 = memref.load %arg11[%c23_129] : memref<32xf32, #tpu.memory_space<smem>>
    %400 = vector.broadcast %399 : f32 to vector<16x16xf32>
    %401 = arith.mulf %31, %400 : vector<16x16xf32>
    %402 = arith.addf %398, %401 : vector<16x16xf32>
    %c2_130 = arith.constant 2 : index
    %403 = memref.load %arg12[%c2_130] : memref<4xf32, #tpu.memory_space<smem>>
    %404 = vector.broadcast %403 : f32 to vector<16x16xf32>
    %405 = arith.addf %402, %404 : vector<16x16xf32>
    %c24_131 = arith.constant 24 : index
    %406 = memref.load %arg11[%c24_131] : memref<32xf32, #tpu.memory_space<smem>>
    %407 = vector.broadcast %406 : f32 to vector<16x16xf32>
    %408 = arith.mulf %17, %407 : vector<16x16xf32>
    %c25_132 = arith.constant 25 : index
    %409 = memref.load %arg11[%c25_132] : memref<32xf32, #tpu.memory_space<smem>>
    %410 = vector.broadcast %409 : f32 to vector<16x16xf32>
    %411 = arith.mulf %19, %410 : vector<16x16xf32>
    %412 = arith.addf %408, %411 : vector<16x16xf32>
    %c26_133 = arith.constant 26 : index
    %413 = memref.load %arg11[%c26_133] : memref<32xf32, #tpu.memory_space<smem>>
    %414 = vector.broadcast %413 : f32 to vector<16x16xf32>
    %415 = arith.mulf %21, %414 : vector<16x16xf32>
    %416 = arith.addf %412, %415 : vector<16x16xf32>
    %c27_134 = arith.constant 27 : index
    %417 = memref.load %arg11[%c27_134] : memref<32xf32, #tpu.memory_space<smem>>
    %418 = vector.broadcast %417 : f32 to vector<16x16xf32>
    %419 = arith.mulf %23, %418 : vector<16x16xf32>
    %420 = arith.addf %416, %419 : vector<16x16xf32>
    %c28_135 = arith.constant 28 : index
    %421 = memref.load %arg11[%c28_135] : memref<32xf32, #tpu.memory_space<smem>>
    %422 = vector.broadcast %421 : f32 to vector<16x16xf32>
    %423 = arith.mulf %25, %422 : vector<16x16xf32>
    %424 = arith.addf %420, %423 : vector<16x16xf32>
    %c29_136 = arith.constant 29 : index
    %425 = memref.load %arg11[%c29_136] : memref<32xf32, #tpu.memory_space<smem>>
    %426 = vector.broadcast %425 : f32 to vector<16x16xf32>
    %427 = arith.mulf %27, %426 : vector<16x16xf32>
    %428 = arith.addf %424, %427 : vector<16x16xf32>
    %c30_137 = arith.constant 30 : index
    %429 = memref.load %arg11[%c30_137] : memref<32xf32, #tpu.memory_space<smem>>
    %430 = vector.broadcast %429 : f32 to vector<16x16xf32>
    %431 = arith.mulf %29, %430 : vector<16x16xf32>
    %432 = arith.addf %428, %431 : vector<16x16xf32>
    %c31_138 = arith.constant 31 : index
    %433 = memref.load %arg11[%c31_138] : memref<32xf32, #tpu.memory_space<smem>>
    %434 = vector.broadcast %433 : f32 to vector<16x16xf32>
    %435 = arith.mulf %31, %434 : vector<16x16xf32>
    %436 = arith.addf %432, %435 : vector<16x16xf32>
    %c3_139 = arith.constant 3 : index
    %437 = memref.load %arg12[%c3_139] : memref<4xf32, #tpu.memory_space<smem>>
    %438 = vector.broadcast %437 : f32 to vector<16x16xf32>
    %439 = arith.addf %436, %438 : vector<16x16xf32>
    %cst = arith.constant dense<0.000000e+00> : vector<16xf32>
    %440 = vector.multi_reduction <add>, %201, %cst [1] : vector<16x16xf32> to vector<16xf32>
    %441 = vector.shape_cast %440 : vector<16xf32> to vector<16x1xf32>
    %cst_140 = arith.constant dense<0.000000e+00> : vector<1xf32>
    %442 = vector.multi_reduction <add>, %441, %cst_140 [0] : vector<16x1xf32> to vector<1xf32>
    %443 = vector.shape_cast %442 : vector<1xf32> to vector<1x1xf32>
    %cst_141 = arith.constant 3.906250e-03 : f32
    %444 = vector.broadcast %cst_141 : f32 to vector<1x1xf32>
    %445 = arith.mulf %443, %444 : vector<1x1xf32>
    %cst_142 = arith.constant dense<0.000000e+00> : vector<16xf32>
    %446 = vector.multi_reduction <add>, %235, %cst_142 [1] : vector<16x16xf32> to vector<16xf32>
    %447 = vector.shape_cast %446 : vector<16xf32> to vector<16x1xf32>
    %cst_143 = arith.constant dense<0.000000e+00> : vector<1xf32>
    %448 = vector.multi_reduction <add>, %447, %cst_143 [0] : vector<16x1xf32> to vector<1xf32>
    %449 = vector.shape_cast %448 : vector<1xf32> to vector<1x1xf32>
    %cst_144 = arith.constant 3.906250e-03 : f32
    %450 = vector.broadcast %cst_144 : f32 to vector<1x1xf32>
    %451 = arith.mulf %449, %450 : vector<1x1xf32>
    %cst_145 = arith.constant dense<0.000000e+00> : vector<16xf32>
    %452 = vector.multi_reduction <add>, %269, %cst_145 [1] : vector<16x16xf32> to vector<16xf32>
    %453 = vector.shape_cast %452 : vector<16xf32> to vector<16x1xf32>
    %cst_146 = arith.constant dense<0.000000e+00> : vector<1xf32>
    %454 = vector.multi_reduction <add>, %453, %cst_146 [0] : vector<16x1xf32> to vector<1xf32>
    %455 = vector.shape_cast %454 : vector<1xf32> to vector<1x1xf32>
    %cst_147 = arith.constant 3.906250e-03 : f32
    %456 = vector.broadcast %cst_147 : f32 to vector<1x1xf32>
    %457 = arith.mulf %455, %456 : vector<1x1xf32>
    %cst_148 = arith.constant dense<0.000000e+00> : vector<16xf32>
    %458 = vector.multi_reduction <add>, %303, %cst_148 [1] : vector<16x16xf32> to vector<16xf32>
    %459 = vector.shape_cast %458 : vector<16xf32> to vector<16x1xf32>
    %cst_149 = arith.constant dense<0.000000e+00> : vector<1xf32>
    %460 = vector.multi_reduction <add>, %459, %cst_149 [0] : vector<16x1xf32> to vector<1xf32>
    %461 = vector.shape_cast %460 : vector<1xf32> to vector<1x1xf32>
    %cst_150 = arith.constant 3.906250e-03 : f32
    %462 = vector.broadcast %cst_150 : f32 to vector<1x1xf32>
    %463 = arith.mulf %461, %462 : vector<1x1xf32>
    %c0_151 = arith.constant 0 : index
    %464 = memref.load %arg7[%c0_151] : memref<8xf32, #tpu.memory_space<smem>>
    %465 = vector.broadcast %464 : f32 to vector<1x1xf32>
    %466 = arith.mulf %445, %465 : vector<1x1xf32>
    %c1_152 = arith.constant 1 : index
    %467 = memref.load %arg7[%c1_152] : memref<8xf32, #tpu.memory_space<smem>>
    %468 = vector.broadcast %467 : f32 to vector<1x1xf32>
    %469 = arith.mulf %451, %468 : vector<1x1xf32>
    %470 = arith.addf %466, %469 : vector<1x1xf32>
    %c2_153 = arith.constant 2 : index
    %471 = memref.load %arg7[%c2_153] : memref<8xf32, #tpu.memory_space<smem>>
    %472 = vector.broadcast %471 : f32 to vector<1x1xf32>
    %473 = arith.mulf %457, %472 : vector<1x1xf32>
    %474 = arith.addf %470, %473 : vector<1x1xf32>
    %c3_154 = arith.constant 3 : index
    %475 = memref.load %arg7[%c3_154] : memref<8xf32, #tpu.memory_space<smem>>
    %476 = vector.broadcast %475 : f32 to vector<1x1xf32>
    %477 = arith.mulf %463, %476 : vector<1x1xf32>
    %478 = arith.addf %474, %477 : vector<1x1xf32>
    %c0_155 = arith.constant 0 : index
    %479 = memref.load %arg8[%c0_155] : memref<2xf32, #tpu.memory_space<smem>>
    %480 = vector.broadcast %479 : f32 to vector<1x1xf32>
    %481 = arith.addf %478, %480 : vector<1x1xf32>
    %cst_156 = arith.constant 0.000000e+00 : f32
    %482 = vector.broadcast %cst_156 : f32 to vector<1x1xf32>
    %483 = arith.maximumf %481, %482 : vector<1x1xf32>
    %c4_157 = arith.constant 4 : index
    %484 = memref.load %arg7[%c4_157] : memref<8xf32, #tpu.memory_space<smem>>
    %485 = vector.broadcast %484 : f32 to vector<1x1xf32>
    %486 = arith.mulf %445, %485 : vector<1x1xf32>
    %c5_158 = arith.constant 5 : index
    %487 = memref.load %arg7[%c5_158] : memref<8xf32, #tpu.memory_space<smem>>
    %488 = vector.broadcast %487 : f32 to vector<1x1xf32>
    %489 = arith.mulf %451, %488 : vector<1x1xf32>
    %490 = arith.addf %486, %489 : vector<1x1xf32>
    %c6_159 = arith.constant 6 : index
    %491 = memref.load %arg7[%c6_159] : memref<8xf32, #tpu.memory_space<smem>>
    %492 = vector.broadcast %491 : f32 to vector<1x1xf32>
    %493 = arith.mulf %457, %492 : vector<1x1xf32>
    %494 = arith.addf %490, %493 : vector<1x1xf32>
    %c7_160 = arith.constant 7 : index
    %495 = memref.load %arg7[%c7_160] : memref<8xf32, #tpu.memory_space<smem>>
    %496 = vector.broadcast %495 : f32 to vector<1x1xf32>
    %497 = arith.mulf %463, %496 : vector<1x1xf32>
    %498 = arith.addf %494, %497 : vector<1x1xf32>
    %c1_161 = arith.constant 1 : index
    %499 = memref.load %arg8[%c1_161] : memref<2xf32, #tpu.memory_space<smem>>
    %500 = vector.broadcast %499 : f32 to vector<1x1xf32>
    %501 = arith.addf %498, %500 : vector<1x1xf32>
    %cst_162 = arith.constant 0.000000e+00 : f32
    %502 = vector.broadcast %cst_162 : f32 to vector<1x1xf32>
    %503 = arith.maximumf %501, %502 : vector<1x1xf32>
    %c0_163 = arith.constant 0 : index
    %504 = memref.load %arg9[%c0_163] : memref<8xf32, #tpu.memory_space<smem>>
    %505 = vector.broadcast %504 : f32 to vector<1x1xf32>
    %506 = arith.mulf %483, %505 : vector<1x1xf32>
    %c1_164 = arith.constant 1 : index
    %507 = memref.load %arg9[%c1_164] : memref<8xf32, #tpu.memory_space<smem>>
    %508 = vector.broadcast %507 : f32 to vector<1x1xf32>
    %509 = arith.mulf %503, %508 : vector<1x1xf32>
    %510 = arith.addf %506, %509 : vector<1x1xf32>
    %c0_165 = arith.constant 0 : index
    %511 = memref.load %arg10[%c0_165] : memref<4xf32, #tpu.memory_space<smem>>
    %512 = vector.broadcast %511 : f32 to vector<1x1xf32>
    %513 = arith.addf %510, %512 : vector<1x1xf32>
    %cst_166 = arith.constant 0.000000e+00 : f32
    %514 = vector.broadcast %cst_166 : f32 to vector<1x1xf32>
    %515 = arith.subf %514, %513 : vector<1x1xf32>
    %516 = math.exp %515 : vector<1x1xf32>
    %cst_167 = arith.constant 1.000000e+00 : f32
    %517 = vector.broadcast %cst_167 : f32 to vector<1x1xf32>
    %518 = arith.addf %517, %516 : vector<1x1xf32>
    %cst_168 = arith.constant 1.000000e+00 : f32
    %519 = vector.broadcast %cst_168 : f32 to vector<1x1xf32>
    %520 = arith.divf %519, %518 : vector<1x1xf32>
    %521 = vector.broadcast %520 : vector<1x1xf32> to vector<16x16xf32>
    %522 = arith.mulf %201, %521 : vector<16x16xf32>
    %c2_169 = arith.constant 2 : index
    %523 = memref.load %arg9[%c2_169] : memref<8xf32, #tpu.memory_space<smem>>
    %524 = vector.broadcast %523 : f32 to vector<1x1xf32>
    %525 = arith.mulf %483, %524 : vector<1x1xf32>
    %c3_170 = arith.constant 3 : index
    %526 = memref.load %arg9[%c3_170] : memref<8xf32, #tpu.memory_space<smem>>
    %527 = vector.broadcast %526 : f32 to vector<1x1xf32>
    %528 = arith.mulf %503, %527 : vector<1x1xf32>
    %529 = arith.addf %525, %528 : vector<1x1xf32>
    %c1_171 = arith.constant 1 : index
    %530 = memref.load %arg10[%c1_171] : memref<4xf32, #tpu.memory_space<smem>>
    %531 = vector.broadcast %530 : f32 to vector<1x1xf32>
    %532 = arith.addf %529, %531 : vector<1x1xf32>
    %cst_172 = arith.constant 0.000000e+00 : f32
    %533 = vector.broadcast %cst_172 : f32 to vector<1x1xf32>
    %534 = arith.subf %533, %532 : vector<1x1xf32>
    %535 = math.exp %534 : vector<1x1xf32>
    %cst_173 = arith.constant 1.000000e+00 : f32
    %536 = vector.broadcast %cst_173 : f32 to vector<1x1xf32>
    %537 = arith.addf %536, %535 : vector<1x1xf32>
    %cst_174 = arith.constant 1.000000e+00 : f32
    %538 = vector.broadcast %cst_174 : f32 to vector<1x1xf32>
    %539 = arith.divf %538, %537 : vector<1x1xf32>
    %540 = vector.broadcast %539 : vector<1x1xf32> to vector<16x16xf32>
    %541 = arith.mulf %235, %540 : vector<16x16xf32>
    %c4_175 = arith.constant 4 : index
    %542 = memref.load %arg9[%c4_175] : memref<8xf32, #tpu.memory_space<smem>>
    %543 = vector.broadcast %542 : f32 to vector<1x1xf32>
    %544 = arith.mulf %483, %543 : vector<1x1xf32>
    %c5_176 = arith.constant 5 : index
    %545 = memref.load %arg9[%c5_176] : memref<8xf32, #tpu.memory_space<smem>>
    %546 = vector.broadcast %545 : f32 to vector<1x1xf32>
    %547 = arith.mulf %503, %546 : vector<1x1xf32>
    %548 = arith.addf %544, %547 : vector<1x1xf32>
    %c2_177 = arith.constant 2 : index
    %549 = memref.load %arg10[%c2_177] : memref<4xf32, #tpu.memory_space<smem>>
    %550 = vector.broadcast %549 : f32 to vector<1x1xf32>
    %551 = arith.addf %548, %550 : vector<1x1xf32>
    %cst_178 = arith.constant 0.000000e+00 : f32
    %552 = vector.broadcast %cst_178 : f32 to vector<1x1xf32>
    %553 = arith.subf %552, %551 : vector<1x1xf32>
    %554 = math.exp %553 : vector<1x1xf32>
    %cst_179 = arith.constant 1.000000e+00 : f32
    %555 = vector.broadcast %cst_179 : f32 to vector<1x1xf32>
    %556 = arith.addf %555, %554 : vector<1x1xf32>
    %cst_180 = arith.constant 1.000000e+00 : f32
    %557 = vector.broadcast %cst_180 : f32 to vector<1x1xf32>
    %558 = arith.divf %557, %556 : vector<1x1xf32>
    %559 = vector.broadcast %558 : vector<1x1xf32> to vector<16x16xf32>
    %560 = arith.mulf %269, %559 : vector<16x16xf32>
    %c6_181 = arith.constant 6 : index
    %561 = memref.load %arg9[%c6_181] : memref<8xf32, #tpu.memory_space<smem>>
    %562 = vector.broadcast %561 : f32 to vector<1x1xf32>
    %563 = arith.mulf %483, %562 : vector<1x1xf32>
    %c7_182 = arith.constant 7 : index
    %564 = memref.load %arg9[%c7_182] : memref<8xf32, #tpu.memory_space<smem>>
    %565 = vector.broadcast %564 : f32 to vector<1x1xf32>
    %566 = arith.mulf %503, %565 : vector<1x1xf32>
    %567 = arith.addf %563, %566 : vector<1x1xf32>
    %c3_183 = arith.constant 3 : index
    %568 = memref.load %arg10[%c3_183] : memref<4xf32, #tpu.memory_space<smem>>
    %569 = vector.broadcast %568 : f32 to vector<1x1xf32>
    %570 = arith.addf %567, %569 : vector<1x1xf32>
    %cst_184 = arith.constant 0.000000e+00 : f32
    %571 = vector.broadcast %cst_184 : f32 to vector<1x1xf32>
    %572 = arith.subf %571, %570 : vector<1x1xf32>
    %573 = math.exp %572 : vector<1x1xf32>
    %cst_185 = arith.constant 1.000000e+00 : f32
    %574 = vector.broadcast %cst_185 : f32 to vector<1x1xf32>
    %575 = arith.addf %574, %573 : vector<1x1xf32>
    %cst_186 = arith.constant 1.000000e+00 : f32
    %576 = vector.broadcast %cst_186 : f32 to vector<1x1xf32>
    %577 = arith.divf %576, %575 : vector<1x1xf32>
    %578 = vector.broadcast %577 : vector<1x1xf32> to vector<16x16xf32>
    %579 = arith.mulf %303, %578 : vector<16x16xf32>
    %cst_187 = arith.constant dense<0.000000e+00> : vector<16xf32>
    %580 = vector.multi_reduction <add>, %337, %cst_187 [1] : vector<16x16xf32> to vector<16xf32>
    %581 = vector.shape_cast %580 : vector<16xf32> to vector<16x1xf32>
    %cst_188 = arith.constant dense<0.000000e+00> : vector<1xf32>
    %582 = vector.multi_reduction <add>, %581, %cst_188 [0] : vector<16x1xf32> to vector<1xf32>
    %583 = vector.shape_cast %582 : vector<1xf32> to vector<1x1xf32>
    %cst_189 = arith.constant 3.906250e-03 : f32
    %584 = vector.broadcast %cst_189 : f32 to vector<1x1xf32>
    %585 = arith.mulf %583, %584 : vector<1x1xf32>
    %cst_190 = arith.constant dense<0.000000e+00> : vector<16xf32>
    %586 = vector.multi_reduction <add>, %371, %cst_190 [1] : vector<16x16xf32> to vector<16xf32>
    %587 = vector.shape_cast %586 : vector<16xf32> to vector<16x1xf32>
    %cst_191 = arith.constant dense<0.000000e+00> : vector<1xf32>
    %588 = vector.multi_reduction <add>, %587, %cst_191 [0] : vector<16x1xf32> to vector<1xf32>
    %589 = vector.shape_cast %588 : vector<1xf32> to vector<1x1xf32>
    %cst_192 = arith.constant 3.906250e-03 : f32
    %590 = vector.broadcast %cst_192 : f32 to vector<1x1xf32>
    %591 = arith.mulf %589, %590 : vector<1x1xf32>
    %cst_193 = arith.constant dense<0.000000e+00> : vector<16xf32>
    %592 = vector.multi_reduction <add>, %405, %cst_193 [1] : vector<16x16xf32> to vector<16xf32>
    %593 = vector.shape_cast %592 : vector<16xf32> to vector<16x1xf32>
    %cst_194 = arith.constant dense<0.000000e+00> : vector<1xf32>
    %594 = vector.multi_reduction <add>, %593, %cst_194 [0] : vector<16x1xf32> to vector<1xf32>
    %595 = vector.shape_cast %594 : vector<1xf32> to vector<1x1xf32>
    %cst_195 = arith.constant 3.906250e-03 : f32
    %596 = vector.broadcast %cst_195 : f32 to vector<1x1xf32>
    %597 = arith.mulf %595, %596 : vector<1x1xf32>
    %cst_196 = arith.constant dense<0.000000e+00> : vector<16xf32>
    %598 = vector.multi_reduction <add>, %439, %cst_196 [1] : vector<16x16xf32> to vector<16xf32>
    %599 = vector.shape_cast %598 : vector<16xf32> to vector<16x1xf32>
    %cst_197 = arith.constant dense<0.000000e+00> : vector<1xf32>
    %600 = vector.multi_reduction <add>, %599, %cst_197 [0] : vector<16x1xf32> to vector<1xf32>
    %601 = vector.shape_cast %600 : vector<1xf32> to vector<1x1xf32>
    %cst_198 = arith.constant 3.906250e-03 : f32
    %602 = vector.broadcast %cst_198 : f32 to vector<1x1xf32>
    %603 = arith.mulf %601, %602 : vector<1x1xf32>
    %c0_199 = arith.constant 0 : index
    %604 = memref.load %arg13[%c0_199] : memref<8xf32, #tpu.memory_space<smem>>
    %605 = vector.broadcast %604 : f32 to vector<1x1xf32>
    %606 = arith.mulf %585, %605 : vector<1x1xf32>
    %c1_200 = arith.constant 1 : index
    %607 = memref.load %arg13[%c1_200] : memref<8xf32, #tpu.memory_space<smem>>
    %608 = vector.broadcast %607 : f32 to vector<1x1xf32>
    %609 = arith.mulf %591, %608 : vector<1x1xf32>
    %610 = arith.addf %606, %609 : vector<1x1xf32>
    %c2_201 = arith.constant 2 : index
    %611 = memref.load %arg13[%c2_201] : memref<8xf32, #tpu.memory_space<smem>>
    %612 = vector.broadcast %611 : f32 to vector<1x1xf32>
    %613 = arith.mulf %597, %612 : vector<1x1xf32>
    %614 = arith.addf %610, %613 : vector<1x1xf32>
    %c3_202 = arith.constant 3 : index
    %615 = memref.load %arg13[%c3_202] : memref<8xf32, #tpu.memory_space<smem>>
    %616 = vector.broadcast %615 : f32 to vector<1x1xf32>
    %617 = arith.mulf %603, %616 : vector<1x1xf32>
    %618 = arith.addf %614, %617 : vector<1x1xf32>
    %c0_203 = arith.constant 0 : index
    %619 = memref.load %arg14[%c0_203] : memref<2xf32, #tpu.memory_space<smem>>
    %620 = vector.broadcast %619 : f32 to vector<1x1xf32>
    %621 = arith.addf %618, %620 : vector<1x1xf32>
    %cst_204 = arith.constant 0.000000e+00 : f32
    %622 = vector.broadcast %cst_204 : f32 to vector<1x1xf32>
    %623 = arith.maximumf %621, %622 : vector<1x1xf32>
    %c4_205 = arith.constant 4 : index
    %624 = memref.load %arg13[%c4_205] : memref<8xf32, #tpu.memory_space<smem>>
    %625 = vector.broadcast %624 : f32 to vector<1x1xf32>
    %626 = arith.mulf %585, %625 : vector<1x1xf32>
    %c5_206 = arith.constant 5 : index
    %627 = memref.load %arg13[%c5_206] : memref<8xf32, #tpu.memory_space<smem>>
    %628 = vector.broadcast %627 : f32 to vector<1x1xf32>
    %629 = arith.mulf %591, %628 : vector<1x1xf32>
    %630 = arith.addf %626, %629 : vector<1x1xf32>
    %c6_207 = arith.constant 6 : index
    %631 = memref.load %arg13[%c6_207] : memref<8xf32, #tpu.memory_space<smem>>
    %632 = vector.broadcast %631 : f32 to vector<1x1xf32>
    %633 = arith.mulf %597, %632 : vector<1x1xf32>
    %634 = arith.addf %630, %633 : vector<1x1xf32>
    %c7_208 = arith.constant 7 : index
    %635 = memref.load %arg13[%c7_208] : memref<8xf32, #tpu.memory_space<smem>>
    %636 = vector.broadcast %635 : f32 to vector<1x1xf32>
    %637 = arith.mulf %603, %636 : vector<1x1xf32>
    %638 = arith.addf %634, %637 : vector<1x1xf32>
    %c1_209 = arith.constant 1 : index
    %639 = memref.load %arg14[%c1_209] : memref<2xf32, #tpu.memory_space<smem>>
    %640 = vector.broadcast %639 : f32 to vector<1x1xf32>
    %641 = arith.addf %638, %640 : vector<1x1xf32>
    %cst_210 = arith.constant 0.000000e+00 : f32
    %642 = vector.broadcast %cst_210 : f32 to vector<1x1xf32>
    %643 = arith.maximumf %641, %642 : vector<1x1xf32>
    %c0_211 = arith.constant 0 : index
    %644 = memref.load %arg15[%c0_211] : memref<8xf32, #tpu.memory_space<smem>>
    %645 = vector.broadcast %644 : f32 to vector<1x1xf32>
    %646 = arith.mulf %623, %645 : vector<1x1xf32>
    %c1_212 = arith.constant 1 : index
    %647 = memref.load %arg15[%c1_212] : memref<8xf32, #tpu.memory_space<smem>>
    %648 = vector.broadcast %647 : f32 to vector<1x1xf32>
    %649 = arith.mulf %643, %648 : vector<1x1xf32>
    %650 = arith.addf %646, %649 : vector<1x1xf32>
    %c0_213 = arith.constant 0 : index
    %651 = memref.load %arg16[%c0_213] : memref<4xf32, #tpu.memory_space<smem>>
    %652 = vector.broadcast %651 : f32 to vector<1x1xf32>
    %653 = arith.addf %650, %652 : vector<1x1xf32>
    %cst_214 = arith.constant 0.000000e+00 : f32
    %654 = vector.broadcast %cst_214 : f32 to vector<1x1xf32>
    %655 = arith.subf %654, %653 : vector<1x1xf32>
    %656 = math.exp %655 : vector<1x1xf32>
    %cst_215 = arith.constant 1.000000e+00 : f32
    %657 = vector.broadcast %cst_215 : f32 to vector<1x1xf32>
    %658 = arith.addf %657, %656 : vector<1x1xf32>
    %cst_216 = arith.constant 1.000000e+00 : f32
    %659 = vector.broadcast %cst_216 : f32 to vector<1x1xf32>
    %660 = arith.divf %659, %658 : vector<1x1xf32>
    %661 = vector.broadcast %660 : vector<1x1xf32> to vector<16x16xf32>
    %662 = arith.mulf %337, %661 : vector<16x16xf32>
    %c2_217 = arith.constant 2 : index
    %663 = memref.load %arg15[%c2_217] : memref<8xf32, #tpu.memory_space<smem>>
    %664 = vector.broadcast %663 : f32 to vector<1x1xf32>
    %665 = arith.mulf %623, %664 : vector<1x1xf32>
    %c3_218 = arith.constant 3 : index
    %666 = memref.load %arg15[%c3_218] : memref<8xf32, #tpu.memory_space<smem>>
    %667 = vector.broadcast %666 : f32 to vector<1x1xf32>
    %668 = arith.mulf %643, %667 : vector<1x1xf32>
    %669 = arith.addf %665, %668 : vector<1x1xf32>
    %c1_219 = arith.constant 1 : index
    %670 = memref.load %arg16[%c1_219] : memref<4xf32, #tpu.memory_space<smem>>
    %671 = vector.broadcast %670 : f32 to vector<1x1xf32>
    %672 = arith.addf %669, %671 : vector<1x1xf32>
    %cst_220 = arith.constant 0.000000e+00 : f32
    %673 = vector.broadcast %cst_220 : f32 to vector<1x1xf32>
    %674 = arith.subf %673, %672 : vector<1x1xf32>
    %675 = math.exp %674 : vector<1x1xf32>
    %cst_221 = arith.constant 1.000000e+00 : f32
    %676 = vector.broadcast %cst_221 : f32 to vector<1x1xf32>
    %677 = arith.addf %676, %675 : vector<1x1xf32>
    %cst_222 = arith.constant 1.000000e+00 : f32
    %678 = vector.broadcast %cst_222 : f32 to vector<1x1xf32>
    %679 = arith.divf %678, %677 : vector<1x1xf32>
    %680 = vector.broadcast %679 : vector<1x1xf32> to vector<16x16xf32>
    %681 = arith.mulf %371, %680 : vector<16x16xf32>
    %c4_223 = arith.constant 4 : index
    %682 = memref.load %arg15[%c4_223] : memref<8xf32, #tpu.memory_space<smem>>
    %683 = vector.broadcast %682 : f32 to vector<1x1xf32>
    %684 = arith.mulf %623, %683 : vector<1x1xf32>
    %c5_224 = arith.constant 5 : index
    %685 = memref.load %arg15[%c5_224] : memref<8xf32, #tpu.memory_space<smem>>
    %686 = vector.broadcast %685 : f32 to vector<1x1xf32>
    %687 = arith.mulf %643, %686 : vector<1x1xf32>
    %688 = arith.addf %684, %687 : vector<1x1xf32>
    %c2_225 = arith.constant 2 : index
    %689 = memref.load %arg16[%c2_225] : memref<4xf32, #tpu.memory_space<smem>>
    %690 = vector.broadcast %689 : f32 to vector<1x1xf32>
    %691 = arith.addf %688, %690 : vector<1x1xf32>
    %cst_226 = arith.constant 0.000000e+00 : f32
    %692 = vector.broadcast %cst_226 : f32 to vector<1x1xf32>
    %693 = arith.subf %692, %691 : vector<1x1xf32>
    %694 = math.exp %693 : vector<1x1xf32>
    %cst_227 = arith.constant 1.000000e+00 : f32
    %695 = vector.broadcast %cst_227 : f32 to vector<1x1xf32>
    %696 = arith.addf %695, %694 : vector<1x1xf32>
    %cst_228 = arith.constant 1.000000e+00 : f32
    %697 = vector.broadcast %cst_228 : f32 to vector<1x1xf32>
    %698 = arith.divf %697, %696 : vector<1x1xf32>
    %699 = vector.broadcast %698 : vector<1x1xf32> to vector<16x16xf32>
    %700 = arith.mulf %405, %699 : vector<16x16xf32>
    %c6_229 = arith.constant 6 : index
    %701 = memref.load %arg15[%c6_229] : memref<8xf32, #tpu.memory_space<smem>>
    %702 = vector.broadcast %701 : f32 to vector<1x1xf32>
    %703 = arith.mulf %623, %702 : vector<1x1xf32>
    %c7_230 = arith.constant 7 : index
    %704 = memref.load %arg15[%c7_230] : memref<8xf32, #tpu.memory_space<smem>>
    %705 = vector.broadcast %704 : f32 to vector<1x1xf32>
    %706 = arith.mulf %643, %705 : vector<1x1xf32>
    %707 = arith.addf %703, %706 : vector<1x1xf32>
    %c3_231 = arith.constant 3 : index
    %708 = memref.load %arg16[%c3_231] : memref<4xf32, #tpu.memory_space<smem>>
    %709 = vector.broadcast %708 : f32 to vector<1x1xf32>
    %710 = arith.addf %707, %709 : vector<1x1xf32>
    %cst_232 = arith.constant 0.000000e+00 : f32
    %711 = vector.broadcast %cst_232 : f32 to vector<1x1xf32>
    %712 = arith.subf %711, %710 : vector<1x1xf32>
    %713 = math.exp %712 : vector<1x1xf32>
    %cst_233 = arith.constant 1.000000e+00 : f32
    %714 = vector.broadcast %cst_233 : f32 to vector<1x1xf32>
    %715 = arith.addf %714, %713 : vector<1x1xf32>
    %cst_234 = arith.constant 1.000000e+00 : f32
    %716 = vector.broadcast %cst_234 : f32 to vector<1x1xf32>
    %717 = arith.divf %716, %715 : vector<1x1xf32>
    %718 = vector.broadcast %717 : vector<1x1xf32> to vector<16x16xf32>
    %719 = arith.mulf %439, %718 : vector<16x16xf32>
    %cst_235 = arith.constant dense<0.000000e+00> : vector<16x16xf32>
    %720 = tpu.matmul %522, %65, %cst_235 {dimension_numbers = #tpu.dot_dimension_numbers<[1], [0], [0], [1], [0, 0, 1, 1], [], []>} : vector<16x16xf32>, vector<16x16xf32>, vector<16x16xf32> -> vector<16x16xf32>
    %cst_236 = arith.constant dense<0.000000e+00> : vector<16x16xf32>
    %721 = tpu.matmul %720, %662, %cst_236 {dimension_numbers = #tpu.dot_dimension_numbers<[1], [0], [0], [1], [0, 0, 1, 1], [], []>} : vector<16x16xf32>, vector<16x16xf32>, vector<16x16xf32> -> vector<16x16xf32>
    %cst_237 = arith.constant dense<0.000000e+00> : vector<16x16xf32>
    %722 = tpu.matmul %541, %99, %cst_237 {dimension_numbers = #tpu.dot_dimension_numbers<[1], [0], [0], [1], [0, 0, 1, 1], [], []>} : vector<16x16xf32>, vector<16x16xf32>, vector<16x16xf32> -> vector<16x16xf32>
    %cst_238 = arith.constant dense<0.000000e+00> : vector<16x16xf32>
    %723 = tpu.matmul %722, %681, %cst_238 {dimension_numbers = #tpu.dot_dimension_numbers<[1], [0], [0], [1], [0, 0, 1, 1], [], []>} : vector<16x16xf32>, vector<16x16xf32>, vector<16x16xf32> -> vector<16x16xf32>
    %cst_239 = arith.constant dense<0.000000e+00> : vector<16x16xf32>
    %724 = tpu.matmul %560, %133, %cst_239 {dimension_numbers = #tpu.dot_dimension_numbers<[1], [0], [0], [1], [0, 0, 1, 1], [], []>} : vector<16x16xf32>, vector<16x16xf32>, vector<16x16xf32> -> vector<16x16xf32>
    %cst_240 = arith.constant dense<0.000000e+00> : vector<16x16xf32>
    %725 = tpu.matmul %724, %700, %cst_240 {dimension_numbers = #tpu.dot_dimension_numbers<[1], [0], [0], [1], [0, 0, 1, 1], [], []>} : vector<16x16xf32>, vector<16x16xf32>, vector<16x16xf32> -> vector<16x16xf32>
    %cst_241 = arith.constant dense<0.000000e+00> : vector<16x16xf32>
    %726 = tpu.matmul %579, %167, %cst_241 {dimension_numbers = #tpu.dot_dimension_numbers<[1], [0], [0], [1], [0, 0, 1, 1], [], []>} : vector<16x16xf32>, vector<16x16xf32>, vector<16x16xf32> -> vector<16x16xf32>
    %cst_242 = arith.constant dense<0.000000e+00> : vector<16x16xf32>
    %727 = tpu.matmul %726, %719, %cst_242 {dimension_numbers = #tpu.dot_dimension_numbers<[1], [0], [0], [1], [0, 0, 1, 1], [], []>} : vector<16x16xf32>, vector<16x16xf32>, vector<16x16xf32> -> vector<16x16xf32>
    %c0_243 = arith.constant 0 : index
    %728 = memref.load %arg17[%c0_243] : memref<32xf32, #tpu.memory_space<smem>>
    %729 = vector.broadcast %728 : f32 to vector<16x16xf32>
    %730 = arith.mulf %721, %729 : vector<16x16xf32>
    %c1_244 = arith.constant 1 : index
    %731 = memref.load %arg17[%c1_244] : memref<32xf32, #tpu.memory_space<smem>>
    %732 = vector.broadcast %731 : f32 to vector<16x16xf32>
    %733 = arith.mulf %723, %732 : vector<16x16xf32>
    %734 = arith.addf %730, %733 : vector<16x16xf32>
    %c2_245 = arith.constant 2 : index
    %735 = memref.load %arg17[%c2_245] : memref<32xf32, #tpu.memory_space<smem>>
    %736 = vector.broadcast %735 : f32 to vector<16x16xf32>
    %737 = arith.mulf %725, %736 : vector<16x16xf32>
    %738 = arith.addf %734, %737 : vector<16x16xf32>
    %c3_246 = arith.constant 3 : index
    %739 = memref.load %arg17[%c3_246] : memref<32xf32, #tpu.memory_space<smem>>
    %740 = vector.broadcast %739 : f32 to vector<16x16xf32>
    %741 = arith.mulf %727, %740 : vector<16x16xf32>
    %742 = arith.addf %738, %741 : vector<16x16xf32>
    %c0_247 = arith.constant 0 : index
    %743 = memref.load %arg18[%c0_247] : memref<8xf32, #tpu.memory_space<smem>>
    %744 = vector.broadcast %743 : f32 to vector<16x16xf32>
    %745 = arith.addf %742, %744 : vector<16x16xf32>
    %cst_248 = arith.constant 0.000000e+00 : f32
    %746 = vector.broadcast %cst_248 : f32 to vector<16x16xf32>
    %747 = arith.maximumf %745, %746 : vector<16x16xf32>
    %c0_249 = arith.constant 0 : index
    %c0_250 = arith.constant 0 : index
    %c0_251 = arith.constant 0 : index
    %c0_252 = arith.constant 0 : index
    %748 = vector.load %arg19[%c0_249, %c0_250, %c0_251, %c0_252] : memref<1x8x16x16xf32, #tpu.memory_space<vmem>>, vector<1x1x16x16xf32>
    %749 = vector.shape_cast %748 : vector<1x1x16x16xf32> to vector<16x16xf32>
    %750 = vector.shape_cast %747 : vector<16x16xf32> to vector<1x1x16x16xf32>
    tpu.vector_store %arg19[%c0_249, %c0_250, %c0_251, %c0_252], %750 {strides = array<i32>} : memref<1x8x16x16xf32, #tpu.memory_space<vmem>>, vector<1x1x16x16xf32>,
    %c4_253 = arith.constant 4 : index
    %751 = memref.load %arg17[%c4_253] : memref<32xf32, #tpu.memory_space<smem>>
    %752 = vector.broadcast %751 : f32 to vector<16x16xf32>
    %753 = arith.mulf %721, %752 : vector<16x16xf32>
    %c5_254 = arith.constant 5 : index
    %754 = memref.load %arg17[%c5_254] : memref<32xf32, #tpu.memory_space<smem>>
    %755 = vector.broadcast %754 : f32 to vector<16x16xf32>
    %756 = arith.mulf %723, %755 : vector<16x16xf32>
    %757 = arith.addf %753, %756 : vector<16x16xf32>
    %c6_255 = arith.constant 6 : index
    %758 = memref.load %arg17[%c6_255] : memref<32xf32, #tpu.memory_space<smem>>
    %759 = vector.broadcast %758 : f32 to vector<16x16xf32>
    %760 = arith.mulf %725, %759 : vector<16x16xf32>
    %761 = arith.addf %757, %760 : vector<16x16xf32>
    %c7_256 = arith.constant 7 : index
    %762 = memref.load %arg17[%c7_256] : memref<32xf32, #tpu.memory_space<smem>>
    %763 = vector.broadcast %762 : f32 to vector<16x16xf32>
    %764 = arith.mulf %727, %763 : vector<16x16xf32>
    %765 = arith.addf %761, %764 : vector<16x16xf32>
    %c1_257 = arith.constant 1 : index
    %766 = memref.load %arg18[%c1_257] : memref<8xf32, #tpu.memory_space<smem>>
    %767 = vector.broadcast %766 : f32 to vector<16x16xf32>
    %768 = arith.addf %765, %767 : vector<16x16xf32>
    %cst_258 = arith.constant 0.000000e+00 : f32
    %769 = vector.broadcast %cst_258 : f32 to vector<16x16xf32>
    %770 = arith.maximumf %768, %769 : vector<16x16xf32>
    %c0_259 = arith.constant 0 : index
    %c1_260 = arith.constant 1 : index
    %c0_261 = arith.constant 0 : index
    %c0_262 = arith.constant 0 : index
    %771 = vector.load %arg19[%c0_259, %c1_260, %c0_261, %c0_262] : memref<1x8x16x16xf32, #tpu.memory_space<vmem>>, vector<1x1x16x16xf32>
    %772 = vector.shape_cast %771 : vector<1x1x16x16xf32> to vector<16x16xf32>
    %773 = vector.shape_cast %770 : vector<16x16xf32> to vector<1x1x16x16xf32>
    tpu.vector_store %arg19[%c0_259, %c1_260, %c0_261, %c0_262], %773 {strides = array<i32>} : memref<1x8x16x16xf32, #tpu.memory_space<vmem>>, vector<1x1x16x16xf32>,
    %c8_263 = arith.constant 8 : index
    %774 = memref.load %arg17[%c8_263] : memref<32xf32, #tpu.memory_space<smem>>
    %775 = vector.broadcast %774 : f32 to vector<16x16xf32>
    %776 = arith.mulf %721, %775 : vector<16x16xf32>
    %c9_264 = arith.constant 9 : index
    %777 = memref.load %arg17[%c9_264] : memref<32xf32, #tpu.memory_space<smem>>
    %778 = vector.broadcast %777 : f32 to vector<16x16xf32>
    %779 = arith.mulf %723, %778 : vector<16x16xf32>
    %780 = arith.addf %776, %779 : vector<16x16xf32>
    %c10_265 = arith.constant 10 : index
    %781 = memref.load %arg17[%c10_265] : memref<32xf32, #tpu.memory_space<smem>>
    %782 = vector.broadcast %781 : f32 to vector<16x16xf32>
    %783 = arith.mulf %725, %782 : vector<16x16xf32>
    %784 = arith.addf %780, %783 : vector<16x16xf32>
    %c11_266 = arith.constant 11 : index
    %785 = memref.load %arg17[%c11_266] : memref<32xf32, #tpu.memory_space<smem>>
    %786 = vector.broadcast %785 : f32 to vector<16x16xf32>
    %787 = arith.mulf %727, %786 : vector<16x16xf32>
    %788 = arith.addf %784, %787 : vector<16x16xf32>
    %c2_267 = arith.constant 2 : index
    %789 = memref.load %arg18[%c2_267] : memref<8xf32, #tpu.memory_space<smem>>
    %790 = vector.broadcast %789 : f32 to vector<16x16xf32>
    %791 = arith.addf %788, %790 : vector<16x16xf32>
    %cst_268 = arith.constant 0.000000e+00 : f32
    %792 = vector.broadcast %cst_268 : f32 to vector<16x16xf32>
    %793 = arith.maximumf %791, %792 : vector<16x16xf32>
    %c0_269 = arith.constant 0 : index
    %c2_270 = arith.constant 2 : index
    %c0_271 = arith.constant 0 : index
    %c0_272 = arith.constant 0 : index
    %794 = vector.load %arg19[%c0_269, %c2_270, %c0_271, %c0_272] : memref<1x8x16x16xf32, #tpu.memory_space<vmem>>, vector<1x1x16x16xf32>
    %795 = vector.shape_cast %794 : vector<1x1x16x16xf32> to vector<16x16xf32>
    %796 = vector.shape_cast %793 : vector<16x16xf32> to vector<1x1x16x16xf32>
    tpu.vector_store %arg19[%c0_269, %c2_270, %c0_271, %c0_272], %796 {strides = array<i32>} : memref<1x8x16x16xf32, #tpu.memory_space<vmem>>, vector<1x1x16x16xf32>,
    %c12_273 = arith.constant 12 : index
    %797 = memref.load %arg17[%c12_273] : memref<32xf32, #tpu.memory_space<smem>>
    %798 = vector.broadcast %797 : f32 to vector<16x16xf32>
    %799 = arith.mulf %721, %798 : vector<16x16xf32>
    %c13_274 = arith.constant 13 : index
    %800 = memref.load %arg17[%c13_274] : memref<32xf32, #tpu.memory_space<smem>>
    %801 = vector.broadcast %800 : f32 to vector<16x16xf32>
    %802 = arith.mulf %723, %801 : vector<16x16xf32>
    %803 = arith.addf %799, %802 : vector<16x16xf32>
    %c14_275 = arith.constant 14 : index
    %804 = memref.load %arg17[%c14_275] : memref<32xf32, #tpu.memory_space<smem>>
    %805 = vector.broadcast %804 : f32 to vector<16x16xf32>
    %806 = arith.mulf %725, %805 : vector<16x16xf32>
    %807 = arith.addf %803, %806 : vector<16x16xf32>
    %c15_276 = arith.constant 15 : index
    %808 = memref.load %arg17[%c15_276] : memref<32xf32, #tpu.memory_space<smem>>
    %809 = vector.broadcast %808 : f32 to vector<16x16xf32>
    %810 = arith.mulf %727, %809 : vector<16x16xf32>
    %811 = arith.addf %807, %810 : vector<16x16xf32>
    %c3_277 = arith.constant 3 : index
    %812 = memref.load %arg18[%c3_277] : memref<8xf32, #tpu.memory_space<smem>>
    %813 = vector.broadcast %812 : f32 to vector<16x16xf32>
    %814 = arith.addf %811, %813 : vector<16x16xf32>
    %cst_278 = arith.constant 0.000000e+00 : f32
    %815 = vector.broadcast %cst_278 : f32 to vector<16x16xf32>
    %816 = arith.maximumf %814, %815 : vector<16x16xf32>
    %c0_279 = arith.constant 0 : index
    %c3_280 = arith.constant 3 : index
    %c0_281 = arith.constant 0 : index
    %c0_282 = arith.constant 0 : index
    %817 = vector.load %arg19[%c0_279, %c3_280, %c0_281, %c0_282] : memref<1x8x16x16xf32, #tpu.memory_space<vmem>>, vector<1x1x16x16xf32>
    %818 = vector.shape_cast %817 : vector<1x1x16x16xf32> to vector<16x16xf32>
    %819 = vector.shape_cast %816 : vector<16x16xf32> to vector<1x1x16x16xf32>
    tpu.vector_store %arg19[%c0_279, %c3_280, %c0_281, %c0_282], %819 {strides = array<i32>} : memref<1x8x16x16xf32, #tpu.memory_space<vmem>>, vector<1x1x16x16xf32>,
    %c16_283 = arith.constant 16 : index
    %820 = memref.load %arg17[%c16_283] : memref<32xf32, #tpu.memory_space<smem>>
    %821 = vector.broadcast %820 : f32 to vector<16x16xf32>
    %822 = arith.mulf %721, %821 : vector<16x16xf32>
    %c17_284 = arith.constant 17 : index
    %823 = memref.load %arg17[%c17_284] : memref<32xf32, #tpu.memory_space<smem>>
    %824 = vector.broadcast %823 : f32 to vector<16x16xf32>
    %825 = arith.mulf %723, %824 : vector<16x16xf32>
    %826 = arith.addf %822, %825 : vector<16x16xf32>
    %c18_285 = arith.constant 18 : index
    %827 = memref.load %arg17[%c18_285] : memref<32xf32, #tpu.memory_space<smem>>
    %828 = vector.broadcast %827 : f32 to vector<16x16xf32>
    %829 = arith.mulf %725, %828 : vector<16x16xf32>
    %830 = arith.addf %826, %829 : vector<16x16xf32>
    %c19_286 = arith.constant 19 : index
    %831 = memref.load %arg17[%c19_286] : memref<32xf32, #tpu.memory_space<smem>>
    %832 = vector.broadcast %831 : f32 to vector<16x16xf32>
    %833 = arith.mulf %727, %832 : vector<16x16xf32>
    %834 = arith.addf %830, %833 : vector<16x16xf32>
    %c4_287 = arith.constant 4 : index
    %835 = memref.load %arg18[%c4_287] : memref<8xf32, #tpu.memory_space<smem>>
    %836 = vector.broadcast %835 : f32 to vector<16x16xf32>
    %837 = arith.addf %834, %836 : vector<16x16xf32>
    %cst_288 = arith.constant 0.000000e+00 : f32
    %838 = vector.broadcast %cst_288 : f32 to vector<16x16xf32>
    %839 = arith.maximumf %837, %838 : vector<16x16xf32>
    %c0_289 = arith.constant 0 : index
    %c4_290 = arith.constant 4 : index
    %c0_291 = arith.constant 0 : index
    %c0_292 = arith.constant 0 : index
    %840 = vector.load %arg19[%c0_289, %c4_290, %c0_291, %c0_292] : memref<1x8x16x16xf32, #tpu.memory_space<vmem>>, vector<1x1x16x16xf32>
    %841 = vector.shape_cast %840 : vector<1x1x16x16xf32> to vector<16x16xf32>
    %842 = vector.shape_cast %839 : vector<16x16xf32> to vector<1x1x16x16xf32>
    tpu.vector_store %arg19[%c0_289, %c4_290, %c0_291, %c0_292], %842 {strides = array<i32>} : memref<1x8x16x16xf32, #tpu.memory_space<vmem>>, vector<1x1x16x16xf32>,
    %c20_293 = arith.constant 20 : index
    %843 = memref.load %arg17[%c20_293] : memref<32xf32, #tpu.memory_space<smem>>
    %844 = vector.broadcast %843 : f32 to vector<16x16xf32>
    %845 = arith.mulf %721, %844 : vector<16x16xf32>
    %c21_294 = arith.constant 21 : index
    %846 = memref.load %arg17[%c21_294] : memref<32xf32, #tpu.memory_space<smem>>
    %847 = vector.broadcast %846 : f32 to vector<16x16xf32>
    %848 = arith.mulf %723, %847 : vector<16x16xf32>
    %849 = arith.addf %845, %848 : vector<16x16xf32>
    %c22_295 = arith.constant 22 : index
    %850 = memref.load %arg17[%c22_295] : memref<32xf32, #tpu.memory_space<smem>>
    %851 = vector.broadcast %850 : f32 to vector<16x16xf32>
    %852 = arith.mulf %725, %851 : vector<16x16xf32>
    %853 = arith.addf %849, %852 : vector<16x16xf32>
    %c23_296 = arith.constant 23 : index
    %854 = memref.load %arg17[%c23_296] : memref<32xf32, #tpu.memory_space<smem>>
    %855 = vector.broadcast %854 : f32 to vector<16x16xf32>
    %856 = arith.mulf %727, %855 : vector<16x16xf32>
    %857 = arith.addf %853, %856 : vector<16x16xf32>
    %c5_297 = arith.constant 5 : index
    %858 = memref.load %arg18[%c5_297] : memref<8xf32, #tpu.memory_space<smem>>
    %859 = vector.broadcast %858 : f32 to vector<16x16xf32>
    %860 = arith.addf %857, %859 : vector<16x16xf32>
    %cst_298 = arith.constant 0.000000e+00 : f32
    %861 = vector.broadcast %cst_298 : f32 to vector<16x16xf32>
    %862 = arith.maximumf %860, %861 : vector<16x16xf32>
    %c0_299 = arith.constant 0 : index
    %c5_300 = arith.constant 5 : index
    %c0_301 = arith.constant 0 : index
    %c0_302 = arith.constant 0 : index
    %863 = vector.load %arg19[%c0_299, %c5_300, %c0_301, %c0_302] : memref<1x8x16x16xf32, #tpu.memory_space<vmem>>, vector<1x1x16x16xf32>
    %864 = vector.shape_cast %863 : vector<1x1x16x16xf32> to vector<16x16xf32>
    %865 = vector.shape_cast %862 : vector<16x16xf32> to vector<1x1x16x16xf32>
    tpu.vector_store %arg19[%c0_299, %c5_300, %c0_301, %c0_302], %865 {strides = array<i32>} : memref<1x8x16x16xf32, #tpu.memory_space<vmem>>, vector<1x1x16x16xf32>,
    %c24_303 = arith.constant 24 : index
    %866 = memref.load %arg17[%c24_303] : memref<32xf32, #tpu.memory_space<smem>>
    %867 = vector.broadcast %866 : f32 to vector<16x16xf32>
    %868 = arith.mulf %721, %867 : vector<16x16xf32>
    %c25_304 = arith.constant 25 : index
    %869 = memref.load %arg17[%c25_304] : memref<32xf32, #tpu.memory_space<smem>>
    %870 = vector.broadcast %869 : f32 to vector<16x16xf32>
    %871 = arith.mulf %723, %870 : vector<16x16xf32>
    %872 = arith.addf %868, %871 : vector<16x16xf32>
    %c26_305 = arith.constant 26 : index
    %873 = memref.load %arg17[%c26_305] : memref<32xf32, #tpu.memory_space<smem>>
    %874 = vector.broadcast %873 : f32 to vector<16x16xf32>
    %875 = arith.mulf %725, %874 : vector<16x16xf32>
    %876 = arith.addf %872, %875 : vector<16x16xf32>
    %c27_306 = arith.constant 27 : index
    %877 = memref.load %arg17[%c27_306] : memref<32xf32, #tpu.memory_space<smem>>
    %878 = vector.broadcast %877 : f32 to vector<16x16xf32>
    %879 = arith.mulf %727, %878 : vector<16x16xf32>
    %880 = arith.addf %876, %879 : vector<16x16xf32>
    %c6_307 = arith.constant 6 : index
    %881 = memref.load %arg18[%c6_307] : memref<8xf32, #tpu.memory_space<smem>>
    %882 = vector.broadcast %881 : f32 to vector<16x16xf32>
    %883 = arith.addf %880, %882 : vector<16x16xf32>
    %cst_308 = arith.constant 0.000000e+00 : f32
    %884 = vector.broadcast %cst_308 : f32 to vector<16x16xf32>
    %885 = arith.maximumf %883, %884 : vector<16x16xf32>
    %c0_309 = arith.constant 0 : index
    %c6_310 = arith.constant 6 : index
    %c0_311 = arith.constant 0 : index
    %c0_312 = arith.constant 0 : index
    %886 = vector.load %arg19[%c0_309, %c6_310, %c0_311, %c0_312] : memref<1x8x16x16xf32, #tpu.memory_space<vmem>>, vector<1x1x16x16xf32>
    %887 = vector.shape_cast %886 : vector<1x1x16x16xf32> to vector<16x16xf32>
    %888 = vector.shape_cast %885 : vector<16x16xf32> to vector<1x1x16x16xf32>
    tpu.vector_store %arg19[%c0_309, %c6_310, %c0_311, %c0_312], %888 {strides = array<i32>} : memref<1x8x16x16xf32, #tpu.memory_space<vmem>>, vector<1x1x16x16xf32>,
    %c28_313 = arith.constant 28 : index
    %889 = memref.load %arg17[%c28_313] : memref<32xf32, #tpu.memory_space<smem>>
    %890 = vector.broadcast %889 : f32 to vector<16x16xf32>
    %891 = arith.mulf %721, %890 : vector<16x16xf32>
    %c29_314 = arith.constant 29 : index
    %892 = memref.load %arg17[%c29_314] : memref<32xf32, #tpu.memory_space<smem>>
    %893 = vector.broadcast %892 : f32 to vector<16x16xf32>
    %894 = arith.mulf %723, %893 : vector<16x16xf32>
    %895 = arith.addf %891, %894 : vector<16x16xf32>
    %c30_315 = arith.constant 30 : index
    %896 = memref.load %arg17[%c30_315] : memref<32xf32, #tpu.memory_space<smem>>
    %897 = vector.broadcast %896 : f32 to vector<16x16xf32>
    %898 = arith.mulf %725, %897 : vector<16x16xf32>
    %899 = arith.addf %895, %898 : vector<16x16xf32>
    %c31_316 = arith.constant 31 : index
    %900 = memref.load %arg17[%c31_316] : memref<32xf32, #tpu.memory_space<smem>>
    %901 = vector.broadcast %900 : f32 to vector<16x16xf32>
    %902 = arith.mulf %727, %901 : vector<16x16xf32>
    %903 = arith.addf %899, %902 : vector<16x16xf32>
    %c7_317 = arith.constant 7 : index
    %904 = memref.load %arg18[%c7_317] : memref<8xf32, #tpu.memory_space<smem>>
    %905 = vector.broadcast %904 : f32 to vector<16x16xf32>
    %906 = arith.addf %903, %905 : vector<16x16xf32>
    %cst_318 = arith.constant 0.000000e+00 : f32
    %907 = vector.broadcast %cst_318 : f32 to vector<16x16xf32>
    %908 = arith.maximumf %906, %907 : vector<16x16xf32>
    %c0_319 = arith.constant 0 : index
    %c7_320 = arith.constant 7 : index
    %c0_321 = arith.constant 0 : index
    %c0_322 = arith.constant 0 : index
    %909 = vector.load %arg19[%c0_319, %c7_320, %c0_321, %c0_322] : memref<1x8x16x16xf32, #tpu.memory_space<vmem>>, vector<1x1x16x16xf32>
    %910 = vector.shape_cast %909 : vector<1x1x16x16xf32> to vector<16x16xf32>
    %911 = vector.shape_cast %908 : vector<16x16xf32> to vector<1x1x16x16xf32>
    tpu.vector_store %arg19[%c0_319, %c7_320, %c0_321, %c0_322], %911 {strides = array<i32>} : memref<1x8x16x16xf32, #tpu.memory_space<vmem>>, vector<1x1x16x16xf32>,
    return
  }
  func.func @transform_0(%arg0: i32) -> (i32, i32, i32, i32) {
    %c0_i32 = arith.constant 0 : i32
    %c0_i32_0 = arith.constant 0 : i32
    %c0_i32_1 = arith.constant 0 : i32
    %c0_i32_2 = arith.constant 0 : i32
    return %arg0, %c0_i32, %c0_i32_0, %c0_i32_1 : i32, i32, i32, i32
  }
  func.func @transform_1(%arg0: i32) -> (i32, i32, i32, i32) {
    %c0_i32 = arith.constant 0 : i32
    %c0_i32_0 = arith.constant 0 : i32
    %c0_i32_1 = arith.constant 0 : i32
    %c0_i32_2 = arith.constant 0 : i32
    return %arg0, %c0_i32, %c0_i32_0, %c0_i32_1 : i32, i32, i32, i32
  }
  func.func @transform_2(%arg0: i32) -> i32 {
    %c0_i32 = arith.constant 0 : i32
    %c0_i32_0 = arith.constant 0 : i32
    return %c0_i32 : i32
  }
  func.func @transform_3(%arg0: i32) -> i32 {
    %c0_i32 = arith.constant 0 : i32
    %c0_i32_0 = arith.constant 0 : i32
    return %c0_i32 : i32
  }
  func.func @transform_4(%arg0: i32) -> i32 {
    %c0_i32 = arith.constant 0 : i32
    %c0_i32_0 = arith.constant 0 : i32
    return %c0_i32 : i32
  }
  func.func @transform_5(%arg0: i32) -> i32 {
    %c0_i32 = arith.constant 0 : i32
    %c0_i32_0 = arith.constant 0 : i32
    return %c0_i32 : i32
  }
  func.func @transform_6(%arg0: i32) -> i32 {
    %c0_i32 = arith.constant 0 : i32
    %c0_i32_0 = arith.constant 0 : i32
    return %c0_i32 : i32
  }
  func.func @transform_7(%arg0: i32) -> i32 {
    %c0_i32 = arith.constant 0 : i32
    %c0_i32_0 = arith.constant 0 : i32
    return %c0_i32 : i32
  }
  func.func @transform_8(%arg0: i32) -> i32 {
    %c0_i32 = arith.constant 0 : i32
    %c0_i32_0 = arith.constant 0 : i32
    return %c0_i32 : i32
  }
  func.func @transform_9(%arg0: i32) -> i32 {
    %c0_i32 = arith.constant 0 : i32
    %c0_i32_0 = arith.constant 0 : i32
    return %c0_i32 : i32
  }
  func.func @transform_10(%arg0: i32) -> i32 {
    %c0_i32 = arith.constant 0 : i32
    %c0_i32_0 = arith.constant 0 : i32
    return %c0_i32 : i32
  }
  func.func @transform_11(%arg0: i32) -> i32 {
    %c0_i32 = arith.constant 0 : i32
    %c0_i32_0 = arith.constant 0 : i32
    return %c0_i32 : i32
  }
  func.func @transform_12(%arg0: i32) -> i32 {
    %c0_i32 = arith.constant 0 : i32
    %c0_i32_0 = arith.constant 0 : i32
    return %c0_i32 : i32
  }
  func.func @transform_13(%arg0: i32) -> i32 {
    %c0_i32 = arith.constant 0 : i32
    %c0_i32_0 = arith.constant 0 : i32
    return %c0_i32 : i32
  }
  func.func @transform_14(%arg0: i32) -> i32 {
    %c0_i32 = arith.constant 0 : i32
    %c0_i32_0 = arith.constant 0 : i32
    return %c0_i32 : i32
  }
  func.func @transform_15(%arg0: i32) -> i32 {
    %c0_i32 = arith.constant 0 : i32
    %c0_i32_0 = arith.constant 0 : i32
    return %c0_i32 : i32
  }
  func.func @transform_16(%arg0: i32) -> i32 {
    %c0_i32 = arith.constant 0 : i32
    %c0_i32_0 = arith.constant 0 : i32
    return %c0_i32 : i32
  }
  func.func @transform_17(%arg0: i32) -> i32 {
    %c0_i32 = arith.constant 0 : i32
    %c0_i32_0 = arith.constant 0 : i32
    return %c0_i32 : i32
  }
  func.func @transform_18(%arg0: i32) -> (i32, i32, i32, i32) {
    %c0_i32 = arith.constant 0 : i32
    %c0_i32_0 = arith.constant 0 : i32
    %c0_i32_1 = arith.constant 0 : i32
    %c0_i32_2 = arith.constant 0 : i32
    return %arg0, %c0_i32, %c0_i32_0, %c0_i32_1 : i32, i32, i32, i32
  }
}

</mosaic_0001>

<llo_original>
// kernel: tpu_custom_call.1
$region0: #{tpu_custom_call.1}
  #allocation0 [shape = 'u32[]', space=smem, size = 0x4, offset = 0x4, fixed_abs, tag = 'smem constant byte address 0x4 - core index']
  #allocation1 [shape = 'u32[144,128]{1,0:T(1,128)}', space=vmem, size = 0x12000, scoped, tag = 'internal scratch']
  %s0 = inlined_call_operand.hbm [shape: f32[2,8,16,16], index: 0, kind: input, shape index: {}]
  %s1 = inlined_call_operand.hbm [shape: f32[2,8,16,16], index: 1, kind: input, shape index: {}]
  %s2 = inlined_call_operand.vmem [shape: f32[32], index: 2, kind: input, shape index: {}]
  %s3 = inlined_call_operand.vmem [shape: f32[4], index: 3, kind: input, shape index: {}]
  %s4 = inlined_call_operand.vmem [shape: f32[32], index: 4, kind: input, shape index: {}]
  %s5 = inlined_call_operand.vmem [shape: f32[4], index: 5, kind: input, shape index: {}]
  %s6 = inlined_call_operand.vmem [shape: f32[8], index: 6, kind: input, shape index: {}]
  %s7 = inlined_call_operand.vmem [shape: f32[2], index: 7, kind: input, shape index: {}]
  %s8 = inlined_call_operand.vmem [shape: f32[8], index: 8, kind: input, shape index: {}]
  %s9 = inlined_call_operand.vmem [shape: f32[4], index: 9, kind: input, shape index: {}]
  %s10 = inlined_call_operand.vmem [shape: f32[32], index: 10, kind: input, shape index: {}]
  %s11 = inlined_call_operand.vmem [shape: f32[4], index: 11, kind: input, shape index: {}]
  %s12 = inlined_call_operand.vmem [shape: f32[8], index: 12, kind: input, shape index: {}]
  %s13 = inlined_call_operand.vmem [shape: f32[2], index: 13, kind: input, shape index: {}]
  %s14 = inlined_call_operand.vmem [shape: f32[8], index: 14, kind: input, shape index: {}]
  %s15 = inlined_call_operand.vmem [shape: f32[4], index: 15, kind: input, shape index: {}]
  %s16 = inlined_call_operand.vmem [shape: f32[32], index: 16, kind: input, shape index: {}]
  %s17 = inlined_call_operand.vmem [shape: f32[8], index: 17, kind: input, shape index: {}]
  %s18 = inlined_call_operand.hbm [shape: f32[2,8,16,16], index: 18, kind: output, shape index: {}]
  %s19 = sld [smem:[#allocation0]]
  $region177: #{tpu_custom_call.1} parent=0
    _
  %s21 = ssub.s32 1, %s19
  %s22 = scalar_select 0, %s21, %s19
  $region1: #{tpu_custom_call.1} parent=0
    #allocation2 [shape = 'u8[131072]{0}', space=vmem, size = 0x20000, scoped, tag = 'input window, operand 0']
    #allocation3 [shape = 's32[2]{0}', space=sflag, size = 0x8, scoped, tag = 'scoped memory for tpu_custom_call.1']
    #allocation4 [shape = 's32[2]{0}', space=sflag, size = 0x8, scoped, tag = 'scoped memory for tpu_custom_call.1']
    #allocation5 [shape = 's32[2]{0}', space=sflag, size = 0x8, scoped, tag = 'scoped memory for tpu_custom_call.1']
    #allocation6 [shape = 'u8[131072]{0}', space=vmem, size = 0x20000, scoped, tag = 'input window, operand 1']
    #allocation7 [shape = 's32[2]{0}', space=sflag, size = 0x8, scoped, tag = 'scoped memory for tpu_custom_call.1']
    #allocation8 [shape = 'u8[512]{0}', space=smem, size = 0x200, scoped, tag = 'input window, operand 2, single buffered']
    #allocation9 [shape = 'u8[512]{0}', space=smem, size = 0x200, scoped, tag = 'input window, operand 3, single buffered']
    #allocation10 [shape = 's32[1]{0}', space=sflag, size = 0x4, scoped, tag = 'scoped memory for tpu_custom_call.1']
    #allocation11 [shape = 'u8[512]{0}', space=smem, size = 0x200, scoped, tag = 'input window, operand 4, single buffered']
    #allocation12 [shape = 'u8[512]{0}', space=smem, size = 0x200, scoped, tag = 'input window, operand 5, single buffered']
    #allocation13 [shape = 's32[1]{0}', space=sflag, size = 0x4, scoped, tag = 'scoped memory for tpu_custom_call.1']
    #allocation14 [shape = 'u8[512]{0}', space=smem, size = 0x200, scoped, tag = 'input window, operand 6, single buffered']
    #allocation15 [shape = 'u8[512]{0}', space=smem, size = 0x200, scoped, tag = 'input window, operand 7, single buffered']
    #allocation16 [shape = 's32[1]{0}', space=sflag, size = 0x4, scoped, tag = 'scoped memory for tpu_custom_call.1']
    #allocation17 [shape = 'u8[512]{0}', space=smem, size = 0x200, scoped, tag = 'input window, operand 8, single buffered']
    #allocation18 [shape = 'u8[512]{0}', space=smem, size = 0x200, scoped, tag = 'input window, operand 9, single buffered']
    #allocation19 [shape = 's32[1]{0}', space=sflag, size = 0x4, scoped, tag = 'scoped memory for tpu_custom_call.1']
    #allocation20 [shape = 'u8[512]{0}', space=smem, size = 0x200, scoped, tag = 'input window, operand 10, single buffered']
    #allocation21 [shape = 'u8[512]{0}', space=smem, size = 0x200, scoped, tag = 'input window, operand 11, single buffered']
    #allocation22 [shape = 's32[1]{0}', space=sflag, size = 0x4, scoped, tag = 'scoped memory for tpu_custom_call.1']
    #allocation23 [shape = 'u8[512]{0}', space=smem, size = 0x200, scoped, tag = 'input window, operand 12, single buffered']
    #allocation24 [shape = 'u8[512]{0}', space=smem, size = 0x200, scoped, tag = 'input window, operand 13, single buffered']
    #allocation25 [shape = 's32[1]{0}', space=sflag, size = 0x4, scoped, tag = 'scoped memory for tpu_custom_call.1']
    #allocation26 [shape = 'u8[512]{0}', space=smem, size = 0x200, scoped, tag = 'input window, operand 14, single buffered']
    #allocation27 [shape = 'u8[512]{0}', space=smem, size = 0x200, scoped, tag = 'input window, operand 15, single buffered']
    #allocation28 [shape = 's32[1]{0}', space=sflag, size = 0x4, scoped, tag = 'scoped memory for tpu_custom_call.1']
    #allocation29 [shape = 'u8[512]{0}', space=smem, size = 0x200, scoped, tag = 'input window, operand 16, single buffered']
    #allocation30 [shape = 'u8[512]{0}', space=smem, size = 0x200, scoped, tag = 'input window, operand 17, single buffered']
    #allocation31 [shape = 's32[1]{0}', space=sflag, size = 0x4, scoped, tag = 'scoped memory for tpu_custom_call.1']
    #allocation32 [shape = 'u8[131072]{0}', space=vmem, size = 0x20000, scoped, tag = 'output window, operand 0']
    %23 = vsyncpa [#allocation3], 0
    %s24 = scalar_lea.sflag [#allocation3], 1
    %25 = vsyncpa %s24, 0
    %26 = vsyncpa [#allocation7], 0
    %s27 = scalar_lea.sflag [#allocation7], 1
    %28 = vsyncpa %s27, 0
    %29 = vsyncpa [#allocation5], 0
    %30 = vsyncpa [#allocation10], 0
    %31 = vsyncpa [#allocation13], 0
    %32 = vsyncpa [#allocation16], 0
    %33 = vsyncpa [#allocation19], 0
    %34 = vsyncpa [#allocation22], 0
    %35 = vsyncpa [#allocation25], 0
    %36 = vsyncpa [#allocation28], 0
    %37 = vsyncpa [#allocation31], 0
    %38 = vsyncpa [#allocation4], 0
    %s39 = scalar_lea.sflag [#allocation4], 1
    %40 = vsyncpa %s39, 0
    loop: start=0, step=1, limit=4
    $region2: #{tpu_custom_call.1} parent=1 // loop_pre_header
      _
    $region3: #{tpu_custom_call.1} parent=1 // loop_header
      %s42 = sphi 0, %s46
      %p43 = scmp.ge.s32.totalorder %s42, 4
      %s52 = sphi 0, %s54
      %s55 = sphi 0, %s52
      %s56 = sphi 0, %s55
      %s72 = sphi 0, %s56
      %s78 = sphi 0, %s80
      %s81 = sphi 0, %s78
      %s82 = sphi 0, %s81
      %s98 = sphi 0, %s82
      %s102 = sphi 0, %s102
      %s104 = sphi 0, %s102
      %s105 = sphi 0, %s104
      %s119 = sphi 0, %s105
      %s123 = sphi 0, %s123
      %s125 = sphi 0, %s123
      %s126 = sphi 0, %s125
      %s140 = sphi 0, %s126
      %s144 = sphi 0, %s144
      %s146 = sphi 0, %s144
      %s147 = sphi 0, %s146
      %s161 = sphi 0, %s147
      %s165 = sphi 0, %s165
      %s167 = sphi 0, %s165
      %s168 = sphi 0, %s167
      %s182 = sphi 0, %s168
      %s186 = sphi 0, %s186
      %s188 = sphi 0, %s186
      %s189 = sphi 0, %s188
      %s203 = sphi 0, %s189
      %s207 = sphi 0, %s207
      %s209 = sphi 0, %s207
      %s210 = sphi 0, %s209
      %s224 = sphi 0, %s210
      %s228 = sphi 0, %s228
      %s230 = sphi 0, %s228
      %s231 = sphi 0, %s230
      %s245 = sphi 0, %s231
      %s249 = sphi 0, %s249
      %s251 = sphi 0, %s249
      %s252 = sphi 0, %s251
      %s266 = sphi 0, %s252
      %s270 = sphi 0, %s270
      %s272 = sphi 0, %s270
      %s273 = sphi 0, %s272
      %s287 = sphi 0, %s273
      %s291 = sphi 0, %s291
      %s293 = sphi 0, %s291
      %s294 = sphi 0, %s293
      %s308 = sphi 0, %s294
      %s312 = sphi 0, %s312
      %s314 = sphi 0, %s312
      %s315 = sphi 0, %s314
      %s329 = sphi 0, %s315
      %s333 = sphi 0, %s333
      %s335 = sphi 0, %s333
      %s336 = sphi 0, %s335
      %s350 = sphi 0, %s336
      %s354 = sphi 0, %s354
      %s356 = sphi 0, %s354
      %s357 = sphi 0, %s356
      %s371 = sphi 0, %s357
      %s375 = sphi 0, %s375
      %s377 = sphi 0, %s375
      %s378 = sphi 0, %s377
      %s392 = sphi 0, %s378
      %s396 = sphi 0, %s396
      %s398 = sphi 0, %s396
      %s399 = sphi 0, %s398
      %s413 = sphi 0, %s399
      %s417 = sphi 0, %s417
      %s419 = sphi 0, %s417
      %s420 = sphi 0, %s419
      %s434 = sphi 0, %s420
      %s440 = sphi 0, %s442
      %s443 = sphi 0, %s440
      %s444 = sphi 0, %s443
      %s460 = sphi 0, %s444
    $region4: #{tpu_custom_call.1} parent=1 // loop_header_branch
      %45 = sbr.rel (%p43) target = $region8
    $region5: #{tpu_custom_call.1} parent=1 // loop_body
      %s47 = ssub.s32 %s42, 1
      %s48 = ssub.s32 %s42, 2
      %s49 = sadd.s32 %s42, 1
      %s50 = ssub.s32 %s42, %s49
      %p51 = scmp.eq.s32.totalorder %s50, 0
      %s53 = sadd.s32 %s52, 1
      %s54 = scalar_select %p51, %s52, %s53
      %p57 = pneg %p51
      %p58 = scmp.eq.s32.totalorder %s42, 1
      %p59 = por %p57, %p58
      %p60 = scmp.ne.s32.totalorder %s52, %s55
      %p61 = scmp.eq.s32.totalorder %s42, 0
      %p62 = por %p60, %p61
      %p63 = scmp.ne.s32.totalorder %s52, %s55
      %p64 = scmp.eq.s32.totalorder %s47, 1
      %p65 = por %p63, %p64
      %p66 = scmp.ne.s32.totalorder %s55, %s56
      %p67 = scmp.eq.s32.totalorder %s47, 0
      %p68 = por %p66, %p67
      %p69 = scmp.ne.s32.totalorder %s55, %s56
      %p70 = scmp.eq.s32.totalorder %s48, 1
      %p71 = por %p69, %p70
      %p73 = scmp.ne.s32.totalorder %s56, %s72
      %p74 = scmp.eq.s32.totalorder %s48, 0
      %p75 = por %p73, %p74
      %s76 = ssub.s32 %s42, %s49
      %p77 = scmp.eq.s32.totalorder %s76, 0
      %s79 = sadd.s32 %s78, 1
      %s80 = scalar_select %p77, %s78, %s79
      %p83 = pneg %p77
      %p84 = scmp.eq.s32.totalorder %s42, 1
      %p85 = por %p83, %p84
      %p86 = scmp.ne.s32.totalorder %s78, %s81
      %p87 = scmp.eq.s32.totalorder %s42, 0
      %p88 = por %p86, %p87
      %p89 = scmp.ne.s32.totalorder %s78, %s81
      %p90 = scmp.eq.s32.totalorder %s47, 1
      %p91 = por %p89, %p90
      %p92 = scmp.ne.s32.totalorder %s81, %s82
      %p93 = scmp.eq.s32.totalorder %s47, 0
      %p94 = por %p92, %p93
      %p95 = scmp.ne.s32.totalorder %s81, %s82
      %p96 = scmp.eq.s32.totalorder %s48, 1
      %p97 = por %p95, %p96
      %p99 = scmp.ne.s32.totalorder %s82, %s98
      %p100 = scmp.eq.s32.totalorder %s48, 0
      %p101 = por %p99, %p100
      %s103 = sadd.s32 %s102, 1
      %p106 = scmp.eq.s32.totalorder %s42, 1
      %p107 = scmp.ne.s32.totalorder %s102, %s104
      %p108 = scmp.eq.s32.totalorder %s42, 0
      %p109 = por %p107, %p108
      %p110 = scmp.ne.s32.totalorder %s102, %s104
      %p111 = scmp.eq.s32.totalorder %s47, 1
      %p112 = por %p110, %p111
      %p113 = scmp.ne.s32.totalorder %s104, %s105
      %p114 = scmp.eq.s32.totalorder %s47, 0
      %p115 = por %p113, %p114
      %p116 = scmp.ne.s32.totalorder %s104, %s105
      %p117 = scmp.eq.s32.totalorder %s48, 1
      %p118 = por %p116, %p117
      %p120 = scmp.ne.s32.totalorder %s105, %s119
      %p121 = scmp.eq.s32.totalorder %s48, 0
      %p122 = por %p120, %p121
      %s124 = sadd.s32 %s123, 1
      %p127 = scmp.eq.s32.totalorder %s42, 1
      %p128 = scmp.ne.s32.totalorder %s123, %s125
      %p129 = scmp.eq.s32.totalorder %s42, 0
      %p130 = por %p128, %p129
      %p131 = scmp.ne.s32.totalorder %s123, %s125
      %p132 = scmp.eq.s32.totalorder %s47, 1
      %p133 = por %p131, %p132
      %p134 = scmp.ne.s32.totalorder %s125, %s126
      %p135 = scmp.eq.s32.totalorder %s47, 0
      %p136 = por %p134, %p135
      %p137 = scmp.ne.s32.totalorder %s125, %s126
      %p138 = scmp.eq.s32.totalorder %s48, 1
      %p139 = por %p137, %p138
      %p141 = scmp.ne.s32.totalorder %s126, %s140
      %p142 = scmp.eq.s32.totalorder %s48, 0
      %p143 = por %p141, %p142
      %s145 = sadd.s32 %s144, 1
      %p148 = scmp.eq.s32.totalorder %s42, 1
      %p149 = scmp.ne.s32.totalorder %s144, %s146
      %p150 = scmp.eq.s32.totalorder %s42, 0
      %p151 = por %p149, %p150
      %p152 = scmp.ne.s32.totalorder %s144, %s146
      %p153 = scmp.eq.s32.totalorder %s47, 1
      %p154 = por %p152, %p153
      %p155 = scmp.ne.s32.totalorder %s146, %s147
      %p156 = scmp.eq.s32.totalorder %s47, 0
      %p157 = por %p155, %p156
      %p158 = scmp.ne.s32.totalorder %s146, %s147
      %p159 = scmp.eq.s32.totalorder %s48, 1
      %p160 = por %p158, %p159
      %p162 = scmp.ne.s32.totalorder %s147, %s161
      %p163 = scmp.eq.s32.totalorder %s48, 0
      %p164 = por %p162, %p163
      %s166 = sadd.s32 %s165, 1
      %p169 = scmp.eq.s32.totalorder %s42, 1
      %p170 = scmp.ne.s32.totalorder %s165, %s167
      %p171 = scmp.eq.s32.totalorder %s42, 0
      %p172 = por %p170, %p171
      %p173 = scmp.ne.s32.totalorder %s165, %s167
      %p174 = scmp.eq.s32.totalorder %s47, 1
      %p175 = por %p173, %p174
      %p176 = scmp.ne.s32.totalorder %s167, %s168
      %p177 = scmp.eq.s32.totalorder %s47, 0
      %p178 = por %p176, %p177
      %p179 = scmp.ne.s32.totalorder %s167, %s168
      %p180 = scmp.eq.s32.totalorder %s48, 1
      %p181 = por %p179, %p180
      %p183 = scmp.ne.s32.totalorder %s168, %s182
      %p184 = scmp.eq.s32.totalorder %s48, 0
      %p185 = por %p183, %p184
      %s187 = sadd.s32 %s186, 1
      %p190 = scmp.eq.s32.totalorder %s42, 1
      %p191 = scmp.ne.s32.totalorder %s186, %s188
      %p192 = scmp.eq.s32.totalorder %s42, 0
      %p193 = por %p191, %p192
      %p194 = scmp.ne.s32.totalorder %s186, %s188
      %p195 = scmp.eq.s32.totalorder %s47, 1
      %p196 = por %p194, %p195
      %p197 = scmp.ne.s32.totalorder %s188, %s189
      %p198 = scmp.eq.s32.totalorder %s47, 0
      %p199 = por %p197, %p198
      %p200 = scmp.ne.s32.totalorder %s188, %s189
      %p201 = scmp.eq.s32.totalorder %s48, 1
      %p202 = por %p200, %p201
      %p204 = scmp.ne.s32.totalorder %s189, %s203
      %p205 = scmp.eq.s32.totalorder %s48, 0
      %p206 = por %p204, %p205
      %s208 = sadd.s32 %s207, 1
      %p211 = scmp.eq.s32.totalorder %s42, 1
      %p212 = scmp.ne.s32.totalorder %s207, %s209
      %p213 = scmp.eq.s32.totalorder %s42, 0
      %p214 = por %p212, %p213
      %p215 = scmp.ne.s32.totalorder %s207, %s209
      %p216 = scmp.eq.s32.totalorder %s47, 1
      %p217 = por %p215, %p216
      %p218 = scmp.ne.s32.totalorder %s209, %s210
      %p219 = scmp.eq.s32.totalorder %s47, 0
      %p220 = por %p218, %p219
      %p221 = scmp.ne.s32.totalorder %s209, %s210
      %p222 = scmp.eq.s32.totalorder %s48, 1
      %p223 = por %p221, %p222
      %p225 = scmp.ne.s32.totalorder %s210, %s224
      %p226 = scmp.eq.s32.totalorder %s48, 0
      %p227 = por %p225, %p226
      %s229 = sadd.s32 %s228, 1
      %p232 = scmp.eq.s32.totalorder %s42, 1
      %p233 = scmp.ne.s32.totalorder %s228, %s230
      %p234 = scmp.eq.s32.totalorder %s42, 0
      %p235 = por %p233, %p234
      %p236 = scmp.ne.s32.totalorder %s228, %s230
      %p237 = scmp.eq.s32.totalorder %s47, 1
      %p238 = por %p236, %p237
      %p239 = scmp.ne.s32.totalorder %s230, %s231
      %p240 = scmp.eq.s32.totalorder %s47, 0
      %p241 = por %p239, %p240
      %p242 = scmp.ne.s32.totalorder %s230, %s231
      %p243 = scmp.eq.s32.totalorder %s48, 1
      %p244 = por %p242, %p243
      %p246 = scmp.ne.s32.totalorder %s231, %s245
      %p247 = scmp.eq.s32.totalorder %s48, 0
      %p248 = por %p246, %p247
      %s250 = sadd.s32 %s249, 1
      %p253 = scmp.eq.s32.totalorder %s42, 1
      %p254 = scmp.ne.s32.totalorder %s249, %s251
      %p255 = scmp.eq.s32.totalorder %s42, 0
      %p256 = por %p254, %p255
      %p257 = scmp.ne.s32.totalorder %s249, %s251
      %p258 = scmp.eq.s32.totalorder %s47, 1
      %p259 = por %p257, %p258
      %p260 = scmp.ne.s32.totalorder %s251, %s252
      %p261 = scmp.eq.s32.totalorder %s47, 0
      %p262 = por %p260, %p261
      %p263 = scmp.ne.s32.totalorder %s251, %s252
      %p264 = scmp.eq.s32.totalorder %s48, 1
      %p265 = por %p263, %p264
      %p267 = scmp.ne.s32.totalorder %s252, %s266
      %p268 = scmp.eq.s32.totalorder %s48, 0
      %p269 = por %p267, %p268
      %s271 = sadd.s32 %s270, 1
      %p274 = scmp.eq.s32.totalorder %s42, 1
      %p275 = scmp.ne.s32.totalorder %s270, %s272
      %p276 = scmp.eq.s32.totalorder %s42, 0
      %p277 = por %p275, %p276
      %p278 = scmp.ne.s32.totalorder %s270, %s272
      %p279 = scmp.eq.s32.totalorder %s47, 1
      %p280 = por %p278, %p279
      %p281 = scmp.ne.s32.totalorder %s272, %s273
      %p282 = scmp.eq.s32.totalorder %s47, 0
      %p283 = por %p281, %p282
      %p284 = scmp.ne.s32.totalorder %s272, %s273
      %p285 = scmp.eq.s32.totalorder %s48, 1
      %p286 = por %p284, %p285
      %p288 = scmp.ne.s32.totalorder %s273, %s287
      %p289 = scmp.eq.s32.totalorder %s48, 0
      %p290 = por %p288, %p289
      %s292 = sadd.s32 %s291, 1
      %p295 = scmp.eq.s32.totalorder %s42, 1
      %p296 = scmp.ne.s32.totalorder %s291, %s293
      %p297 = scmp.eq.s32.totalorder %s42, 0
      %p298 = por %p296, %p297
      %p299 = scmp.ne.s32.totalorder %s291, %s293
      %p300 = scmp.eq.s32.totalorder %s47, 1
      %p301 = por %p299, %p300
      %p302 = scmp.ne.s32.totalorder %s293, %s294
      %p303 = scmp.eq.s32.totalorder %s47, 0
      %p304 = por %p302, %p303
      %p305 = scmp.ne.s32.totalorder %s293, %s294
      %p306 = scmp.eq.s32.totalorder %s48, 1
      %p307 = por %p305, %p306
      %p309 = scmp.ne.s32.totalorder %s294, %s308
      %p310 = scmp.eq.s32.totalorder %s48, 0
      %p311 = por %p309, %p310
      %s313 = sadd.s32 %s312, 1
      %p316 = scmp.eq.s32.totalorder %s42, 1
      %p317 = scmp.ne.s32.totalorder %s312, %s314
      %p318 = scmp.eq.s32.totalorder %s42, 0
      %p319 = por %p317, %p318
      %p320 = scmp.ne.s32.totalorder %s312, %s314
      %p321 = scmp.eq.s32.totalorder %s47, 1
      %p322 = por %p320, %p321
      %p323 = scmp.ne.s32.totalorder %s314, %s315
      %p324 = scmp.eq.s32.totalorder %s47, 0
      %p325 = por %p323, %p324
      %p326 = scmp.ne.s32.totalorder %s314, %s315
      %p327 = scmp.eq.s32.totalorder %s48, 1
      %p328 = por %p326, %p327
      %p330 = scmp.ne.s32.totalorder %s315, %s329
      %p331 = scmp.eq.s32.totalorder %s48, 0
      %p332 = por %p330, %p331
      %s334 = sadd.s32 %s333, 1
      %p337 = scmp.eq.s32.totalorder %s42, 1
      %p338 = scmp.ne.s32.totalorder %s333, %s335
      %p339 = scmp.eq.s32.totalorder %s42, 0
      %p340 = por %p338, %p339
      %p341 = scmp.ne.s32.totalorder %s333, %s335
      %p342 = scmp.eq.s32.totalorder %s47, 1
      %p343 = por %p341, %p342
      %p344 = scmp.ne.s32.totalorder %s335, %s336
      %p345 = scmp.eq.s32.totalorder %s47, 0
      %p346 = por %p344, %p345
      %p347 = scmp.ne.s32.totalorder %s335, %s336
      %p348 = scmp.eq.s32.totalorder %s48, 1
      %p349 = por %p347, %p348
      %p351 = scmp.ne.s32.totalorder %s336, %s350
      %p352 = scmp.eq.s32.totalorder %s48, 0
      %p353 = por %p351, %p352
      %s355 = sadd.s32 %s354, 1
      %p358 = scmp.eq.s32.totalorder %s42, 1
      %p359 = scmp.ne.s32.totalorder %s354, %s356
      %p360 = scmp.eq.s32.totalorder %s42, 0
      %p361 = por %p359, %p360
      %p362 = scmp.ne.s32.totalorder %s354, %s356
      %p363 = scmp.eq.s32.totalorder %s47, 1
      %p364 = por %p362, %p363
      %p365 = scmp.ne.s32.totalorder %s356, %s357
      %p366 = scmp.eq.s32.totalorder %s47, 0
      %p367 = por %p365, %p366
      %p368 = scmp.ne.s32.totalorder %s356, %s357
      %p369 = scmp.eq.s32.totalorder %s48, 1
      %p370 = por %p368, %p369
      %p372 = scmp.ne.s32.totalorder %s357, %s371
      %p373 = scmp.eq.s32.totalorder %s48, 0
      %p374 = por %p372, %p373
      %s376 = sadd.s32 %s375, 1
      %p379 = scmp.eq.s32.totalorder %s42, 1
      %p380 = scmp.ne.s32.totalorder %s375, %s377
      %p381 = scmp.eq.s32.totalorder %s42, 0
      %p382 = por %p380, %p381
      %p383 = scmp.ne.s32.totalorder %s375, %s377
      %p384 = scmp.eq.s32.totalorder %s47, 1
      %p385 = por %p383, %p384
      %p386 = scmp.ne.s32.totalorder %s377, %s378
      %p387 = scmp.eq.s32.totalorder %s47, 0
      %p388 = por %p386, %p387
      %p389 = scmp.ne.s32.totalorder %s377, %s378
      %p390 = scmp.eq.s32.totalorder %s48, 1
      %p391 = por %p389, %p390
      %p393 = scmp.ne.s32.totalorder %s378, %s392
      %p394 = scmp.eq.s32.totalorder %s48, 0
      %p395 = por %p393, %p394
      %s397 = sadd.s32 %s396, 1
      %p400 = scmp.eq.s32.totalorder %s42, 1
      %p401 = scmp.ne.s32.totalorder %s396, %s398
      %p402 = scmp.eq.s32.totalorder %s42, 0
      %p403 = por %p401, %p402
      %p404 = scmp.ne.s32.totalorder %s396, %s398
      %p405 = scmp.eq.s32.totalorder %s47, 1
      %p406 = por %p404, %p405
      %p407 = scmp.ne.s32.totalorder %s398, %s399
      %p408 = scmp.eq.s32.totalorder %s47, 0
      %p409 = por %p407, %p408
      %p410 = scmp.ne.s32.totalorder %s398, %s399
      %p411 = scmp.eq.s32.totalorder %s48, 1
      %p412 = por %p410, %p411
      %p414 = scmp.ne.s32.totalorder %s399, %s413
      %p415 = scmp.eq.s32.totalorder %s48, 0
      %p416 = por %p414, %p415
      %s418 = sadd.s32 %s417, 1
      %p421 = scmp.eq.s32.totalorder %s42, 1
      %p422 = scmp.ne.s32.totalorder %s417, %s419
      %p423 = scmp.eq.s32.totalorder %s42, 0
      %p424 = por %p422, %p423
      %p425 = scmp.ne.s32.totalorder %s417, %s419
      %p426 = scmp.eq.s32.totalorder %s47, 1
      %p427 = por %p425, %p426
      %p428 = scmp.ne.s32.totalorder %s419, %s420
      %p429 = scmp.eq.s32.totalorder %s47, 0
      %p430 = por %p428, %p429
      %p431 = scmp.ne.s32.totalorder %s419, %s420
      %p432 = scmp.eq.s32.totalorder %s48, 1
      %p433 = por %p431, %p432
      %p435 = scmp.ne.s32.totalorder %s420, %s434
      %p436 = scmp.eq.s32.totalorder %s48, 0
      %p437 = por %p435, %p436
      %s438 = ssub.s32 %s42, %s49
      %p439 = scmp.eq.s32.totalorder %s438, 0
      %s441 = sadd.s32 %s440, 1
      %s442 = scalar_select %p439, %s440, %s441
      %p445 = pneg %p439
      %p446 = scmp.eq.s32.totalorder %s42, 1
      %p447 = por %p445, %p446
      %p448 = scmp.ne.s32.totalorder %s440, %s443
      %p449 = scmp.eq.s32.totalorder %s42, 0
      %p450 = por %p448, %p449
      %p451 = scmp.ne.s32.totalorder %s440, %s443
      %p452 = scmp.eq.s32.totalorder %s47, 1
      %p453 = por %p451, %p452
      %p454 = scmp.ne.s32.totalorder %s443, %s444
      %p455 = scmp.eq.s32.totalorder %s47, 0
      %p456 = por %p454, %p455
      %p457 = scmp.ne.s32.totalorder %s443, %s444
      %p458 = scmp.eq.s32.totalorder %s48, 1
      %p459 = por %p457, %p458
      %p461 = scmp.ne.s32.totalorder %s444, %s460
      %p462 = scmp.eq.s32.totalorder %s48, 0
      %p463 = por %p461, %p462
      %p464 = scmp.le.s32.totalorder 1, %s42
      %p465 = scmp.lt.s32.totalorder %s42, 3
      %p466 = pnand %p464, %p465
      %p467 = pneg %p466
      // Predicated region
      $region9: #{tpu_custom_call.1} parent=5 // pred_check
        _
      $region10: #{tpu_custom_call.1} parent=5 // pred_check_branch
        %469 = sbr.rel (%p466) target = $region12
      $region11: #{tpu_custom_call.1} parent=5 // pred_region
        %s470 = ssub.s32 %s42, 1
        // Predicated region
        $region13: #{tpu_custom_call.1} parent=11 // pred_check
          %p471 = pneg %p115
        $region14: #{tpu_custom_call.1} parent=11 // pred_check_branch
          %473 = sbr.rel (%p471) target = $region16
        $region15: #{tpu_custom_call.1} parent=11 // pred_region
          %s475 = ssub.s32 16, 16
          %476 = vsyncadd [#allocation5], %s475
          %s478 = sshll.u32 %s2, 4
          %s479 = int_to_ptr.vmem [resolvable:$true] %s478
          %481 = dma.vmem_to_smem %s479, 16, [#allocation8], [#allocation5]
        $region16: #{tpu_custom_call.1} parent=11 // pred_fallthru
          _
        // Predicated region
        $region17: #{tpu_custom_call.1} parent=11 // pred_check
          %p482 = pneg %p136
        $region18: #{tpu_custom_call.1} parent=11 // pred_check_branch
          %484 = sbr.rel (%p482) target = $region20
        $region19: #{tpu_custom_call.1} parent=11 // pred_region
          %s486 = ssub.s32 16, 16
          %487 = vsyncadd [#allocation10], %s486
          %s489 = sshll.u32 %s3, 4
          %s490 = int_to_ptr.vmem [resolvable:$true] %s489
          %492 = dma.vmem_to_smem %s490, 16, [#allocation9], [#allocation10]
        $region20: #{tpu_custom_call.1} parent=11 // pred_fallthru
          _
        // Predicated region
        $region21: #{tpu_custom_call.1} parent=11 // pred_check
          %p493 = pneg %p157
        $region22: #{tpu_custom_call.1} parent=11 // pred_check_branch
          %495 = sbr.rel (%p493) target = $region24
        $region23: #{tpu_custom_call.1} parent=11 // pred_region
          %s497 = ssub.s32 16, 16
          %498 = vsyncadd [#allocation10], %s497
          %s500 = sshll.u32 %s4, 4
          %s501 = int_to_ptr.vmem [resolvable:$true] %s500
          %503 = dma.vmem_to_smem %s501, 16, [#allocation11], [#allocation10]
        $region24: #{tpu_custom_call.1} parent=11 // pred_fallthru
          _
        // Predicated region
        $region25: #{tpu_custom_call.1} parent=11 // pred_check
          %p504 = pneg %p178
        $region26: #{tpu_custom_call.1} parent=11 // pred_check_branch
          %506 = sbr.rel (%p504) target = $region28
        $region27: #{tpu_custom_call.1} parent=11 // pred_region
          %s508 = ssub.s32 16, 16
          %509 = vsyncadd [#allocation13], %s508
          %s511 = sshll.u32 %s5, 4
          %s512 = int_to_ptr.vmem [resolvable:$true] %s511
          %514 = dma.vmem_to_smem %s512, 16, [#allocation12], [#allocation13]
        $region28: #{tpu_custom_call.1} parent=11 // pred_fallthru
          _
        // Predicated region
        $region29: #{tpu_custom_call.1} parent=11 // pred_check
          %p515 = pneg %p199
        $region30: #{tpu_custom_call.1} parent=11 // pred_check_branch
          %517 = sbr.rel (%p515) target = $region32
        $region31: #{tpu_custom_call.1} parent=11 // pred_region
          %s519 = ssub.s32 16, 16
          %520 = vsyncadd [#allocation13], %s519
          %s522 = sshll.u32 %s6, 4
          %s523 = int_to_ptr.vmem [resolvable:$true] %s522
          %525 = dma.vmem_to_smem %s523, 16, [#allocation14], [#allocation13]
        $region32: #{tpu_custom_call.1} parent=11 // pred_fallthru
          _
        // Predicated region
        $region33: #{tpu_custom_call.1} parent=11 // pred_check
          %p526 = pneg %p220
        $region34: #{tpu_custom_call.1} parent=11 // pred_check_branch
          %528 = sbr.rel (%p526) target = $region36
        $region35: #{tpu_custom_call.1} parent=11 // pred_region
          %s530 = ssub.s32 16, 16
          %531 = vsyncadd [#allocation16], %s530
          %s533 = sshll.u32 %s7, 4
          %s534 = int_to_ptr.vmem [resolvable:$true] %s533
          %536 = dma.vmem_to_smem %s534, 16, [#allocation15], [#allocation16]
        $region36: #{tpu_custom_call.1} parent=11 // pred_fallthru
          _
        // Predicated region
        $region37: #{tpu_custom_call.1} parent=11 // pred_check
          %p537 = pneg %p241
        $region38: #{tpu_custom_call.1} parent=11 // pred_check_branch
          %539 = sbr.rel (%p537) target = $region40
        $region39: #{tpu_custom_call.1} parent=11 // pred_region
          %s541 = ssub.s32 16, 16
          %542 = vsyncadd [#allocation16], %s541
          %s544 = sshll.u32 %s8, 4
          %s545 = int_to_ptr.vmem [resolvable:$true] %s544
          %547 = dma.vmem_to_smem %s545, 16, [#allocation17], [#allocation16]
        $region40: #{tpu_custom_call.1} parent=11 // pred_fallthru
          _
        // Predicated region
        $region41: #{tpu_custom_call.1} parent=11 // pred_check
          %p548 = pneg %p262
        $region42: #{tpu_custom_call.1} parent=11 // pred_check_branch
          %550 = sbr.rel (%p548) target = $region44
        $region43: #{tpu_custom_call.1} parent=11 // pred_region
          %s552 = ssub.s32 16, 16
          %553 = vsyncadd [#allocation19], %s552
          %s555 = sshll.u32 %s9, 4
          %s556 = int_to_ptr.vmem [resolvable:$true] %s555
          %558 = dma.vmem_to_smem %s556, 16, [#allocation18], [#allocation19]
        $region44: #{tpu_custom_call.1} parent=11 // pred_fallthru
          _
        // Predicated region
        $region45: #{tpu_custom_call.1} parent=11 // pred_check
          %p559 = pneg %p283
        $region46: #{tpu_custom_call.1} parent=11 // pred_check_branch
          %561 = sbr.rel (%p559) target = $region48
        $region47: #{tpu_custom_call.1} parent=11 // pred_region
          %s563 = ssub.s32 16, 16
          %564 = vsyncadd [#allocation19], %s563
          %s566 = sshll.u32 %s10, 4
          %s567 = int_to_ptr.vmem [resolvable:$true] %s566
          %569 = dma.vmem_to_smem %s567, 16, [#allocation20], [#allocation19]
        $region48: #{tpu_custom_call.1} parent=11 // pred_fallthru
          _
        // Predicated region
        $region49: #{tpu_custom_call.1} parent=11 // pred_check
          %p570 = pneg %p304
        $region50: #{tpu_custom_call.1} parent=11 // pred_check_branch
          %572 = sbr.rel (%p570) target = $region52
        $region51: #{tpu_custom_call.1} parent=11 // pred_region
          %s574 = ssub.s32 16, 16
          %575 = vsyncadd [#allocation22], %s574
          %s577 = sshll.u32 %s11, 4
          %s578 = int_to_ptr.vmem [resolvable:$true] %s577
          %580 = dma.vmem_to_smem %s578, 16, [#allocation21], [#allocation22]
        $region52: #{tpu_custom_call.1} parent=11 // pred_fallthru
          _
        // Predicated region
        $region53: #{tpu_custom_call.1} parent=11 // pred_check
          %p581 = pneg %p325
        $region54: #{tpu_custom_call.1} parent=11 // pred_check_branch
          %583 = sbr.rel (%p581) target = $region56
        $region55: #{tpu_custom_call.1} parent=11 // pred_region
          %s585 = ssub.s32 16, 16
          %586 = vsyncadd [#allocation22], %s585
          %s588 = sshll.u32 %s12, 4
          %s589 = int_to_ptr.vmem [resolvable:$true] %s588
          %591 = dma.vmem_to_smem %s589, 16, [#allocation23], [#allocation22]
        $region56: #{tpu_custom_call.1} parent=11 // pred_fallthru
          _
        // Predicated region
        $region57: #{tpu_custom_call.1} parent=11 // pred_check
          %p592 = pneg %p346
        $region58: #{tpu_custom_call.1} parent=11 // pred_check_branch
          %594 = sbr.rel (%p592) target = $region60
        $region59: #{tpu_custom_call.1} parent=11 // pred_region
          %s596 = ssub.s32 16, 16
          %597 = vsyncadd [#allocation25], %s596
          %s599 = sshll.u32 %s13, 4
          %s600 = int_to_ptr.vmem [resolvable:$true] %s599
          %602 = dma.vmem_to_smem %s600, 16, [#allocation24], [#allocation25]
        $region60: #{tpu_custom_call.1} parent=11 // pred_fallthru
          _
        // Predicated region
        $region61: #{tpu_custom_call.1} parent=11 // pred_check
          %p603 = pneg %p367
        $region62: #{tpu_custom_call.1} parent=11 // pred_check_branch
          %605 = sbr.rel (%p603) target = $region64
        $region63: #{tpu_custom_call.1} parent=11 // pred_region
          %s607 = ssub.s32 16, 16
          %608 = vsyncadd [#allocation25], %s607
          %s610 = sshll.u32 %s14, 4
          %s611 = int_to_ptr.vmem [resolvable:$true] %s610
          %613 = dma.vmem_to_smem %s611, 16, [#allocation26], [#allocation25]
        $region64: #{tpu_custom_call.1} parent=11 // pred_fallthru
          _
        // Predicated region
        $region65: #{tpu_custom_call.1} parent=11 // pred_check
          %p614 = pneg %p388
        $region66: #{tpu_custom_call.1} parent=11 // pred_check_branch
          %616 = sbr.rel (%p614) target = $region68
        $region67: #{tpu_custom_call.1} parent=11 // pred_region
          %s618 = ssub.s32 16, 16
          %619 = vsyncadd [#allocation28], %s618
          %s621 = sshll.u32 %s15, 4
          %s622 = int_to_ptr.vmem [resolvable:$true] %s621
          %624 = dma.vmem_to_smem %s622, 16, [#allocation27], [#allocation28]
        $region68: #{tpu_custom_call.1} parent=11 // pred_fallthru
          _
        // Predicated region
        $region69: #{tpu_custom_call.1} parent=11 // pred_check
          %p625 = pneg %p409
        $region70: #{tpu_custom_call.1} parent=11 // pred_check_branch
          %627 = sbr.rel (%p625) target = $region72
        $region71: #{tpu_custom_call.1} parent=11 // pred_region
          %s629 = ssub.s32 16, 16
          %630 = vsyncadd [#allocation28], %s629
          %s632 = sshll.u32 %s16, 4
          %s633 = int_to_ptr.vmem [resolvable:$true] %s632
          %635 = dma.vmem_to_smem %s633, 16, [#allocation29], [#allocation28]
        $region72: #{tpu_custom_call.1} parent=11 // pred_fallthru
          _
        // Predicated region
        $region73: #{tpu_custom_call.1} parent=11 // pred_check
          %p636 = pneg %p430
        $region74: #{tpu_custom_call.1} parent=11 // pred_check_branch
          %638 = sbr.rel (%p636) target = $region76
        $region75: #{tpu_custom_call.1} parent=11 // pred_region
          %s640 = ssub.s32 16, 16
          %641 = vsyncadd [#allocation31], %s640
          %s643 = sshll.u32 %s17, 4
          %s644 = int_to_ptr.vmem [resolvable:$true] %s643
          %646 = dma.vmem_to_smem %s644, 16, [#allocation30], [#allocation31]
        $region76: #{tpu_custom_call.1} parent=11 // pred_fallthru
          _
      $region12: #{tpu_custom_call.1} parent=5 // pred_fallthru
        _
      %p647 = scmp.lt.s32.totalorder %s42, 2
      // Predicated region
      $region77: #{tpu_custom_call.1} parent=5 // pred_check
        %p648 = pneg %p647
      $region78: #{tpu_custom_call.1} parent=5 // pred_check_branch
        %650 = sbr.rel (%p648) target = $region80
      $region79: #{tpu_custom_call.1} parent=5 // pred_region
        // Predicated region
        $region81: #{tpu_custom_call.1} parent=79 // pred_check
          %p651 = pneg %p62
        $region82: #{tpu_custom_call.1} parent=79 // pred_check_branch
          %653 = sbr.rel (%p651) target = $region84
        $region83: #{tpu_custom_call.1} parent=79 // pred_region
          %s654 = sand.u32 %s52, 1
          %s655 = scalar_lea.sflag [#allocation3], %s654
          %s656 = sand.u32 %s52, 1
          %s657 = smul.addr %s656, 128
          %s658 = scalar_lea.vmem [#allocation2], %s657
          %s660 = ssub.s32 2048, 2048
          %661 = vsyncadd %s655, %s660
          %s662 = smul.addr %s42, 16
          %s663 = smul.addr %s662, 128
          %s664 = scalar_lea.hbm %s0, %s663
          %s665 = sshll.u32 %s658, 4
          %s666 = int_to_ptr.vmem [resolvable:$true] %s665
          %671 = dma.hbm_to_vmem [thread:$0]  %s664, 2048, %s666, %s655, 128, 128, 8
        $region84: #{tpu_custom_call.1} parent=79 // pred_fallthru
          _
        // Predicated region
        $region85: #{tpu_custom_call.1} parent=79 // pred_check
          %p672 = pneg %p88
        $region86: #{tpu_custom_call.1} parent=79 // pred_check_branch
          %674 = sbr.rel (%p672) target = $region88
        $region87: #{tpu_custom_call.1} parent=79 // pred_region
          %s675 = sand.u32 %s78, 1
          %s676 = scalar_lea.sflag [#allocation7], %s675
          %s677 = sand.u32 %s78, 1
          %s678 = smul.addr %s677, 128
          %s679 = scalar_lea.vmem [#allocation6], %s678
          %s681 = ssub.s32 2048, 2048
          %682 = vsyncadd %s676, %s681
          %s683 = smul.addr %s42, 16
          %s684 = smul.addr %s683, 128
          %s685 = scalar_lea.hbm %s1, %s684
          %s686 = sshll.u32 %s679, 4
          %s687 = int_to_ptr.vmem [resolvable:$true] %s686
          %692 = dma.hbm_to_vmem [thread:$0]  %s685, 2048, %s687, %s676, 128, 128, 8
        $region88: #{tpu_custom_call.1} parent=79 // pred_fallthru
          _
      $region80: #{tpu_custom_call.1} parent=5 // pred_fallthru
        _
      %p693 = scmp.le.s32.totalorder 1, %s42
      %p694 = scmp.lt.s32.totalorder %s42, 3
      %p695 = pnand %p693, %p694
      %p696 = pneg %p695
      // Predicated region
      $region89: #{tpu_custom_call.1} parent=5 // pred_check
        _
      $region90: #{tpu_custom_call.1} parent=5 // pred_check_branch
        %698 = sbr.rel (%p695) target = $region92
      $region91: #{tpu_custom_call.1} parent=5 // pred_region
        %s699 = ssub.s32 %s42, 1
        %s700 = sand.u32 %s55, 1
        %s701 = scalar_lea.sflag [#allocation3], %s700
        %s702 = sand.u32 %s55, 1
        %s703 = smul.addr %s702, 128
        %s704 = scalar_lea.vmem [#allocation2], %s703
        // Predicated region
        $region93: #{tpu_custom_call.1} parent=91 // pred_check
          %p705 = pneg %p68
        $region94: #{tpu_custom_call.1} parent=91 // pred_check_branch
          %707 = sbr.rel (%p705) target = $region96
        $region95: #{tpu_custom_call.1} parent=91 // pred_region
          %708 = dma.done %s701, 2048
        $region96: #{tpu_custom_call.1} parent=91 // pred_fallthru
          _
        %s709 = sand.u32 %s81, 1
        %s710 = scalar_lea.sflag [#allocation7], %s709
        %s711 = sand.u32 %s81, 1
        %s712 = smul.addr %s711, 128
        %s713 = scalar_lea.vmem [#allocation6], %s712
        // Predicated region
        $region97: #{tpu_custom_call.1} parent=91 // pred_check
          %p714 = pneg %p94
        $region98: #{tpu_custom_call.1} parent=91 // pred_check_branch
          %716 = sbr.rel (%p714) target = $region100
        $region99: #{tpu_custom_call.1} parent=91 // pred_region
          %717 = dma.done %s710, 2048
        $region100: #{tpu_custom_call.1} parent=91 // pred_fallthru
          _
        // Predicated region
        $region101: #{tpu_custom_call.1} parent=91 // pred_check
          %p718 = pneg %p115
        $region102: #{tpu_custom_call.1} parent=91 // pred_check_branch
          %720 = sbr.rel (%p718) target = $region104
        $region103: #{tpu_custom_call.1} parent=91 // pred_region
          %721 = dma.done [#allocation5], 16
        $region104: #{tpu_custom_call.1} parent=91 // pred_fallthru
          _
        // Predicated region
        $region105: #{tpu_custom_call.1} parent=91 // pred_check
          %p722 = pneg %p136
        $region106: #{tpu_custom_call.1} parent=91 // pred_check_branch
          %724 = sbr.rel (%p722) target = $region108
        $region107: #{tpu_custom_call.1} parent=91 // pred_region
          %725 = dma.done [#allocation10], 16
        $region108: #{tpu_custom_call.1} parent=91 // pred_fallthru
          _
        // Predicated region
        $region109: #{tpu_custom_call.1} parent=91 // pred_check
          %p726 = pneg %p157
        $region110: #{tpu_custom_call.1} parent=91 // pred_check_branch
          %728 = sbr.rel (%p726) target = $region112
        $region111: #{tpu_custom_call.1} parent=91 // pred_region
          %729 = dma.done [#allocation10], 16
        $region112: #{tpu_custom_call.1} parent=91 // pred_fallthru
          _
        // Predicated region
        $region113: #{tpu_custom_call.1} parent=91 // pred_check
          %p730 = pneg %p178
        $region114: #{tpu_custom_call.1} parent=91 // pred_check_branch
          %732 = sbr.rel (%p730) target = $region116
        $region115: #{tpu_custom_call.1} parent=91 // pred_region
          %733 = dma.done [#allocation13], 16
        $region116: #{tpu_custom_call.1} parent=91 // pred_fallthru
          _
        // Predicated region
        $region117: #{tpu_custom_call.1} parent=91 // pred_check
          %p734 = pneg %p199
        $region118: #{tpu_custom_call.1} parent=91 // pred_check_branch
          %736 = sbr.rel (%p734) target = $region120
        $region119: #{tpu_custom_call.1} parent=91 // pred_region
          %737 = dma.done [#allocation13], 16
        $region120: #{tpu_custom_call.1} parent=91 // pred_fallthru
          _
        // Predicated region
        $region121: #{tpu_custom_call.1} parent=91 // pred_check
          %p738 = pneg %p220
        $region122: #{tpu_custom_call.1} parent=91 // pred_check_branch
          %740 = sbr.rel (%p738) target = $region124
        $region123: #{tpu_custom_call.1} parent=91 // pred_region
          %741 = dma.done [#allocation16], 16
        $region124: #{tpu_custom_call.1} parent=91 // pred_fallthru
          _
        // Predicated region
        $region125: #{tpu_custom_call.1} parent=91 // pred_check
          %p742 = pneg %p241
        $region126: #{tpu_custom_call.1} parent=91 // pred_check_branch
          %744 = sbr.rel (%p742) target = $region128
        $region127: #{tpu_custom_call.1} parent=91 // pred_region
          %745 = dma.done [#allocation16], 16
        $region128: #{tpu_custom_call.1} parent=91 // pred_fallthru
          _
        // Predicated region
        $region129: #{tpu_custom_call.1} parent=91 // pred_check
          %p746 = pneg %p262
        $region130: #{tpu_custom_call.1} parent=91 // pred_check_branch
          %748 = sbr.rel (%p746) target = $region132
        $region131: #{tpu_custom_call.1} parent=91 // pred_region
          %749 = dma.done [#allocation19], 16
        $region132: #{tpu_custom_call.1} parent=91 // pred_fallthru
          _
        // Predicated region
        $region133: #{tpu_custom_call.1} parent=91 // pred_check
          %p750 = pneg %p283
        $region134: #{tpu_custom_call.1} parent=91 // pred_check_branch
          %752 = sbr.rel (%p750) target = $region136
        $region135: #{tpu_custom_call.1} parent=91 // pred_region
          %753 = dma.done [#allocation19], 16
        $region136: #{tpu_custom_call.1} parent=91 // pred_fallthru
          _
        // Predicated region
        $region137: #{tpu_custom_call.1} parent=91 // pred_check
          %p754 = pneg %p304
        $region138: #{tpu_custom_call.1} parent=91 // pred_check_branch
          %756 = sbr.rel (%p754) target = $region140
        $region139: #{tpu_custom_call.1} parent=91 // pred_region
          %757 = dma.done [#allocation22], 16
        $region140: #{tpu_custom_call.1} parent=91 // pred_fallthru
          _
        // Predicated region
        $region141: #{tpu_custom_call.1} parent=91 // pred_check
          %p758 = pneg %p325
        $region142: #{tpu_custom_call.1} parent=91 // pred_check_branch
          %760 = sbr.rel (%p758) target = $region144
        $region143: #{tpu_custom_call.1} parent=91 // pred_region
          %761 = dma.done [#allocation22], 16
        $region144: #{tpu_custom_call.1} parent=91 // pred_fallthru
          _
        // Predicated region
        $region145: #{tpu_custom_call.1} parent=91 // pred_check
          %p762 = pneg %p346
        $region146: #{tpu_custom_call.1} parent=91 // pred_check_branch
          %764 = sbr.rel (%p762) target = $region148
        $region147: #{tpu_custom_call.1} parent=91 // pred_region
          %765 = dma.done [#allocation25], 16
        $region148: #{tpu_custom_call.1} parent=91 // pred_fallthru
          _
        // Predicated region
        $region149: #{tpu_custom_call.1} parent=91 // pred_check
          %p766 = pneg %p367
        $region150: #{tpu_custom_call.1} parent=91 // pred_check_branch
          %768 = sbr.rel (%p766) target = $region152
        $region151: #{tpu_custom_call.1} parent=91 // pred_region
          %769 = dma.done [#allocation25], 16
        $region152: #{tpu_custom_call.1} parent=91 // pred_fallthru
          _
        // Predicated region
        $region153: #{tpu_custom_call.1} parent=91 // pred_check
          %p770 = pneg %p388
        $region154: #{tpu_custom_call.1} parent=91 // pred_check_branch
          %772 = sbr.rel (%p770) target = $region156
        $region155: #{tpu_custom_call.1} parent=91 // pred_region
          %773 = dma.done [#allocation28], 16
        $region156: #{tpu_custom_call.1} parent=91 // pred_fallthru
          _
        // Predicated region
        $region157: #{tpu_custom_call.1} parent=91 // pred_check
          %p774 = pneg %p409
        $region158: #{tpu_custom_call.1} parent=91 // pred_check_branch
          %776 = sbr.rel (%p774) target = $region160
        $region159: #{tpu_custom_call.1} parent=91 // pred_region
          %777 = dma.done [#allocation28], 16
        $region160: #{tpu_custom_call.1} parent=91 // pred_fallthru
          _
        // Predicated region
        $region161: #{tpu_custom_call.1} parent=91 // pred_check
          %p778 = pneg %p430
        $region162: #{tpu_custom_call.1} parent=91 // pred_check_branch
          %780 = sbr.rel (%p778) target = $region164
        $region163: #{tpu_custom_call.1} parent=91 // pred_region
          %781 = dma.done [#allocation31], 16
        $region164: #{tpu_custom_call.1} parent=91 // pred_fallthru
          _
        %782 = sfence
        %s783 = sand.u32 %s55, 1
        %s784 = scalar_lea.sflag [#allocation3], %s783
        %s785 = sand.u32 %s55, 1
        %s786 = smul.addr %s785, 128
        %s787 = scalar_lea.vmem [#allocation2], %s786
        %p788 = pneg %p68
        %p789 = pneg %p65
        %s790 = sand.u32 %s81, 1
        %s791 = scalar_lea.sflag [#allocation7], %s790
        %s792 = sand.u32 %s81, 1
        %s793 = smul.addr %s792, 128
        %s794 = scalar_lea.vmem [#allocation6], %s793
        %p795 = pneg %p94
        %p796 = pneg %p91
        %p797 = pneg %p115
        %p798 = pneg %p112
        %p799 = pneg %p136
        %p800 = pneg %p133
        %p801 = pneg %p157
        %p802 = pneg %p154
        %p803 = pneg %p178
        %p804 = pneg %p175
        %p805 = pneg %p199
        %p806 = pneg %p196
        %p807 = pneg %p220
        %p808 = pneg %p217
        %p809 = pneg %p241
        %p810 = pneg %p238
        %p811 = pneg %p262
        %p812 = pneg %p259
        %p813 = pneg %p283
        %p814 = pneg %p280
        %p815 = pneg %p304
        %p816 = pneg %p301
        %p817 = pneg %p325
        %p818 = pneg %p322
        %p819 = pneg %p346
        %p820 = pneg %p343
        %p821 = pneg %p367
        %p822 = pneg %p364
        %p823 = pneg %p388
        %p824 = pneg %p385
        %p825 = pneg %p409
        %p826 = pneg %p406
        %p827 = pneg %p430
        %p828 = pneg %p427
        %p829 = pneg %p456
        %p830 = pneg %p453
        %s831 = sand.u32 %s443, 1
        %s832 = scalar_lea.sflag [#allocation4], %s831
        %s833 = sand.u32 %s443, 1
        %s834 = smul.addr %s833, 128
        %s835 = scalar_lea.vmem [#allocation32], %s834
        %v836 = vld [vmem:[%s704] sm:$0xff]
        %v837 = vld [vmem:[%s704 + $0x8] sm:$0xff]
        %s838 = scalar_lea.vmem %s704, 16 [#allocation2]
        %v839 = vld [vmem:[%s838] sm:$0xff]
        %v840 = vld [vmem:[%s838 + $0x8] sm:$0xff]
        %s841 = scalar_lea.vmem %s704, 32 [#allocation2]
        %v842 = vld [vmem:[%s841] sm:$0xff]
        %v843 = vld [vmem:[%s841 + $0x8] sm:$0xff]
        %s844 = scalar_lea.vmem %s704, 48 [#allocation2]
        %v845 = vld [vmem:[%s844] sm:$0xff]
        %v846 = vld [vmem:[%s844 + $0x8] sm:$0xff]
        %s847 = scalar_lea.vmem %s704, 64 [#allocation2]
        %v848 = vld [vmem:[%s847] sm:$0xff]
        %v849 = vld [vmem:[%s847 + $0x8] sm:$0xff]
        %s850 = scalar_lea.vmem %s704, 80 [#allocation2]
        %v851 = vld [vmem:[%s850] sm:$0xff]
        %v852 = vld [vmem:[%s850 + $0x8] sm:$0xff]
        %s853 = scalar_lea.vmem %s704, 96 [#allocation2]
        %v854 = vld [vmem:[%s853] sm:$0xff]
        %v855 = vld [vmem:[%s853 + $0x8] sm:$0xff]
        %s856 = scalar_lea.vmem %s704, 112 [#allocation2]
        %v857 = vld [vmem:[%s856] sm:$0xff]
        %v858 = vld [vmem:[%s856 + $0x8] sm:$0xff]
        %v859 = vld [vmem:[%s713] sm:$0xff]
        %v860 = vld [vmem:[%s713 + $0x8] sm:$0xff]
        %s861 = scalar_lea.vmem %s713, 16 [#allocation6]
        %v862 = vld [vmem:[%s861] sm:$0xff]
        %v863 = vld [vmem:[%s861 + $0x8] sm:$0xff]
        %s864 = scalar_lea.vmem %s713, 32 [#allocation6]
        %v865 = vld [vmem:[%s864] sm:$0xff]
        %v866 = vld [vmem:[%s864 + $0x8] sm:$0xff]
        %s867 = scalar_lea.vmem %s713, 48 [#allocation6]
        %v868 = vld [vmem:[%s867] sm:$0xff]
        %v869 = vld [vmem:[%s867 + $0x8] sm:$0xff]
        %s870 = scalar_lea.vmem %s713, 64 [#allocation6]
        %v871 = vld [vmem:[%s870] sm:$0xff]
        %v872 = vld [vmem:[%s870 + $0x8] sm:$0xff]
        %s873 = scalar_lea.vmem %s713, 80 [#allocation6]
        %v874 = vld [vmem:[%s873] sm:$0xff]
        %v875 = vld [vmem:[%s873 + $0x8] sm:$0xff]
        %s876 = scalar_lea.vmem %s713, 96 [#allocation6]
        %v877 = vld [vmem:[%s876] sm:$0xff]
        %v878 = vld [vmem:[%s876 + $0x8] sm:$0xff]
        %s879 = scalar_lea.vmem %s713, 112 [#allocation6]
        %v880 = vld [vmem:[%s879] sm:$0xff]
        %v881 = vld [vmem:[%s879 + $0x8] sm:$0xff]
        %s882 = sld [smem:[#allocation8]]
        %v883 = vstv %s882
        %v884 = vmul.f32 %v836, %v883
        %v885 = vmul.f32 %v837, %v883
        %s886 = sld [smem:[#allocation8 + $0x1]]
        %v887 = vstv %s886
        %v888 = vmul.f32 %v839, %v887
        %v889 = vmul.f32 %v840, %v887
        %v890 = vadd.f32 %v884, %v888
        %v891 = vadd.f32 %v885, %v889
        %s892 = sld [smem:[#allocation8 + $0x2]]
        %v893 = vstv %s892
        %v894 = vmul.f32 %v842, %v893
        %v895 = vmul.f32 %v843, %v893
        %v896 = vadd.f32 %v890, %v894
        %v897 = vadd.f32 %v891, %v895
        %s898 = sld [smem:[#allocation8 + $0x3]]
        %v899 = vstv %s898
        %v900 = vmul.f32 %v845, %v899
        %v901 = vmul.f32 %v846, %v899
        %v902 = vadd.f32 %v896, %v900
        %v903 = vadd.f32 %v897, %v901
        %s904 = sld [smem:[#allocation8 + $0x4]]
        %v905 = vstv %s904
        %v906 = vmul.f32 %v848, %v905
        %v907 = vmul.f32 %v849, %v905
        %v908 = vadd.f32 %v902, %v906
        %v909 = vadd.f32 %v903, %v907
        %s910 = sld [smem:[#allocation8 + $0x5]]
        %v911 = vstv %s910
        %v912 = vmul.f32 %v851, %v911
        %v913 = vmul.f32 %v852, %v911
        %v914 = vadd.f32 %v908, %v912
        %v915 = vadd.f32 %v909, %v913
        %s916 = sld [smem:[#allocation8 + $0x6]]
        %v917 = vstv %s916
        %v918 = vmul.f32 %v854, %v917
        %v919 = vmul.f32 %v855, %v917
        %v920 = vadd.f32 %v914, %v918
        %v921 = vadd.f32 %v915, %v919
        %s922 = sld [smem:[#allocation8 + $0x7]]
        %v923 = vstv %s922
        %v924 = vmul.f32 %v857, %v923
        %v925 = vmul.f32 %v858, %v923
        %v926 = vadd.f32 %v920, %v924
        %v927 = vadd.f32 %v921, %v925
        %s928 = sld [smem:[#allocation9]]
        %v929 = vstv %s928
        %v930 = vadd.f32 %v926, %v929
        %v931 = vadd.f32 %v927, %v929
        %s932 = sld [smem:[#allocation8 + $0x8]]
        %v933 = vstv %s932
        %v934 = vmul.f32 %v836, %v933
        %v935 = vmul.f32 %v837, %v933
        %s936 = sld [smem:[#allocation8 + $0x9]]
        %v937 = vstv %s936
        %v938 = vmul.f32 %v839, %v937
        %v939 = vmul.f32 %v840, %v937
        %v940 = vadd.f32 %v934, %v938
        %v941 = vadd.f32 %v935, %v939
        %s942 = sld [smem:[#allocation8 + $0xa]]
        %v943 = vstv %s942
        %v944 = vmul.f32 %v842, %v943
        %v945 = vmul.f32 %v843, %v943
        %v946 = vadd.f32 %v940, %v944
        %v947 = vadd.f32 %v941, %v945
        %s948 = sld [smem:[#allocation8 + $0xb]]
        %v949 = vstv %s948
        %v950 = vmul.f32 %v845, %v949
        %v951 = vmul.f32 %v846, %v949
        %v952 = vadd.f32 %v946, %v950
        %v953 = vadd.f32 %v947, %v951
        %s954 = sld [smem:[#allocation8 + $0xc]]
        %v955 = vstv %s954
        %v956 = vmul.f32 %v848, %v955
        %v957 = vmul.f32 %v849, %v955
        %v958 = vadd.f32 %v952, %v956
        %v959 = vadd.f32 %v953, %v957
        %s960 = sld [smem:[#allocation8 + $0xd]]
        %v961 = vstv %s960
        %v962 = vmul.f32 %v851, %v961
        %v963 = vmul.f32 %v852, %v961
        %v964 = vadd.f32 %v958, %v962
        %v965 = vadd.f32 %v959, %v963
        %s966 = sld [smem:[#allocation8 + $0xe]]
        %v967 = vstv %s966
        %v968 = vmul.f32 %v854, %v967
        %v969 = vmul.f32 %v855, %v967
        %v970 = vadd.f32 %v964, %v968
        %v971 = vadd.f32 %v965, %v969
        %s972 = sld [smem:[#allocation8 + $0xf]]
        %v973 = vstv %s972
        %v974 = vmul.f32 %v857, %v973
        %v975 = vmul.f32 %v858, %v973
        %v976 = vadd.f32 %v970, %v974
        %v977 = vadd.f32 %v971, %v975
        %s978 = sld [smem:[#allocation9 + $0x1]]
        %v979 = vstv %s978
        %v980 = vadd.f32 %v976, %v979
        %v981 = vadd.f32 %v977, %v979
        %s982 = sld [smem:[#allocation8 + $0x10]]
        %v983 = vstv %s982
        %v984 = vmul.f32 %v836, %v983
        %v985 = vmul.f32 %v837, %v983
        %s986 = sld [smem:[#allocation8 + $0x11]]
        %v987 = vstv %s986
        %v988 = vmul.f32 %v839, %v987
        %v989 = vmul.f32 %v840, %v987
        %v990 = vadd.f32 %v984, %v988
        %v991 = vadd.f32 %v985, %v989
        %s992 = sld [smem:[#allocation8 + $0x12]]
        %v993 = vstv %s992
        %v994 = vmul.f32 %v842, %v993
        %v995 = vmul.f32 %v843, %v993
        %v996 = vadd.f32 %v990, %v994
        %v997 = vadd.f32 %v991, %v995
        %s998 = sld [smem:[#allocation8 + $0x13]]
        %v999 = vstv %s998
        %v1000 = vmul.f32 %v845, %v999
        %v1001 = vmul.f32 %v846, %v999
        %v1002 = vadd.f32 %v996, %v1000
        %v1003 = vadd.f32 %v997, %v1001
        %s1004 = sld [smem:[#allocation8 + $0x14]]
        %v1005 = vstv %s1004
        %v1006 = vmul.f32 %v848, %v1005
        %v1007 = vmul.f32 %v849, %v1005
        %v1008 = vadd.f32 %v1002, %v1006
        %v1009 = vadd.f32 %v1003, %v1007
        %s1010 = sld [smem:[#allocation8 + $0x15]]
        %v1011 = vstv %s1010
        %v1012 = vmul.f32 %v851, %v1011
        %v1013 = vmul.f32 %v852, %v1011
        %v1014 = vadd.f32 %v1008, %v1012
        %v1015 = vadd.f32 %v1009, %v1013
        %s1016 = sld [smem:[#allocation8 + $0x16]]
        %v1017 = vstv %s1016
        %v1018 = vmul.f32 %v854, %v1017
        %v1019 = vmul.f32 %v855, %v1017
        %v1020 = vadd.f32 %v1014, %v1018
        %v1021 = vadd.f32 %v1015, %v1019
        %s1022 = sld [smem:[#allocation8 + $0x17]]
        %v1023 = vstv %s1022
        %v1024 = vmul.f32 %v857, %v1023
        %v1025 = vmul.f32 %v858, %v1023
        %v1026 = vadd.f32 %v1020, %v1024
        %v1027 = vadd.f32 %v1021, %v1025
        %s1028 = sld [smem:[#allocation9 + $0x2]]
        %v1029 = vstv %s1028
        %v1030 = vadd.f32 %v1026, %v1029
        %v1031 = vadd.f32 %v1027, %v1029
        %s1032 = sld [smem:[#allocation8 + $0x18]]
        %v1033 = vstv %s1032
        %v1034 = vmul.f32 %v836, %v1033
        %v1035 = vmul.f32 %v837, %v1033
        %s1036 = sld [smem:[#allocation8 + $0x19]]
        %v1037 = vstv %s1036
        %v1038 = vmul.f32 %v839, %v1037
        %v1039 = vmul.f32 %v840, %v1037
        %v1040 = vadd.f32 %v1034, %v1038
        %v1041 = vadd.f32 %v1035, %v1039
        %s1042 = sld [smem:[#allocation8 + $0x1a]]
        %v1043 = vstv %s1042
        %v1044 = vmul.f32 %v842, %v1043
        %v1045 = vmul.f32 %v843, %v1043
        %v1046 = vadd.f32 %v1040, %v1044
        %v1047 = vadd.f32 %v1041, %v1045
        %s1048 = sld [smem:[#allocation8 + $0x1b]]
        %v1049 = vstv %s1048
        %v1050 = vmul.f32 %v845, %v1049
        %v1051 = vmul.f32 %v846, %v1049
        %v1052 = vadd.f32 %v1046, %v1050
        %v1053 = vadd.f32 %v1047, %v1051
        %s1054 = sld [smem:[#allocation8 + $0x1c]]
        %v1055 = vstv %s1054
        %v1056 = vmul.f32 %v848, %v1055
        %v1057 = vmul.f32 %v849, %v1055
        %v1058 = vadd.f32 %v1052, %v1056
        %v1059 = vadd.f32 %v1053, %v1057
        %s1060 = sld [smem:[#allocation8 + $0x1d]]
        %v1061 = vstv %s1060
        %v1062 = vmul.f32 %v851, %v1061
        %v1063 = vmul.f32 %v852, %v1061
        %v1064 = vadd.f32 %v1058, %v1062
        %v1065 = vadd.f32 %v1059, %v1063
        %s1066 = sld [smem:[#allocation8 + $0x1e]]
        %v1067 = vstv %s1066
        %v1068 = vmul.f32 %v854, %v1067
        %v1069 = vmul.f32 %v855, %v1067
        %v1070 = vadd.f32 %v1064, %v1068
        %v1071 = vadd.f32 %v1065, %v1069
        %s1072 = sld [smem:[#allocation8 + $0x1f]]
        %v1073 = vstv %s1072
        %v1074 = vmul.f32 %v857, %v1073
        %v1075 = vmul.f32 %v858, %v1073
        %v1076 = vadd.f32 %v1070, %v1074
        %v1077 = vadd.f32 %v1071, %v1075
        %s1078 = sld [smem:[#allocation9 + $0x3]]
        %v1079 = vstv %s1078
        %v1080 = vadd.f32 %v1076, %v1079
        %v1081 = vadd.f32 %v1077, %v1079
        %s1082 = sld [smem:[#allocation11]]
        %v1083 = vstv %s1082
        %v1084 = vmul.f32 %v836, %v1083
        %v1085 = vmul.f32 %v837, %v1083
        %s1086 = sld [smem:[#allocation11 + $0x1]]
        %v1087 = vstv %s1086
        %v1088 = vmul.f32 %v839, %v1087
        %v1089 = vmul.f32 %v840, %v1087
        %v1090 = vadd.f32 %v1084, %v1088
        %v1091 = vadd.f32 %v1085, %v1089
        %s1092 = sld [smem:[#allocation11 + $0x2]]
        %v1093 = vstv %s1092
        %v1094 = vmul.f32 %v842, %v1093
        %v1095 = vmul.f32 %v843, %v1093
        %v1096 = vadd.f32 %v1090, %v1094
        %v1097 = vadd.f32 %v1091, %v1095
        %s1098 = sld [smem:[#allocation11 + $0x3]]
        %v1099 = vstv %s1098
        %v1100 = vmul.f32 %v845, %v1099
        %v1101 = vmul.f32 %v846, %v1099
        %v1102 = vadd.f32 %v1096, %v1100
        %v1103 = vadd.f32 %v1097, %v1101
        %s1104 = sld [smem:[#allocation11 + $0x4]]
        %v1105 = vstv %s1104
        %v1106 = vmul.f32 %v848, %v1105
        %v1107 = vmul.f32 %v849, %v1105
        %v1108 = vadd.f32 %v1102, %v1106
        %v1109 = vadd.f32 %v1103, %v1107
        %s1110 = sld [smem:[#allocation11 + $0x5]]
        %v1111 = vstv %s1110
        %v1112 = vmul.f32 %v851, %v1111
        %v1113 = vmul.f32 %v852, %v1111
        %v1114 = vadd.f32 %v1108, %v1112
        %v1115 = vadd.f32 %v1109, %v1113
        %s1116 = sld [smem:[#allocation11 + $0x6]]
        %v1117 = vstv %s1116
        %v1118 = vmul.f32 %v854, %v1117
        %v1119 = vmul.f32 %v855, %v1117
        %v1120 = vadd.f32 %v1114, %v1118
        %v1121 = vadd.f32 %v1115, %v1119
        %s1122 = sld [smem:[#allocation11 + $0x7]]
        %v1123 = vstv %s1122
        %v1124 = vmul.f32 %v857, %v1123
        %v1125 = vmul.f32 %v858, %v1123
        %v1126 = vadd.f32 %v1120, %v1124
        %v1127 = vadd.f32 %v1121, %v1125
        %s1128 = sld [smem:[#allocation12]]
        %v1129 = vstv %s1128
        %v1130 = vadd.f32 %v1126, %v1129
        %v1131 = vadd.f32 %v1127, %v1129
        %s1132 = sld [smem:[#allocation11 + $0x8]]
        %v1133 = vstv %s1132
        %v1134 = vmul.f32 %v836, %v1133
        %v1135 = vmul.f32 %v837, %v1133
        %s1136 = sld [smem:[#allocation11 + $0x9]]
        %v1137 = vstv %s1136
        %v1138 = vmul.f32 %v839, %v1137
        %v1139 = vmul.f32 %v840, %v1137
        %v1140 = vadd.f32 %v1134, %v1138
        %v1141 = vadd.f32 %v1135, %v1139
        %s1142 = sld [smem:[#allocation11 + $0xa]]
        %v1143 = vstv %s1142
        %v1144 = vmul.f32 %v842, %v1143
        %v1145 = vmul.f32 %v843, %v1143
        %v1146 = vadd.f32 %v1140, %v1144
        %v1147 = vadd.f32 %v1141, %v1145
        %s1148 = sld [smem:[#allocation11 + $0xb]]
        %v1149 = vstv %s1148
        %v1150 = vmul.f32 %v845, %v1149
        %v1151 = vmul.f32 %v846, %v1149
        %v1152 = vadd.f32 %v1146, %v1150
        %v1153 = vadd.f32 %v1147, %v1151
        %s1154 = sld [smem:[#allocation11 + $0xc]]
        %v1155 = vstv %s1154
        %v1156 = vmul.f32 %v848, %v1155
        %v1157 = vmul.f32 %v849, %v1155
        %v1158 = vadd.f32 %v1152, %v1156
        %v1159 = vadd.f32 %v1153, %v1157
        %s1160 = sld [smem:[#allocation11 + $0xd]]
        %v1161 = vstv %s1160
        %v1162 = vmul.f32 %v851, %v1161
        %v1163 = vmul.f32 %v852, %v1161
        %v1164 = vadd.f32 %v1158, %v1162
        %v1165 = vadd.f32 %v1159, %v1163
        %s1166 = sld [smem:[#allocation11 + $0xe]]
        %v1167 = vstv %s1166
        %v1168 = vmul.f32 %v854, %v1167
        %v1169 = vmul.f32 %v855, %v1167
        %v1170 = vadd.f32 %v1164, %v1168
        %v1171 = vadd.f32 %v1165, %v1169
        %s1172 = sld [smem:[#allocation11 + $0xf]]
        %v1173 = vstv %s1172
        %v1174 = vmul.f32 %v857, %v1173
        %v1175 = vmul.f32 %v858, %v1173
        %v1176 = vadd.f32 %v1170, %v1174
        %v1177 = vadd.f32 %v1171, %v1175
        %s1178 = sld [smem:[#allocation12 + $0x1]]
        %v1179 = vstv %s1178
        %v1180 = vadd.f32 %v1176, %v1179
        %v1181 = vadd.f32 %v1177, %v1179
        %s1182 = sld [smem:[#allocation11 + $0x10]]
        %v1183 = vstv %s1182
        %v1184 = vmul.f32 %v836, %v1183
        %v1185 = vmul.f32 %v837, %v1183
        %s1186 = sld [smem:[#allocation11 + $0x11]]
        %v1187 = vstv %s1186
        %v1188 = vmul.f32 %v839, %v1187
        %v1189 = vmul.f32 %v840, %v1187
        %v1190 = vadd.f32 %v1184, %v1188
        %v1191 = vadd.f32 %v1185, %v1189
        %s1192 = sld [smem:[#allocation11 + $0x12]]
        %v1193 = vstv %s1192
        %v1194 = vmul.f32 %v842, %v1193
        %v1195 = vmul.f32 %v843, %v1193
        %v1196 = vadd.f32 %v1190, %v1194
        %v1197 = vadd.f32 %v1191, %v1195
        %s1198 = sld [smem:[#allocation11 + $0x13]]
        %v1199 = vstv %s1198
        %v1200 = vmul.f32 %v845, %v1199
        %v1201 = vmul.f32 %v846, %v1199
        %v1202 = vadd.f32 %v1196, %v1200
        %v1203 = vadd.f32 %v1197, %v1201
        %s1204 = sld [smem:[#allocation11 + $0x14]]
        %v1205 = vstv %s1204
        %v1206 = vmul.f32 %v848, %v1205
        %v1207 = vmul.f32 %v849, %v1205
        %v1208 = vadd.f32 %v1202, %v1206
        %v1209 = vadd.f32 %v1203, %v1207
        %s1210 = sld [smem:[#allocation11 + $0x15]]
        %v1211 = vstv %s1210
        %v1212 = vmul.f32 %v851, %v1211
        %v1213 = vmul.f32 %v852, %v1211
        %v1214 = vadd.f32 %v1208, %v1212
        %v1215 = vadd.f32 %v1209, %v1213
        %s1216 = sld [smem:[#allocation11 + $0x16]]
        %v1217 = vstv %s1216
        %v1218 = vmul.f32 %v854, %v1217
        %v1219 = vmul.f32 %v855, %v1217
        %v1220 = vadd.f32 %v1214, %v1218
        %v1221 = vadd.f32 %v1215, %v1219
        %s1222 = sld [smem:[#allocation11 + $0x17]]
        %v1223 = vstv %s1222
        %v1224 = vmul.f32 %v857, %v1223
        %v1225 = vmul.f32 %v858, %v1223
        %v1226 = vadd.f32 %v1220, %v1224
        %v1227 = vadd.f32 %v1221, %v1225
        %s1228 = sld [smem:[#allocation12 + $0x2]]
        %v1229 = vstv %s1228
        %v1230 = vadd.f32 %v1226, %v1229
        %v1231 = vadd.f32 %v1227, %v1229
        %s1232 = sld [smem:[#allocation11 + $0x18]]
        %v1233 = vstv %s1232
        %v1234 = vmul.f32 %v836, %v1233
        %v1235 = vmul.f32 %v837, %v1233
        %s1236 = sld [smem:[#allocation11 + $0x19]]
        %v1237 = vstv %s1236
        %v1238 = vmul.f32 %v839, %v1237
        %v1239 = vmul.f32 %v840, %v1237
        %v1240 = vadd.f32 %v1234, %v1238
        %v1241 = vadd.f32 %v1235, %v1239
        %s1242 = sld [smem:[#allocation11 + $0x1a]]
        %v1243 = vstv %s1242
        %v1244 = vmul.f32 %v842, %v1243
        %v1245 = vmul.f32 %v843, %v1243
        %v1246 = vadd.f32 %v1240, %v1244
        %v1247 = vadd.f32 %v1241, %v1245
        %s1248 = sld [smem:[#allocation11 + $0x1b]]
        %v1249 = vstv %s1248
        %v1250 = vmul.f32 %v845, %v1249
        %v1251 = vmul.f32 %v846, %v1249
        %v1252 = vadd.f32 %v1246, %v1250
        %v1253 = vadd.f32 %v1247, %v1251
        %s1254 = sld [smem:[#allocation11 + $0x1c]]
        %v1255 = vstv %s1254
        %v1256 = vmul.f32 %v848, %v1255
        %v1257 = vmul.f32 %v849, %v1255
        %v1258 = vadd.f32 %v1252, %v1256
        %v1259 = vadd.f32 %v1253, %v1257
        %s1260 = sld [smem:[#allocation11 + $0x1d]]
        %v1261 = vstv %s1260
        %v1262 = vmul.f32 %v851, %v1261
        %v1263 = vmul.f32 %v852, %v1261
        %v1264 = vadd.f32 %v1258, %v1262
        %v1265 = vadd.f32 %v1259, %v1263
        %s1266 = sld [smem:[#allocation11 + $0x1e]]
        %v1267 = vstv %s1266
        %v1268 = vmul.f32 %v854, %v1267
        %v1269 = vmul.f32 %v855, %v1267
        %v1270 = vadd.f32 %v1264, %v1268
        %v1271 = vadd.f32 %v1265, %v1269
        %s1272 = sld [smem:[#allocation11 + $0x1f]]
        %v1273 = vstv %s1272
        %v1274 = vmul.f32 %v857, %v1273
        %v1275 = vmul.f32 %v858, %v1273
        %v1276 = vadd.f32 %v1270, %v1274
        %v1277 = vadd.f32 %v1271, %v1275
        %s1278 = sld [smem:[#allocation12 + $0x3]]
        %v1279 = vstv %s1278
        %v1280 = vadd.f32 %v1276, %v1279
        %v1281 = vadd.f32 %v1277, %v1279
        %s1282 = sld [smem:[#allocation20]]
        %v1283 = vstv %s1282
        %v1284 = vmul.f32 %v859, %v1283
        %v1285 = vmul.f32 %v860, %v1283
        %s1286 = sld [smem:[#allocation20 + $0x1]]
        %v1287 = vstv %s1286
        %v1288 = vmul.f32 %v862, %v1287
        %v1289 = vmul.f32 %v863, %v1287
        %v1290 = vadd.f32 %v1284, %v1288
        %v1291 = vadd.f32 %v1285, %v1289
        %s1292 = sld [smem:[#allocation20 + $0x2]]
        %v1293 = vstv %s1292
        %v1294 = vmul.f32 %v865, %v1293
        %v1295 = vmul.f32 %v866, %v1293
        %v1296 = vadd.f32 %v1290, %v1294
        %v1297 = vadd.f32 %v1291, %v1295
        %s1298 = sld [smem:[#allocation20 + $0x3]]
        %v1299 = vstv %s1298
        %v1300 = vmul.f32 %v868, %v1299
        %v1301 = vmul.f32 %v869, %v1299
        %v1302 = vadd.f32 %v1296, %v1300
        %v1303 = vadd.f32 %v1297, %v1301
        %s1304 = sld [smem:[#allocation20 + $0x4]]
        %v1305 = vstv %s1304
        %v1306 = vmul.f32 %v871, %v1305
        %v1307 = vmul.f32 %v872, %v1305
        %v1308 = vadd.f32 %v1302, %v1306
        %v1309 = vadd.f32 %v1303, %v1307
        %s1310 = sld [smem:[#allocation20 + $0x5]]
        %v1311 = vstv %s1310
        %v1312 = vmul.f32 %v874, %v1311
        %v1313 = vmul.f32 %v875, %v1311
        %v1314 = vadd.f32 %v1308, %v1312
        %v1315 = vadd.f32 %v1309, %v1313
        %s1316 = sld [smem:[#allocation20 + $0x6]]
        %v1317 = vstv %s1316
        %v1318 = vmul.f32 %v877, %v1317
        %v1319 = vmul.f32 %v878, %v1317
        %v1320 = vadd.f32 %v1314, %v1318
        %v1321 = vadd.f32 %v1315, %v1319
        %s1322 = sld [smem:[#allocation20 + $0x7]]
        %v1323 = vstv %s1322
        %v1324 = vmul.f32 %v880, %v1323
        %v1325 = vmul.f32 %v881, %v1323
        %v1326 = vadd.f32 %v1320, %v1324
        %v1327 = vadd.f32 %v1321, %v1325
        %s1328 = sld [smem:[#allocation21]]
        %v1329 = vstv %s1328
        %v1330 = vadd.f32 %v1326, %v1329
        %v1331 = vadd.f32 %v1327, %v1329
        %s1332 = sld [smem:[#allocation20 + $0x8]]
        %v1333 = vstv %s1332
        %v1334 = vmul.f32 %v859, %v1333
        %v1335 = vmul.f32 %v860, %v1333
        %s1336 = sld [smem:[#allocation20 + $0x9]]
        %v1337 = vstv %s1336
        %v1338 = vmul.f32 %v862, %v1337
        %v1339 = vmul.f32 %v863, %v1337
        %v1340 = vadd.f32 %v1334, %v1338
        %v1341 = vadd.f32 %v1335, %v1339
        %s1342 = sld [smem:[#allocation20 + $0xa]]
        %v1343 = vstv %s1342
        %v1344 = vmul.f32 %v865, %v1343
        %v1345 = vmul.f32 %v866, %v1343
        %v1346 = vadd.f32 %v1340, %v1344
        %v1347 = vadd.f32 %v1341, %v1345
        %s1348 = sld [smem:[#allocation20 + $0xb]]
        %v1349 = vstv %s1348
        %v1350 = vmul.f32 %v868, %v1349
        %v1351 = vmul.f32 %v869, %v1349
        %v1352 = vadd.f32 %v1346, %v1350
        %v1353 = vadd.f32 %v1347, %v1351
        %s1354 = sld [smem:[#allocation20 + $0xc]]
        %v1355 = vstv %s1354
        %v1356 = vmul.f32 %v871, %v1355
        %v1357 = vmul.f32 %v872, %v1355
        %v1358 = vadd.f32 %v1352, %v1356
        %v1359 = vadd.f32 %v1353, %v1357
        %s1360 = sld [smem:[#allocation20 + $0xd]]
        %v1361 = vstv %s1360
        %v1362 = vmul.f32 %v874, %v1361
        %v1363 = vmul.f32 %v875, %v1361
        %v1364 = vadd.f32 %v1358, %v1362
        %v1365 = vadd.f32 %v1359, %v1363
        %s1366 = sld [smem:[#allocation20 + $0xe]]
        %v1367 = vstv %s1366
        %v1368 = vmul.f32 %v877, %v1367
        %v1369 = vmul.f32 %v878, %v1367
        %v1370 = vadd.f32 %v1364, %v1368
        %v1371 = vadd.f32 %v1365, %v1369
        %s1372 = sld [smem:[#allocation20 + $0xf]]
        %v1373 = vstv %s1372
        %v1374 = vmul.f32 %v880, %v1373
        %v1375 = vmul.f32 %v881, %v1373
        %v1376 = vadd.f32 %v1370, %v1374
        %v1377 = vadd.f32 %v1371, %v1375
        %s1378 = sld [smem:[#allocation21 + $0x1]]
        %v1379 = vstv %s1378
        %v1380 = vadd.f32 %v1376, %v1379
        %v1381 = vadd.f32 %v1377, %v1379
        %s1382 = sld [smem:[#allocation20 + $0x10]]
        %v1383 = vstv %s1382
        %v1384 = vmul.f32 %v859, %v1383
        %v1385 = vmul.f32 %v860, %v1383
        %s1386 = sld [smem:[#allocation20 + $0x11]]
        %v1387 = vstv %s1386
        %v1388 = vmul.f32 %v862, %v1387
        %v1389 = vmul.f32 %v863, %v1387
        %v1390 = vadd.f32 %v1384, %v1388
        %v1391 = vadd.f32 %v1385, %v1389
        %s1392 = sld [smem:[#allocation20 + $0x12]]
        %v1393 = vstv %s1392
        %v1394 = vmul.f32 %v865, %v1393
        %v1395 = vmul.f32 %v866, %v1393
        %v1396 = vadd.f32 %v1390, %v1394
        %v1397 = vadd.f32 %v1391, %v1395
        %s1398 = sld [smem:[#allocation20 + $0x13]]
        %v1399 = vstv %s1398
        %v1400 = vmul.f32 %v868, %v1399
        %v1401 = vmul.f32 %v869, %v1399
        %v1402 = vadd.f32 %v1396, %v1400
        %v1403 = vadd.f32 %v1397, %v1401
        %s1404 = sld [smem:[#allocation20 + $0x14]]
        %v1405 = vstv %s1404
        %v1406 = vmul.f32 %v871, %v1405
        %v1407 = vmul.f32 %v872, %v1405
        %v1408 = vadd.f32 %v1402, %v1406
        %v1409 = vadd.f32 %v1403, %v1407
        %s1410 = sld [smem:[#allocation20 + $0x15]]
        %v1411 = vstv %s1410
        %v1412 = vmul.f32 %v874, %v1411
        %v1413 = vmul.f32 %v875, %v1411
        %v1414 = vadd.f32 %v1408, %v1412
        %v1415 = vadd.f32 %v1409, %v1413
        %s1416 = sld [smem:[#allocation20 + $0x16]]
        %v1417 = vstv %s1416
        %v1418 = vmul.f32 %v877, %v1417
        %v1419 = vmul.f32 %v878, %v1417
        %v1420 = vadd.f32 %v1414, %v1418
        %v1421 = vadd.f32 %v1415, %v1419
        %s1422 = sld [smem:[#allocation20 + $0x17]]
        %v1423 = vstv %s1422
        %v1424 = vmul.f32 %v880, %v1423
        %v1425 = vmul.f32 %v881, %v1423
        %v1426 = vadd.f32 %v1420, %v1424
        %v1427 = vadd.f32 %v1421, %v1425
        %s1428 = sld [smem:[#allocation21 + $0x2]]
        %v1429 = vstv %s1428
        %v1430 = vadd.f32 %v1426, %v1429
        %v1431 = vadd.f32 %v1427, %v1429
        %s1432 = sld [smem:[#allocation20 + $0x18]]
        %v1433 = vstv %s1432
        %v1434 = vmul.f32 %v859, %v1433
        %v1435 = vmul.f32 %v860, %v1433
        %s1436 = sld [smem:[#allocation20 + $0x19]]
        %v1437 = vstv %s1436
        %v1438 = vmul.f32 %v862, %v1437
        %v1439 = vmul.f32 %v863, %v1437
        %v1440 = vadd.f32 %v1434, %v1438
        %v1441 = vadd.f32 %v1435, %v1439
        %s1442 = sld [smem:[#allocation20 + $0x1a]]
        %v1443 = vstv %s1442
        %v1444 = vmul.f32 %v865, %v1443
        %v1445 = vmul.f32 %v866, %v1443
        %v1446 = vadd.f32 %v1440, %v1444
        %v1447 = vadd.f32 %v1441, %v1445
        %s1448 = sld [smem:[#allocation20 + $0x1b]]
        %v1449 = vstv %s1448
        %v1450 = vmul.f32 %v868, %v1449
        %v1451 = vmul.f32 %v869, %v1449
        %v1452 = vadd.f32 %v1446, %v1450
        %v1453 = vadd.f32 %v1447, %v1451
        %s1454 = sld [smem:[#allocation20 + $0x1c]]
        %v1455 = vstv %s1454
        %v1456 = vmul.f32 %v871, %v1455
        %v1457 = vmul.f32 %v872, %v1455
        %v1458 = vadd.f32 %v1452, %v1456
        %v1459 = vadd.f32 %v1453, %v1457
        %s1460 = sld [smem:[#allocation20 + $0x1d]]
        %v1461 = vstv %s1460
        %v1462 = vmul.f32 %v874, %v1461
        %v1463 = vmul.f32 %v875, %v1461
        %v1464 = vadd.f32 %v1458, %v1462
        %v1465 = vadd.f32 %v1459, %v1463
        %s1466 = sld [smem:[#allocation20 + $0x1e]]
        %v1467 = vstv %s1466
        %v1468 = vmul.f32 %v877, %v1467
        %v1469 = vmul.f32 %v878, %v1467
        %v1470 = vadd.f32 %v1464, %v1468
        %v1471 = vadd.f32 %v1465, %v1469
        %s1472 = sld [smem:[#allocation20 + $0x1f]]
        %v1473 = vstv %s1472
        %v1474 = vmul.f32 %v880, %v1473
        %v1475 = vmul.f32 %v881, %v1473
        %v1476 = vadd.f32 %v1470, %v1474
        %v1477 = vadd.f32 %v1471, %v1475
        %s1478 = sld [smem:[#allocation21 + $0x3]]
        %v1479 = vstv %s1478
        %v1480 = vadd.f32 %v1476, %v1479
        %v1481 = vadd.f32 %v1477, %v1479
        %vm1482 = vcmask 130048
        %v1483 = vsel %vm1482, %v1130, 0.0
        %1484 = vadd.xlane.f32.xlu0 %v1483
        %v1485 = vpop.xlane.xlu0 %1484
        %v1486 = vsel %vm1482, %v1131, 0.0
        %1487 = vadd.xlane.f32.xlu0 %v1486
        %v1488 = vpop.xlane.xlu0 %1487
        %v1489 = vadd.f32 %v1485, %v1488
        %v1490 = vrot.slane %v1489, 4
        %v1491 = vadd.f32 %v1489, %v1490
        %v1492 = vrot.slane %v1491, 2
        %v1493 = vadd.f32 %v1491, %v1492
        %v1494 = vrot.slane %v1493, 1
        %v1495 = vadd.f32 %v1493, %v1494
        %v1496 = vmul.f32 %v1495, 0.00390625
        %v1497 = vsel %vm1482, %v1180, 0.0
        %1498 = vadd.xlane.f32.xlu0 %v1497
        %v1499 = vpop.xlane.xlu0 %1498
        %v1500 = vsel %vm1482, %v1181, 0.0
        %1501 = vadd.xlane.f32.xlu0 %v1500
        %v1502 = vpop.xlane.xlu0 %1501
        %v1503 = vadd.f32 %v1499, %v1502
        %v1504 = vrot.slane %v1503, 4
        %v1505 = vadd.f32 %v1503, %v1504
        %v1506 = vrot.slane %v1505, 2
        %v1507 = vadd.f32 %v1505, %v1506
        %v1508 = vrot.slane %v1507, 1
        %v1509 = vadd.f32 %v1507, %v1508
        %v1510 = vmul.f32 %v1509, 0.00390625
        %v1511 = vsel %vm1482, %v1230, 0.0
        %1512 = vadd.xlane.f32.xlu0 %v1511
        %v1513 = vpop.xlane.xlu0 %1512
        %v1514 = vsel %vm1482, %v1231, 0.0
        %1515 = vadd.xlane.f32.xlu0 %v1514
        %v1516 = vpop.xlane.xlu0 %1515
        %v1517 = vadd.f32 %v1513, %v1516
        %v1518 = vrot.slane %v1517, 4
        %v1519 = vadd.f32 %v1517, %v1518
        %v1520 = vrot.slane %v1519, 2
        %v1521 = vadd.f32 %v1519, %v1520
        %v1522 = vrot.slane %v1521, 1
        %v1523 = vadd.f32 %v1521, %v1522
        %v1524 = vmul.f32 %v1523, 0.00390625
        %v1525 = vsel %vm1482, %v1280, 0.0
        %1526 = vadd.xlane.f32.xlu0 %v1525
        %v1527 = vpop.xlane.xlu0 %1526
        %v1528 = vsel %vm1482, %v1281, 0.0
        %1529 = vadd.xlane.f32.xlu0 %v1528
        %v1530 = vpop.xlane.xlu0 %1529
        %v1531 = vadd.f32 %v1527, %v1530
        %v1532 = vrot.slane %v1531, 4
        %v1533 = vadd.f32 %v1531, %v1532
        %v1534 = vrot.slane %v1533, 2
        %v1535 = vadd.f32 %v1533, %v1534
        %v1536 = vrot.slane %v1535, 1
        %v1537 = vadd.f32 %v1535, %v1536
        %v1538 = vmul.f32 %v1537, 0.00390625
        %s1539 = sld [smem:[#allocation14]]
        %v1540 = vstv %s1539
        %v1541 = vmul.f32 %v1496, %v1540
        %s1542 = sld [smem:[#allocation14 + $0x1]]
        %v1543 = vstv %s1542
        %v1544 = vmul.f32 %v1510, %v1543
        %v1545 = vadd.f32 %v1541, %v1544
        %s1546 = sld [smem:[#allocation14 + $0x2]]
        %v1547 = vstv %s1546
        %v1548 = vmul.f32 %v1524, %v1547
        %v1549 = vadd.f32 %v1545, %v1548
        %s1550 = sld [smem:[#allocation14 + $0x3]]
        %v1551 = vstv %s1550
        %v1552 = vmul.f32 %v1538, %v1551
        %v1553 = vadd.f32 %v1549, %v1552
        %s1554 = sld [smem:[#allocation15]]
        %v1555 = vstv %s1554
        %v1556 = vadd.f32 %v1553, %v1555
        %v1557 = vmax.f32 %v1556, 0.0
        %s1558 = sld [smem:[#allocation14 + $0x4]]
        %v1559 = vstv %s1558
        %v1560 = vmul.f32 %v1496, %v1559
        %s1561 = sld [smem:[#allocation14 + $0x5]]
        %v1562 = vstv %s1561
        %v1563 = vmul.f32 %v1510, %v1562
        %v1564 = vadd.f32 %v1560, %v1563
        %s1565 = sld [smem:[#allocation14 + $0x6]]
        %v1566 = vstv %s1565
        %v1567 = vmul.f32 %v1524, %v1566
        %v1568 = vadd.f32 %v1564, %v1567
        %s1569 = sld [smem:[#allocation14 + $0x7]]
        %v1570 = vstv %s1569
        %v1571 = vmul.f32 %v1538, %v1570
        %v1572 = vadd.f32 %v1568, %v1571
        %s1573 = sld [smem:[#allocation15 + $0x1]]
        %v1574 = vstv %s1573
        %v1575 = vadd.f32 %v1572, %v1574
        %v1576 = vmax.f32 %v1575, 0.0
        %s1577 = sld [smem:[#allocation17]]
        %v1578 = vstv %s1577
        %v1579 = vmul.f32 %v1557, %v1578
        %s1580 = sld [smem:[#allocation17 + $0x1]]
        %v1581 = vstv %s1580
        %v1582 = vmul.f32 %v1576, %v1581
        %v1583 = vadd.f32 %v1579, %v1582
        %s1584 = sld [smem:[#allocation18]]
        %v1585 = vstv %s1584
        %v1586 = vadd.f32 %v1583, %v1585
        %v1587 = vsub.f32 0.0, %v1586
        %v1588 = vmul.f32 %v1587, 1.442695
        %v1589 = vpow.pop %v1588
        %v1590 = vadd.f32 %v1589, 1.0
        %v1591 = vrcp.pop %v1590
        %v1592 = vmul.f32 1.0, %v1591
        %v1593 = vmul.f32 %v1130, %v1592
        %v1594 = vmul.f32 %v1131, %v1592
        %s1595 = sld [smem:[#allocation17 + $0x2]]
        %v1596 = vstv %s1595
        %v1597 = vmul.f32 %v1557, %v1596
        %s1598 = sld [smem:[#allocation17 + $0x3]]
        %v1599 = vstv %s1598
        %v1600 = vmul.f32 %v1576, %v1599
        %v1601 = vadd.f32 %v1597, %v1600
        %s1602 = sld [smem:[#allocation18 + $0x1]]
        %v1603 = vstv %s1602
        %v1604 = vadd.f32 %v1601, %v1603
        %v1605 = vsub.f32 0.0, %v1604
        %v1606 = vmul.f32 %v1605, 1.442695
        %v1607 = vpow.pop %v1606
        %v1608 = vadd.f32 %v1607, 1.0
        %v1609 = vrcp.pop %v1608
        %v1610 = vmul.f32 1.0, %v1609
        %v1611 = vmul.f32 %v1180, %v1610
        %v1612 = vmul.f32 %v1181, %v1610
        %s1613 = sld [smem:[#allocation17 + $0x4]]
        %v1614 = vstv %s1613
        %v1615 = vmul.f32 %v1557, %v1614
        %s1616 = sld [smem:[#allocation17 + $0x5]]
        %v1617 = vstv %s1616
        %v1618 = vmul.f32 %v1576, %v1617
        %v1619 = vadd.f32 %v1615, %v1618
        %s1620 = sld [smem:[#allocation18 + $0x2]]
        %v1621 = vstv %s1620
        %v1622 = vadd.f32 %v1619, %v1621
        %v1623 = vsub.f32 0.0, %v1622
        %v1624 = vmul.f32 %v1623, 1.442695
        %v1625 = vpow.pop %v1624
        %v1626 = vadd.f32 %v1625, 1.0
        %v1627 = vrcp.pop %v1626
        %v1628 = vmul.f32 1.0, %v1627
        %v1629 = vmul.f32 %v1230, %v1628
        %v1630 = vmul.f32 %v1231, %v1628
        %s1631 = sld [smem:[#allocation17 + $0x6]]
        %v1632 = vstv %s1631
        %v1633 = vmul.f32 %v1557, %v1632
        %s1634 = sld [smem:[#allocation17 + $0x7]]
        %v1635 = vstv %s1634
        %v1636 = vmul.f32 %v1576, %v1635
        %v1637 = vadd.f32 %v1633, %v1636
        %s1638 = sld [smem:[#allocation18 + $0x3]]
        %v1639 = vstv %s1638
        %v1640 = vadd.f32 %v1637, %v1639
        %v1641 = vsub.f32 0.0, %v1640
        %v1642 = vmul.f32 %v1641, 1.442695
        %v1643 = vpow.pop %v1642
        %v1644 = vadd.f32 %v1643, 1.0
        %v1645 = vrcp.pop %v1644
        %v1646 = vmul.f32 1.0, %v1645
        %v1647 = vmul.f32 %v1280, %v1646
        %v1648 = vmul.f32 %v1281, %v1646
        %v1649 = vsel %vm1482, %v1330, 0.0
        %1650 = vadd.xlane.f32.xlu0 %v1649
        %v1651 = vpop.xlane.xlu0 %1650
        %v1652 = vsel %vm1482, %v1331, 0.0
        %1653 = vadd.xlane.f32.xlu0 %v1652
        %v1654 = vpop.xlane.xlu0 %1653
        %v1655 = vadd.f32 %v1651, %v1654
        %v1656 = vrot.slane %v1655, 4
        %v1657 = vadd.f32 %v1655, %v1656
        %v1658 = vrot.slane %v1657, 2
        %v1659 = vadd.f32 %v1657, %v1658
        %v1660 = vrot.slane %v1659, 1
        %v1661 = vadd.f32 %v1659, %v1660
        %v1662 = vmul.f32 %v1661, 0.00390625
        %v1663 = vsel %vm1482, %v1380, 0.0
        %1664 = vadd.xlane.f32.xlu0 %v1663
        %v1665 = vpop.xlane.xlu0 %1664
        %v1666 = vsel %vm1482, %v1381, 0.0
        %1667 = vadd.xlane.f32.xlu0 %v1666
        %v1668 = vpop.xlane.xlu0 %1667
        %v1669 = vadd.f32 %v1665, %v1668
        %v1670 = vrot.slane %v1669, 4
        %v1671 = vadd.f32 %v1669, %v1670
        %v1672 = vrot.slane %v1671, 2
        %v1673 = vadd.f32 %v1671, %v1672
        %v1674 = vrot.slane %v1673, 1
        %v1675 = vadd.f32 %v1673, %v1674
        %v1676 = vmul.f32 %v1675, 0.00390625
        %v1677 = vsel %vm1482, %v1430, 0.0
        %1678 = vadd.xlane.f32.xlu0 %v1677
        %v1679 = vpop.xlane.xlu0 %1678
        %v1680 = vsel %vm1482, %v1431, 0.0
        %1681 = vadd.xlane.f32.xlu0 %v1680
        %v1682 = vpop.xlane.xlu0 %1681
        %v1683 = vadd.f32 %v1679, %v1682
        %v1684 = vrot.slane %v1683, 4
        %v1685 = vadd.f32 %v1683, %v1684
        %v1686 = vrot.slane %v1685, 2
        %v1687 = vadd.f32 %v1685, %v1686
        %v1688 = vrot.slane %v1687, 1
        %v1689 = vadd.f32 %v1687, %v1688
        %v1690 = vmul.f32 %v1689, 0.00390625
        %v1691 = vsel %vm1482, %v1480, 0.0
        %1692 = vadd.xlane.f32.xlu0 %v1691
        %v1693 = vpop.xlane.xlu0 %1692
        %v1694 = vsel %vm1482, %v1481, 0.0
        %1695 = vadd.xlane.f32.xlu0 %v1694
        %v1696 = vpop.xlane.xlu0 %1695
        %v1697 = vadd.f32 %v1693, %v1696
        %v1698 = vrot.slane %v1697, 4
        %v1699 = vadd.f32 %v1697, %v1698
        %v1700 = vrot.slane %v1699, 2
        %v1701 = vadd.f32 %v1699, %v1700
        %v1702 = vrot.slane %v1701, 1
        %v1703 = vadd.f32 %v1701, %v1702
        %v1704 = vmul.f32 %v1703, 0.00390625
        %s1705 = sld [smem:[#allocation23]]
        %v1706 = vstv %s1705
        %v1707 = vmul.f32 %v1662, %v1706
        %s1708 = sld [smem:[#allocation23 + $0x1]]
        %v1709 = vstv %s1708
        %v1710 = vmul.f32 %v1676, %v1709
        %v1711 = vadd.f32 %v1707, %v1710
        %s1712 = sld [smem:[#allocation23 + $0x2]]
        %v1713 = vstv %s1712
        %v1714 = vmul.f32 %v1690, %v1713
        %v1715 = vadd.f32 %v1711, %v1714
        %s1716 = sld [smem:[#allocation23 + $0x3]]
        %v1717 = vstv %s1716
        %v1718 = vmul.f32 %v1704, %v1717
        %v1719 = vadd.f32 %v1715, %v1718
        %s1720 = sld [smem:[#allocation24]]
        %v1721 = vstv %s1720
        %v1722 = vadd.f32 %v1719, %v1721
        %v1723 = vmax.f32 %v1722, 0.0
        %s1724 = sld [smem:[#allocation23 + $0x4]]
        %v1725 = vstv %s1724
        %v1726 = vmul.f32 %v1662, %v1725
        %s1727 = sld [smem:[#allocation23 + $0x5]]
        %v1728 = vstv %s1727
        %v1729 = vmul.f32 %v1676, %v1728
        %v1730 = vadd.f32 %v1726, %v1729
        %s1731 = sld [smem:[#allocation23 + $0x6]]
        %v1732 = vstv %s1731
        %v1733 = vmul.f32 %v1690, %v1732
        %v1734 = vadd.f32 %v1730, %v1733
        %s1735 = sld [smem:[#allocation23 + $0x7]]
        %v1736 = vstv %s1735
        %v1737 = vmul.f32 %v1704, %v1736
        %v1738 = vadd.f32 %v1734, %v1737
        %s1739 = sld [smem:[#allocation24 + $0x1]]
        %v1740 = vstv %s1739
        %v1741 = vadd.f32 %v1738, %v1740
        %v1742 = vmax.f32 %v1741, 0.0
        %s1743 = sld [smem:[#allocation26]]
        %v1744 = vstv %s1743
        %v1745 = vmul.f32 %v1723, %v1744
        %s1746 = sld [smem:[#allocation26 + $0x1]]
        %v1747 = vstv %s1746
        %v1748 = vmul.f32 %v1742, %v1747
        %v1749 = vadd.f32 %v1745, %v1748
        %s1750 = sld [smem:[#allocation27]]
        %v1751 = vstv %s1750
        %v1752 = vadd.f32 %v1749, %v1751
        %v1753 = vsub.f32 0.0, %v1752
        %v1754 = vmul.f32 %v1753, 1.442695
        %v1755 = vpow.pop %v1754
        %v1756 = vadd.f32 %v1755, 1.0
        %v1757 = vrcp.pop %v1756
        %v1758 = vmul.f32 1.0, %v1757
        %v1759 = vmul.f32 %v1330, %v1758
        %v1760 = vmul.f32 %v1331, %v1758
        %s1761 = sld [smem:[#allocation26 + $0x2]]
        %v1762 = vstv %s1761
        %v1763 = vmul.f32 %v1723, %v1762
        %s1764 = sld [smem:[#allocation26 + $0x3]]
        %v1765 = vstv %s1764
        %v1766 = vmul.f32 %v1742, %v1765
        %v1767 = vadd.f32 %v1763, %v1766
        %s1768 = sld [smem:[#allocation27 + $0x1]]
        %v1769 = vstv %s1768
        %v1770 = vadd.f32 %v1767, %v1769
        %v1771 = vsub.f32 0.0, %v1770
        %v1772 = vmul.f32 %v1771, 1.442695
        %v1773 = vpow.pop %v1772
        %v1774 = vadd.f32 %v1773, 1.0
        %v1775 = vrcp.pop %v1774
        %v1776 = vmul.f32 1.0, %v1775
        %v1777 = vmul.f32 %v1380, %v1776
        %v1778 = vmul.f32 %v1381, %v1776
        %s1779 = sld [smem:[#allocation26 + $0x4]]
        %v1780 = vstv %s1779
        %v1781 = vmul.f32 %v1723, %v1780
        %s1782 = sld [smem:[#allocation26 + $0x5]]
        %v1783 = vstv %s1782
        %v1784 = vmul.f32 %v1742, %v1783
        %v1785 = vadd.f32 %v1781, %v1784
        %s1786 = sld [smem:[#allocation27 + $0x2]]
        %v1787 = vstv %s1786
        %v1788 = vadd.f32 %v1785, %v1787
        %v1789 = vsub.f32 0.0, %v1788
        %v1790 = vmul.f32 %v1789, 1.442695
        %v1791 = vpow.pop %v1790
        %v1792 = vadd.f32 %v1791, 1.0
        %v1793 = vrcp.pop %v1792
        %v1794 = vmul.f32 1.0, %v1793
        %v1795 = vmul.f32 %v1430, %v1794
        %v1796 = vmul.f32 %v1431, %v1794
        %s1797 = sld [smem:[#allocation26 + $0x6]]
        %v1798 = vstv %s1797
        %v1799 = vmul.f32 %v1723, %v1798
        %s1800 = sld [smem:[#allocation26 + $0x7]]
        %v1801 = vstv %s1800
        %v1802 = vmul.f32 %v1742, %v1801
        %v1803 = vadd.f32 %v1799, %v1802
        %s1804 = sld [smem:[#allocation27 + $0x3]]
        %v1805 = vstv %s1804
        %v1806 = vadd.f32 %v1803, %v1805
        %v1807 = vsub.f32 0.0, %v1806
        %v1808 = vmul.f32 %v1807, 1.442695
        %v1809 = vpow.pop %v1808
        %v1810 = vadd.f32 %v1809, 1.0
        %v1811 = vrcp.pop %v1810
        %v1812 = vmul.f32 1.0, %v1811
        %v1813 = vmul.f32 %v1480, %v1812
        %v1814 = vmul.f32 %v1481, %v1812
        %v1816 = vsel %vm1482, %v1593, 0
        %v1819 = vsel %vm1482, %v1594, 0
        %1821 = vmatprep.subr.mxu0 0.0
        %1822 = vmatpush1.msra.mxu0 %v930
        %1823 = vmatprep.subr.mxu0 0.0
        %1824 = vmatpush1.msra.mxu0 %v931
        %1825 = vmatprep.subr.mxu0 0.0
        %1826 = vmatpush1.msra.mxu0 0.0
        %1827 = vmatprep.subr.mxu0 0.0
        %1828 = vmatpush1.msra.mxu0 0.0
        %1829 = vmatprep.subr.mxu0 0.0
        %1830 = vmatpush1.msra.mxu0 0.0
        %1831 = vmatprep.subr.mxu0 0.0
        %1832 = vmatpush1.msra.mxu0 0.0
        %1833 = vmatprep.subr.mxu0 0.0
        %1834 = vmatpush1.msra.mxu0 0.0
        %1835 = vmatprep.subr.mxu0 0.0
        %1836 = vmatpush1.msra.mxu0 0.0
        %1837 = vmatprep.subr.mxu0 0.0
        %1838 = vmatpush1.msra.mxu0 0.0
        %1839 = vmatprep.subr.mxu0 0.0
        %1840 = vmatpush1.msra.mxu0 0.0
        %1841 = vmatprep.subr.mxu0 0.0
        %1842 = vmatpush1.msra.mxu0 0.0
        %1843 = vmatprep.subr.mxu0 0.0
        %1844 = vmatpush1.msra.mxu0 0.0
        %1845 = vmatprep.subr.mxu0 0.0
        %1846 = vmatpush1.msra.mxu0 0.0
        %1847 = vmatprep.subr.mxu0 0.0
        %1848 = vmatpush1.msra.mxu0 0.0
        %1849 = vmatprep.subr.mxu0 0.0
        %1850 = vmatpush1.msra.mxu0 0.0
        %1851 = vmatprep.subr.mxu0 0.0
        %1852 = vmatpush1.msra.mxu0 0.0
        %1853 = vmatprep.subr.mxu0 0.0
        %1854 = vmatpush1.msra.mxu0 0.0
        %1855 = vmatprep.subr.mxu0 0.0
        %1856 = vmatpush1.msra.mxu0 0.0
        %1857 = vmatprep.subr.mxu0 0.0
        %1858 = vmatpush1.msra.mxu0 0.0
        %1859 = vmatprep.subr.mxu0 0.0
        %1860 = vmatpush1.msra.mxu0 0.0
        %1861 = vmatprep.subr.mxu0 0.0
        %1862 = vmatpush1.msra.mxu0 0.0
        %1863 = vmatprep.subr.mxu0 0.0
        %1864 = vmatpush1.msra.mxu0 0.0
        %1865 = vmatprep.subr.mxu0 0.0
        %1866 = vmatpush1.msra.mxu0 0.0
        %1867 = vmatprep.subr.mxu0 0.0
        %1868 = vmatpush1.msra.mxu0 0.0
        %1869 = vmatprep.subr.mxu0 0.0
        %1870 = vmatpush1.msra.mxu0 0.0
        %1871 = vmatprep.subr.mxu0 0.0
        %1872 = vmatpush1.msra.mxu0 0.0
        %1873 = vmatprep.subr.mxu0 0.0
        %1874 = vmatpush1.msra.mxu0 0.0
        %1875 = vmatprep.subr.mxu0 0.0
        %1876 = vmatpush1.msra.mxu0 0.0
        %1877 = vmatprep.subr.mxu0 0.0
        %1878 = vmatpush1.msra.mxu0 0.0
        %1879 = vmatprep.subr.mxu0 0.0
        %1880 = vmatpush1.msra.mxu0 0.0
        %1881 = vmatprep.subr.mxu0 0.0
        %1882 = vmatpush1.msra.mxu0 0.0
        %1883 = vmatprep.subr.mxu0 0.0
        %1884 = vmatpush1.msra.mxu0 0.0
        %1885 = vmatprep.mubr.f32.mxu0 0.0
        %1886 = vmatmul.mubr.f32.gmra.mrb[0].mxu0 %v1816
        %v1887 = vpop.f32.mrb[0].mxu0
        %v1888 = vadd.f32 0.0, %v1887
        %v1889 = vpop.f32.mrb[0].mxu0
        %1890 = vmatprep.mubr.f32.mxu0 0.0
        %1891 = vmatmul.mubr.f32.gmra.mrb[0].mxu0 %v1819
        %v1892 = vpop.f32.mrb[0].mxu0
        %v1893 = vadd.f32 0.0, %v1892
        %v1894 = vpop.f32.mrb[0].mxu0
        %1895 = vdwg.mxu0
        %v1897 = vsel %vm1482, %v1888, 0
        %v1900 = vsel %vm1482, %v1893, 0
        %1902 = vmatprep.subr.mxu0 0.0
        %1903 = vmatpush1.msra.mxu0 %v1759
        %1904 = vmatprep.subr.mxu0 0.0
        %1905 = vmatpush1.msra.mxu0 %v1760
        %1906 = vmatprep.subr.mxu0 0.0
        %1907 = vmatpush1.msra.mxu0 0.0
        %1908 = vmatprep.subr.mxu0 0.0
        %1909 = vmatpush1.msra.mxu0 0.0
        %1910 = vmatprep.subr.mxu0 0.0
        %1911 = vmatpush1.msra.mxu0 0.0
        %1912 = vmatprep.subr.mxu0 0.0
        %1913 = vmatpush1.msra.mxu0 0.0
        %1914 = vmatprep.subr.mxu0 0.0
        %1915 = vmatpush1.msra.mxu0 0.0
        %1916 = vmatprep.subr.mxu0 0.0
        %1917 = vmatpush1.msra.mxu0 0.0
        %1918 = vmatprep.subr.mxu0 0.0
        %1919 = vmatpush1.msra.mxu0 0.0
        %1920 = vmatprep.subr.mxu0 0.0
        %1921 = vmatpush1.msra.mxu0 0.0
        %1922 = vmatprep.subr.mxu0 0.0
        %1923 = vmatpush1.msra.mxu0 0.0
        %1924 = vmatprep.subr.mxu0 0.0
        %1925 = vmatpush1.msra.mxu0 0.0
        %1926 = vmatprep.subr.mxu0 0.0
        %1927 = vmatpush1.msra.mxu0 0.0
        %1928 = vmatprep.subr.mxu0 0.0
        %1929 = vmatpush1.msra.mxu0 0.0
        %1930 = vmatprep.subr.mxu0 0.0
        %1931 = vmatpush1.msra.mxu0 0.0
        %1932 = vmatprep.subr.mxu0 0.0
        %1933 = vmatpush1.msra.mxu0 0.0
        %1934 = vmatprep.subr.mxu0 0.0
        %1935 = vmatpush1.msra.mxu0 0.0
        %1936 = vmatprep.subr.mxu0 0.0
        %1937 = vmatpush1.msra.mxu0 0.0
        %1938 = vmatprep.subr.mxu0 0.0
        %1939 = vmatpush1.msra.mxu0 0.0
        %1940 = vmatprep.subr.mxu0 0.0
        %1941 = vmatpush1.msra.mxu0 0.0
        %1942 = vmatprep.subr.mxu0 0.0
        %1943 = vmatpush1.msra.mxu0 0.0
        %1944 = vmatprep.subr.mxu0 0.0
        %1945 = vmatpush1.msra.mxu0 0.0
        %1946 = vmatprep.subr.mxu0 0.0
        %1947 = vmatpush1.msra.mxu0 0.0
        %1948 = vmatprep.subr.mxu0 0.0
        %1949 = vmatpush1.msra.mxu0 0.0
        %1950 = vmatprep.subr.mxu0 0.0
        %1951 = vmatpush1.msra.mxu0 0.0
        %1952 = vmatprep.subr.mxu0 0.0
        %1953 = vmatpush1.msra.mxu0 0.0
        %1954 = vmatprep.subr.mxu0 0.0
        %1955 = vmatpush1.msra.mxu0 0.0
        %1956 = vmatprep.subr.mxu0 0.0
        %1957 = vmatpush1.msra.mxu0 0.0
        %1958 = vmatprep.subr.mxu0 0.0
        %1959 = vmatpush1.msra.mxu0 0.0
        %1960 = vmatprep.subr.mxu0 0.0
        %1961 = vmatpush1.msra.mxu0 0.0
        %1962 = vmatprep.subr.mxu0 0.0
        %1963 = vmatpush1.msra.mxu0 0.0
        %1964 = vmatprep.subr.mxu0 0.0
        %1965 = vmatpush1.msra.mxu0 0.0
        %1966 = vmatprep.mubr.f32.mxu0 0.0
        %1967 = vmatmul.mubr.f32.gmra.mrb[0].mxu0 %v1897
        %v1968 = vpop.f32.mrb[0].mxu0
        %v1969 = vadd.f32 0.0, %v1968
        %v1970 = vpop.f32.mrb[0].mxu0
        %1971 = vmatprep.mubr.f32.mxu0 0.0
        %1972 = vmatmul.mubr.f32.gmra.mrb[0].mxu0 %v1900
        %v1973 = vpop.f32.mrb[0].mxu0
        %v1974 = vadd.f32 0.0, %v1973
        %v1975 = vpop.f32.mrb[0].mxu0
        %1976 = vdwg.mxu0
        %v1978 = vsel %vm1482, %v1611, 0
        %v1981 = vsel %vm1482, %v1612, 0
        %1983 = vmatprep.subr.mxu0 0.0
        %1984 = vmatpush1.msra.mxu0 %v980
        %1985 = vmatprep.subr.mxu0 0.0
        %1986 = vmatpush1.msra.mxu0 %v981
        %1987 = vmatprep.subr.mxu0 0.0
        %1988 = vmatpush1.msra.mxu0 0.0
        %1989 = vmatprep.subr.mxu0 0.0
        %1990 = vmatpush1.msra.mxu0 0.0
        %1991 = vmatprep.subr.mxu0 0.0
        %1992 = vmatpush1.msra.mxu0 0.0
        %1993 = vmatprep.subr.mxu0 0.0
        %1994 = vmatpush1.msra.mxu0 0.0
        %1995 = vmatprep.subr.mxu0 0.0
        %1996 = vmatpush1.msra.mxu0 0.0
        %1997 = vmatprep.subr.mxu0 0.0
        %1998 = vmatpush1.msra.mxu0 0.0
        %1999 = vmatprep.subr.mxu0 0.0
        %2000 = vmatpush1.msra.mxu0 0.0
        %2001 = vmatprep.subr.mxu0 0.0
        %2002 = vmatpush1.msra.mxu0 0.0
        %2003 = vmatprep.subr.mxu0 0.0
        %2004 = vmatpush1.msra.mxu0 0.0
        %2005 = vmatprep.subr.mxu0 0.0
        %2006 = vmatpush1.msra.mxu0 0.0
        %2007 = vmatprep.subr.mxu0 0.0
        %2008 = vmatpush1.msra.mxu0 0.0
        %2009 = vmatprep.subr.mxu0 0.0
        %2010 = vmatpush1.msra.mxu0 0.0
        %2011 = vmatprep.subr.mxu0 0.0
        %2012 = vmatpush1.msra.mxu0 0.0
        %2013 = vmatprep.subr.mxu0 0.0
        %2014 = vmatpush1.msra.mxu0 0.0
        %2015 = vmatprep.subr.mxu0 0.0
        %2016 = vmatpush1.msra.mxu0 0.0
        %2017 = vmatprep.subr.mxu0 0.0
        %2018 = vmatpush1.msra.mxu0 0.0
        %2019 = vmatprep.subr.mxu0 0.0
        %2020 = vmatpush1.msra.mxu0 0.0
        %2021 = vmatprep.subr.mxu0 0.0
        %2022 = vmatpush1.msra.mxu0 0.0
        %2023 = vmatprep.subr.mxu0 0.0
        %2024 = vmatpush1.msra.mxu0 0.0
        %2025 = vmatprep.subr.mxu0 0.0
        %2026 = vmatpush1.msra.mxu0 0.0
        %2027 = vmatprep.subr.mxu0 0.0
        %2028 = vmatpush1.msra.mxu0 0.0
        %2029 = vmatprep.subr.mxu0 0.0
        %2030 = vmatpush1.msra.mxu0 0.0
        %2031 = vmatprep.subr.mxu0 0.0
        %2032 = vmatpush1.msra.mxu0 0.0
        %2033 = vmatprep.subr.mxu0 0.0
        %2034 = vmatpush1.msra.mxu0 0.0
        %2035 = vmatprep.subr.mxu0 0.0
        %2036 = vmatpush1.msra.mxu0 0.0
        %2037 = vmatprep.subr.mxu0 0.0
        %2038 = vmatpush1.msra.mxu0 0.0
        %2039 = vmatprep.subr.mxu0 0.0
        %2040 = vmatpush1.msra.mxu0 0.0
        %2041 = vmatprep.subr.mxu0 0.0
        %2042 = vmatpush1.msra.mxu0 0.0
        %2043 = vmatprep.subr.mxu0 0.0
        %2044 = vmatpush1.msra.mxu0 0.0
        %2045 = vmatprep.subr.mxu0 0.0
        %2046 = vmatpush1.msra.mxu0 0.0
        %2047 = vmatprep.mubr.f32.mxu0 0.0
        %2048 = vmatmul.mubr.f32.gmra.mrb[0].mxu0 %v1978
        %v2049 = vpop.f32.mrb[0].mxu0
        %v2050 = vadd.f32 0.0, %v2049
        %v2051 = vpop.f32.mrb[0].mxu0
        %2052 = vmatprep.mubr.f32.mxu0 0.0
        %2053 = vmatmul.mubr.f32.gmra.mrb[0].mxu0 %v1981
        %v2054 = vpop.f32.mrb[0].mxu0
        %v2055 = vadd.f32 0.0, %v2054
        %v2056 = vpop.f32.mrb[0].mxu0
        %2057 = vdwg.mxu0
        %v2059 = vsel %vm1482, %v2050, 0
        %v2062 = vsel %vm1482, %v2055, 0
        %2064 = vmatprep.subr.mxu0 0.0
        %2065 = vmatpush1.msra.mxu0 %v1777
        %2066 = vmatprep.subr.mxu0 0.0
        %2067 = vmatpush1.msra.mxu0 %v1778
        %2068 = vmatprep.subr.mxu0 0.0
        %2069 = vmatpush1.msra.mxu0 0.0
        %2070 = vmatprep.subr.mxu0 0.0
        %2071 = vmatpush1.msra.mxu0 0.0
        %2072 = vmatprep.subr.mxu0 0.0
        %2073 = vmatpush1.msra.mxu0 0.0
        %2074 = vmatprep.subr.mxu0 0.0
        %2075 = vmatpush1.msra.mxu0 0.0
        %2076 = vmatprep.subr.mxu0 0.0
        %2077 = vmatpush1.msra.mxu0 0.0
        %2078 = vmatprep.subr.mxu0 0.0
        %2079 = vmatpush1.msra.mxu0 0.0
        %2080 = vmatprep.subr.mxu0 0.0
        %2081 = vmatpush1.msra.mxu0 0.0
        %2082 = vmatprep.subr.mxu0 0.0
        %2083 = vmatpush1.msra.mxu0 0.0
        %2084 = vmatprep.subr.mxu0 0.0
        %2085 = vmatpush1.msra.mxu0 0.0
        %2086 = vmatprep.subr.mxu0 0.0
        %2087 = vmatpush1.msra.mxu0 0.0
        %2088 = vmatprep.subr.mxu0 0.0
        %2089 = vmatpush1.msra.mxu0 0.0
        %2090 = vmatprep.subr.mxu0 0.0
        %2091 = vmatpush1.msra.mxu0 0.0
        %2092 = vmatprep.subr.mxu0 0.0
        %2093 = vmatpush1.msra.mxu0 0.0
        %2094 = vmatprep.subr.mxu0 0.0
        %2095 = vmatpush1.msra.mxu0 0.0
        %2096 = vmatprep.subr.mxu0 0.0
        %2097 = vmatpush1.msra.mxu0 0.0
        %2098 = vmatprep.subr.mxu0 0.0
        %2099 = vmatpush1.msra.mxu0 0.0
        %2100 = vmatprep.subr.mxu0 0.0
        %2101 = vmatpush1.msra.mxu0 0.0
        %2102 = vmatprep.subr.mxu0 0.0
        %2103 = vmatpush1.msra.mxu0 0.0
        %2104 = vmatprep.subr.mxu0 0.0
        %2105 = vmatpush1.msra.mxu0 0.0
        %2106 = vmatprep.subr.mxu0 0.0
        %2107 = vmatpush1.msra.mxu0 0.0
        %2108 = vmatprep.subr.mxu0 0.0
        %2109 = vmatpush1.msra.mxu0 0.0
        %2110 = vmatprep.subr.mxu0 0.0
        %2111 = vmatpush1.msra.mxu0 0.0
        %2112 = vmatprep.subr.mxu0 0.0
        %2113 = vmatpush1.msra.mxu0 0.0
        %2114 = vmatprep.subr.mxu0 0.0
        %2115 = vmatpush1.msra.mxu0 0.0
        %2116 = vmatprep.subr.mxu0 0.0
        %2117 = vmatpush1.msra.mxu0 0.0
        %2118 = vmatprep.subr.mxu0 0.0
        %2119 = vmatpush1.msra.mxu0 0.0
        %2120 = vmatprep.subr.mxu0 0.0
        %2121 = vmatpush1.msra.mxu0 0.0
        %2122 = vmatprep.subr.mxu0 0.0
        %2123 = vmatpush1.msra.mxu0 0.0
        %2124 = vmatprep.subr.mxu0 0.0
        %2125 = vmatpush1.msra.mxu0 0.0
        %2126 = vmatprep.subr.mxu0 0.0
        %2127 = vmatpush1.msra.mxu0 0.0
        %2128 = vmatprep.mubr.f32.mxu0 0.0
        %2129 = vmatmul.mubr.f32.gmra.mrb[0].mxu0 %v2059
        %v2130 = vpop.f32.mrb[0].mxu0
        %v2131 = vadd.f32 0.0, %v2130
        %v2132 = vpop.f32.mrb[0].mxu0
        %2133 = vmatprep.mubr.f32.mxu0 0.0
        %2134 = vmatmul.mubr.f32.gmra.mrb[0].mxu0 %v2062
        %v2135 = vpop.f32.mrb[0].mxu0
        %v2136 = vadd.f32 0.0, %v2135
        %v2137 = vpop.f32.mrb[0].mxu0
        %2138 = vdwg.mxu0
        %v2140 = vsel %vm1482, %v1629, 0
        %v2143 = vsel %vm1482, %v1630, 0
        %2145 = vmatprep.subr.mxu0 0.0
        %2146 = vmatpush1.msra.mxu0 %v1030
        %2147 = vmatprep.subr.mxu0 0.0
        %2148 = vmatpush1.msra.mxu0 %v1031
        %2149 = vmatprep.subr.mxu0 0.0
        %2150 = vmatpush1.msra.mxu0 0.0
        %2151 = vmatprep.subr.mxu0 0.0
        %2152 = vmatpush1.msra.mxu0 0.0
        %2153 = vmatprep.subr.mxu0 0.0
        %2154 = vmatpush1.msra.mxu0 0.0
        %2155 = vmatprep.subr.mxu0 0.0
        %2156 = vmatpush1.msra.mxu0 0.0
        %2157 = vmatprep.subr.mxu0 0.0
        %2158 = vmatpush1.msra.mxu0 0.0
        %2159 = vmatprep.subr.mxu0 0.0
        %2160 = vmatpush1.msra.mxu0 0.0
        %2161 = vmatprep.subr.mxu0 0.0
        %2162 = vmatpush1.msra.mxu0 0.0
        %2163 = vmatprep.subr.mxu0 0.0
        %2164 = vmatpush1.msra.mxu0 0.0
        %2165 = vmatprep.subr.mxu0 0.0
        %2166 = vmatpush1.msra.mxu0 0.0
        %2167 = vmatprep.subr.mxu0 0.0
        %2168 = vmatpush1.msra.mxu0 0.0
        %2169 = vmatprep.subr.mxu0 0.0
        %2170 = vmatpush1.msra.mxu0 0.0
        %2171 = vmatprep.subr.mxu0 0.0
        %2172 = vmatpush1.msra.mxu0 0.0
        %2173 = vmatprep.subr.mxu0 0.0
        %2174 = vmatpush1.msra.mxu0 0.0
        %2175 = vmatprep.subr.mxu0 0.0
        %2176 = vmatpush1.msra.mxu0 0.0
        %2177 = vmatprep.subr.mxu0 0.0
        %2178 = vmatpush1.msra.mxu0 0.0
        %2179 = vmatprep.subr.mxu0 0.0
        %2180 = vmatpush1.msra.mxu0 0.0
        %2181 = vmatprep.subr.mxu0 0.0
        %2182 = vmatpush1.msra.mxu0 0.0
        %2183 = vmatprep.subr.mxu0 0.0
        %2184 = vmatpush1.msra.mxu0 0.0
        %2185 = vmatprep.subr.mxu0 0.0
        %2186 = vmatpush1.msra.mxu0 0.0
        %2187 = vmatprep.subr.mxu0 0.0
        %2188 = vmatpush1.msra.mxu0 0.0
        %2189 = vmatprep.subr.mxu0 0.0
        %2190 = vmatpush1.msra.mxu0 0.0
        %2191 = vmatprep.subr.mxu0 0.0
        %2192 = vmatpush1.msra.mxu0 0.0
        %2193 = vmatprep.subr.mxu0 0.0
        %2194 = vmatpush1.msra.mxu0 0.0
        %2195 = vmatprep.subr.mxu0 0.0
        %2196 = vmatpush1.msra.mxu0 0.0
        %2197 = vmatprep.subr.mxu0 0.0
        %2198 = vmatpush1.msra.mxu0 0.0
        %2199 = vmatprep.subr.mxu0 0.0
        %2200 = vmatpush1.msra.mxu0 0.0
        %2201 = vmatprep.subr.mxu0 0.0
        %2202 = vmatpush1.msra.mxu0 0.0
        %2203 = vmatprep.subr.mxu0 0.0
        %2204 = vmatpush1.msra.mxu0 0.0
        %2205 = vmatprep.subr.mxu0 0.0
        %2206 = vmatpush1.msra.mxu0 0.0
        %2207 = vmatprep.subr.mxu0 0.0
        %2208 = vmatpush1.msra.mxu0 0.0
        %2209 = vmatprep.mubr.f32.mxu0 0.0
        %2210 = vmatmul.mubr.f32.gmra.mrb[0].mxu0 %v2140
        %v2211 = vpop.f32.mrb[0].mxu0
        %v2212 = vadd.f32 0.0, %v2211
        %v2213 = vpop.f32.mrb[0].mxu0
        %2214 = vmatprep.mubr.f32.mxu0 0.0
        %2215 = vmatmul.mubr.f32.gmra.mrb[0].mxu0 %v2143
        %v2216 = vpop.f32.mrb[0].mxu0
        %v2217 = vadd.f32 0.0, %v2216
        %v2218 = vpop.f32.mrb[0].mxu0
        %2219 = vdwg.mxu0
        %v2221 = vsel %vm1482, %v2212, 0
        %v2224 = vsel %vm1482, %v2217, 0
        %2226 = vmatprep.subr.mxu0 0.0
        %2227 = vmatpush1.msra.mxu0 %v1795
        %2228 = vmatprep.subr.mxu0 0.0
        %2229 = vmatpush1.msra.mxu0 %v1796
        %2230 = vmatprep.subr.mxu0 0.0
        %2231 = vmatpush1.msra.mxu0 0.0
        %2232 = vmatprep.subr.mxu0 0.0
        %2233 = vmatpush1.msra.mxu0 0.0
        %2234 = vmatprep.subr.mxu0 0.0
        %2235 = vmatpush1.msra.mxu0 0.0
        %2236 = vmatprep.subr.mxu0 0.0
        %2237 = vmatpush1.msra.mxu0 0.0
        %2238 = vmatprep.subr.mxu0 0.0
        %2239 = vmatpush1.msra.mxu0 0.0
        %2240 = vmatprep.subr.mxu0 0.0
        %2241 = vmatpush1.msra.mxu0 0.0
        %2242 = vmatprep.subr.mxu0 0.0
        %2243 = vmatpush1.msra.mxu0 0.0
        %2244 = vmatprep.subr.mxu0 0.0
        %2245 = vmatpush1.msra.mxu0 0.0
        %2246 = vmatprep.subr.mxu0 0.0
        %2247 = vmatpush1.msra.mxu0 0.0
        %2248 = vmatprep.subr.mxu0 0.0
        %2249 = vmatpush1.msra.mxu0 0.0
        %2250 = vmatprep.subr.mxu0 0.0
        %2251 = vmatpush1.msra.mxu0 0.0
        %2252 = vmatprep.subr.mxu0 0.0
        %2253 = vmatpush1.msra.mxu0 0.0
        %2254 = vmatprep.subr.mxu0 0.0
        %2255 = vmatpush1.msra.mxu0 0.0
        %2256 = vmatprep.subr.mxu0 0.0
        %2257 = vmatpush1.msra.mxu0 0.0
        %2258 = vmatprep.subr.mxu0 0.0
        %2259 = vmatpush1.msra.mxu0 0.0
        %2260 = vmatprep.subr.mxu0 0.0
        %2261 = vmatpush1.msra.mxu0 0.0
        %2262 = vmatprep.subr.mxu0 0.0
        %2263 = vmatpush1.msra.mxu0 0.0
        %2264 = vmatprep.subr.mxu0 0.0
        %2265 = vmatpush1.msra.mxu0 0.0
        %2266 = vmatprep.subr.mxu0 0.0
        %2267 = vmatpush1.msra.mxu0 0.0
        %2268 = vmatprep.subr.mxu0 0.0
        %2269 = vmatpush1.msra.mxu0 0.0
        %2270 = vmatprep.subr.mxu0 0.0
        %2271 = vmatpush1.msra.mxu0 0.0
        %2272 = vmatprep.subr.mxu0 0.0
        %2273 = vmatpush1.msra.mxu0 0.0
        %2274 = vmatprep.subr.mxu0 0.0
        %2275 = vmatpush1.msra.mxu0 0.0
        %2276 = vmatprep.subr.mxu0 0.0
        %2277 = vmatpush1.msra.mxu0 0.0
        %2278 = vmatprep.subr.mxu0 0.0
        %2279 = vmatpush1.msra.mxu0 0.0
        %2280 = vmatprep.subr.mxu0 0.0
        %2281 = vmatpush1.msra.mxu0 0.0
        %2282 = vmatprep.subr.mxu0 0.0
        %2283 = vmatpush1.msra.mxu0 0.0
        %2284 = vmatprep.subr.mxu0 0.0
        %2285 = vmatpush1.msra.mxu0 0.0
        %2286 = vmatprep.subr.mxu0 0.0
        %2287 = vmatpush1.msra.mxu0 0.0
        %2288 = vmatprep.subr.mxu0 0.0
        %2289 = vmatpush1.msra.mxu0 0.0
        %2290 = vmatprep.mubr.f32.mxu0 0.0
        %2291 = vmatmul.mubr.f32.gmra.mrb[0].mxu0 %v2221
        %v2292 = vpop.f32.mrb[0].mxu0
        %v2293 = vadd.f32 0.0, %v2292
        %v2294 = vpop.f32.mrb[0].mxu0
        %2295 = vmatprep.mubr.f32.mxu0 0.0
        %2296 = vmatmul.mubr.f32.gmra.mrb[0].mxu0 %v2224
        %v2297 = vpop.f32.mrb[0].mxu0
        %v2298 = vadd.f32 0.0, %v2297
        %v2299 = vpop.f32.mrb[0].mxu0
        %2300 = vdwg.mxu0
        %v2302 = vsel %vm1482, %v1647, 0
        %v2305 = vsel %vm1482, %v1648, 0
        %2307 = vmatprep.subr.mxu0 0.0
        %2308 = vmatpush1.msra.mxu0 %v1080
        %2309 = vmatprep.subr.mxu0 0.0
        %2310 = vmatpush1.msra.mxu0 %v1081
        %2311 = vmatprep.subr.mxu0 0.0
        %2312 = vmatpush1.msra.mxu0 0.0
        %2313 = vmatprep.subr.mxu0 0.0
        %2314 = vmatpush1.msra.mxu0 0.0
        %2315 = vmatprep.subr.mxu0 0.0
        %2316 = vmatpush1.msra.mxu0 0.0
        %2317 = vmatprep.subr.mxu0 0.0
        %2318 = vmatpush1.msra.mxu0 0.0
        %2319 = vmatprep.subr.mxu0 0.0
        %2320 = vmatpush1.msra.mxu0 0.0
        %2321 = vmatprep.subr.mxu0 0.0
        %2322 = vmatpush1.msra.mxu0 0.0
        %2323 = vmatprep.subr.mxu0 0.0
        %2324 = vmatpush1.msra.mxu0 0.0
        %2325 = vmatprep.subr.mxu0 0.0
        %2326 = vmatpush1.msra.mxu0 0.0
        %2327 = vmatprep.subr.mxu0 0.0
        %2328 = vmatpush1.msra.mxu0 0.0
        %2329 = vmatprep.subr.mxu0 0.0
        %2330 = vmatpush1.msra.mxu0 0.0
        %2331 = vmatprep.subr.mxu0 0.0
        %2332 = vmatpush1.msra.mxu0 0.0
        %2333 = vmatprep.subr.mxu0 0.0
        %2334 = vmatpush1.msra.mxu0 0.0
        %2335 = vmatprep.subr.mxu0 0.0
        %2336 = vmatpush1.msra.mxu0 0.0
        %2337 = vmatprep.subr.mxu0 0.0
        %2338 = vmatpush1.msra.mxu0 0.0
        %2339 = vmatprep.subr.mxu0 0.0
        %2340 = vmatpush1.msra.mxu0 0.0
        %2341 = vmatprep.subr.mxu0 0.0
        %2342 = vmatpush1.msra.mxu0 0.0
        %2343 = vmatprep.subr.mxu0 0.0
        %2344 = vmatpush1.msra.mxu0 0.0
        %2345 = vmatprep.subr.mxu0 0.0
        %2346 = vmatpush1.msra.mxu0 0.0
        %2347 = vmatprep.subr.mxu0 0.0
        %2348 = vmatpush1.msra.mxu0 0.0
        %2349 = vmatprep.subr.mxu0 0.0
        %2350 = vmatpush1.msra.mxu0 0.0
        %2351 = vmatprep.subr.mxu0 0.0
        %2352 = vmatpush1.msra.mxu0 0.0
        %2353 = vmatprep.subr.mxu0 0.0
        %2354 = vmatpush1.msra.mxu0 0.0
        %2355 = vmatprep.subr.mxu0 0.0
        %2356 = vmatpush1.msra.mxu0 0.0
        %2357 = vmatprep.subr.mxu0 0.0
        %2358 = vmatpush1.msra.mxu0 0.0
        %2359 = vmatprep.subr.mxu0 0.0
        %2360 = vmatpush1.msra.mxu0 0.0
        %2361 = vmatprep.subr.mxu0 0.0
        %2362 = vmatpush1.msra.mxu0 0.0
        %2363 = vmatprep.subr.mxu0 0.0
        %2364 = vmatpush1.msra.mxu0 0.0
        %2365 = vmatprep.subr.mxu0 0.0
        %2366 = vmatpush1.msra.mxu0 0.0
        %2367 = vmatprep.subr.mxu0 0.0
        %2368 = vmatpush1.msra.mxu0 0.0
        %2369 = vmatprep.subr.mxu0 0.0
        %2370 = vmatpush1.msra.mxu0 0.0
        %2371 = vmatprep.mubr.f32.mxu0 0.0
        %2372 = vmatmul.mubr.f32.gmra.mrb[0].mxu0 %v2302
        %v2373 = vpop.f32.mrb[0].mxu0
        %v2374 = vadd.f32 0.0, %v2373
        %v2375 = vpop.f32.mrb[0].mxu0
        %2376 = vmatprep.mubr.f32.mxu0 0.0
        %2377 = vmatmul.mubr.f32.gmra.mrb[0].mxu0 %v2305
        %v2378 = vpop.f32.mrb[0].mxu0
        %v2379 = vadd.f32 0.0, %v2378
        %v2380 = vpop.f32.mrb[0].mxu0
        %2381 = vdwg.mxu0
        %v2383 = vsel %vm1482, %v2374, 0
        %v2386 = vsel %vm1482, %v2379, 0
        %2388 = vmatprep.subr.mxu0 0.0
        %2389 = vmatpush1.msra.mxu0 %v1813
        %2390 = vmatprep.subr.mxu0 0.0
        %2391 = vmatpush1.msra.mxu0 %v1814
        %2392 = vmatprep.subr.mxu0 0.0
        %2393 = vmatpush1.msra.mxu0 0.0
        %2394 = vmatprep.subr.mxu0 0.0
        %2395 = vmatpush1.msra.mxu0 0.0
        %2396 = vmatprep.subr.mxu0 0.0
        %2397 = vmatpush1.msra.mxu0 0.0
        %2398 = vmatprep.subr.mxu0 0.0
        %2399 = vmatpush1.msra.mxu0 0.0
        %2400 = vmatprep.subr.mxu0 0.0
        %2401 = vmatpush1.msra.mxu0 0.0
        %2402 = vmatprep.subr.mxu0 0.0
        %2403 = vmatpush1.msra.mxu0 0.0
        %2404 = vmatprep.subr.mxu0 0.0
        %2405 = vmatpush1.msra.mxu0 0.0
        %2406 = vmatprep.subr.mxu0 0.0
        %2407 = vmatpush1.msra.mxu0 0.0
        %2408 = vmatprep.subr.mxu0 0.0
        %2409 = vmatpush1.msra.mxu0 0.0
        %2410 = vmatprep.subr.mxu0 0.0
        %2411 = vmatpush1.msra.mxu0 0.0
        %2412 = vmatprep.subr.mxu0 0.0
        %2413 = vmatpush1.msra.mxu0 0.0
        %2414 = vmatprep.subr.mxu0 0.0
        %2415 = vmatpush1.msra.mxu0 0.0
        %2416 = vmatprep.subr.mxu0 0.0
        %2417 = vmatpush1.msra.mxu0 0.0
        %2418 = vmatprep.subr.mxu0 0.0
        %2419 = vmatpush1.msra.mxu0 0.0
        %2420 = vmatprep.subr.mxu0 0.0
        %2421 = vmatpush1.msra.mxu0 0.0
        %2422 = vmatprep.subr.mxu0 0.0
        %2423 = vmatpush1.msra.mxu0 0.0
        %2424 = vmatprep.subr.mxu0 0.0
        %2425 = vmatpush1.msra.mxu0 0.0
        %2426 = vmatprep.subr.mxu0 0.0
        %2427 = vmatpush1.msra.mxu0 0.0
        %2428 = vmatprep.subr.mxu0 0.0
        %2429 = vmatpush1.msra.mxu0 0.0
        %2430 = vmatprep.subr.mxu0 0.0
        %2431 = vmatpush1.msra.mxu0 0.0
        %2432 = vmatprep.subr.mxu0 0.0
        %2433 = vmatpush1.msra.mxu0 0.0
        %2434 = vmatprep.subr.mxu0 0.0
        %2435 = vmatpush1.msra.mxu0 0.0
        %2436 = vmatprep.subr.mxu0 0.0
        %2437 = vmatpush1.msra.mxu0 0.0
        %2438 = vmatprep.subr.mxu0 0.0
        %2439 = vmatpush1.msra.mxu0 0.0
        %2440 = vmatprep.subr.mxu0 0.0
        %2441 = vmatpush1.msra.mxu0 0.0
        %2442 = vmatprep.subr.mxu0 0.0
        %2443 = vmatpush1.msra.mxu0 0.0
        %2444 = vmatprep.subr.mxu0 0.0
        %2445 = vmatpush1.msra.mxu0 0.0
        %2446 = vmatprep.subr.mxu0 0.0
        %2447 = vmatpush1.msra.mxu0 0.0
        %2448 = vmatprep.subr.mxu0 0.0
        %2449 = vmatpush1.msra.mxu0 0.0
        %2450 = vmatprep.subr.mxu0 0.0
        %2451 = vmatpush1.msra.mxu0 0.0
        %2452 = vmatprep.mubr.f32.mxu0 0.0
        %2453 = vmatmul.mubr.f32.gmra.mrb[0].mxu0 %v2383
        %v2454 = vpop.f32.mrb[0].mxu0
        %v2455 = vadd.f32 0.0, %v2454
        %v2456 = vpop.f32.mrb[0].mxu0
        %2457 = vmatprep.mubr.f32.mxu0 0.0
        %2458 = vmatmul.mubr.f32.gmra.mrb[0].mxu0 %v2386
        %v2459 = vpop.f32.mrb[0].mxu0
        %v2460 = vadd.f32 0.0, %v2459
        %v2461 = vpop.f32.mrb[0].mxu0
        %2462 = vdwg.mxu0
        %s2463 = sld [smem:[#allocation29]]
        %v2464 = vstv %s2463
        %v2465 = vmul.f32 %v1969, %v2464
        %v2466 = vmul.f32 %v1974, %v2464
        %s2467 = sld [smem:[#allocation29 + $0x1]]
        %v2468 = vstv %s2467
        %v2469 = vmul.f32 %v2131, %v2468
        %v2470 = vmul.f32 %v2136, %v2468
        %v2471 = vadd.f32 %v2465, %v2469
        %v2472 = vadd.f32 %v2466, %v2470
        %s2473 = sld [smem:[#allocation29 + $0x2]]
        %v2474 = vstv %s2473
        %v2475 = vmul.f32 %v2293, %v2474
        %v2476 = vmul.f32 %v2298, %v2474
        %v2477 = vadd.f32 %v2471, %v2475
        %v2478 = vadd.f32 %v2472, %v2476
        %s2479 = sld [smem:[#allocation29 + $0x3]]
        %v2480 = vstv %s2479
        %v2481 = vmul.f32 %v2455, %v2480
        %v2482 = vmul.f32 %v2460, %v2480
        %v2483 = vadd.f32 %v2477, %v2481
        %v2484 = vadd.f32 %v2478, %v2482
        %s2485 = sld [smem:[#allocation30]]
        %v2486 = vstv %s2485
        %v2487 = vadd.f32 %v2483, %v2486
        %v2488 = vadd.f32 %v2484, %v2486
        %v2489 = vmax.f32 %v2487, 0.0
        %v2490 = vmax.f32 %v2488, 0.0
        %2491 = vst.msk [vmem:[%s835] sm:$0xff] %vm1482, %v2489
        %2492 = vst.msk [vmem:[%s835 + $0x8] sm:$0xff] %vm1482, %v2490
        %s2493 = sld [smem:[#allocation29 + $0x4]]
        %v2494 = vstv %s2493
        %v2495 = vmul.f32 %v1969, %v2494
        %v2496 = vmul.f32 %v1974, %v2494
        %s2497 = sld [smem:[#allocation29 + $0x5]]
        %v2498 = vstv %s2497
        %v2499 = vmul.f32 %v2131, %v2498
        %v2500 = vmul.f32 %v2136, %v2498
        %v2501 = vadd.f32 %v2495, %v2499
        %v2502 = vadd.f32 %v2496, %v2500
        %s2503 = sld [smem:[#allocation29 + $0x6]]
        %v2504 = vstv %s2503
        %v2505 = vmul.f32 %v2293, %v2504
        %v2506 = vmul.f32 %v2298, %v2504
        %v2507 = vadd.f32 %v2501, %v2505
        %v2508 = vadd.f32 %v2502, %v2506
        %s2509 = sld [smem:[#allocation29 + $0x7]]
        %v2510 = vstv %s2509
        %v2511 = vmul.f32 %v2455, %v2510
        %v2512 = vmul.f32 %v2460, %v2510
        %v2513 = vadd.f32 %v2507, %v2511
        %v2514 = vadd.f32 %v2508, %v2512
        %s2515 = sld [smem:[#allocation30 + $0x1]]
        %v2516 = vstv %s2515
        %v2517 = vadd.f32 %v2513, %v2516
        %v2518 = vadd.f32 %v2514, %v2516
        %v2519 = vmax.f32 %v2517, 0.0
        %v2520 = vmax.f32 %v2518, 0.0
        %s2521 = scalar_lea.vmem %s835, 16 [#allocation32]
        %2522 = vst.msk [vmem:[%s2521] sm:$0xff] %vm1482, %v2519
        %2523 = vst.msk [vmem:[%s2521 + $0x8] sm:$0xff] %vm1482, %v2520
        %s2524 = sld [smem:[#allocation29 + $0x8]]
        %v2525 = vstv %s2524
        %v2526 = vmul.f32 %v1969, %v2525
        %v2527 = vmul.f32 %v1974, %v2525
        %s2528 = sld [smem:[#allocation29 + $0x9]]
        %v2529 = vstv %s2528
        %v2530 = vmul.f32 %v2131, %v2529
        %v2531 = vmul.f32 %v2136, %v2529
        %v2532 = vadd.f32 %v2526, %v2530
        %v2533 = vadd.f32 %v2527, %v2531
        %s2534 = sld [smem:[#allocation29 + $0xa]]
        %v2535 = vstv %s2534
        %v2536 = vmul.f32 %v2293, %v2535
        %v2537 = vmul.f32 %v2298, %v2535
        %v2538 = vadd.f32 %v2532, %v2536
        %v2539 = vadd.f32 %v2533, %v2537
        %s2540 = sld [smem:[#allocation29 + $0xb]]
        %v2541 = vstv %s2540
        %v2542 = vmul.f32 %v2455, %v2541
        %v2543 = vmul.f32 %v2460, %v2541
        %v2544 = vadd.f32 %v2538, %v2542
        %v2545 = vadd.f32 %v2539, %v2543
        %s2546 = sld [smem:[#allocation30 + $0x2]]
        %v2547 = vstv %s2546
        %v2548 = vadd.f32 %v2544, %v2547
        %v2549 = vadd.f32 %v2545, %v2547
        %v2550 = vmax.f32 %v2548, 0.0
        %v2551 = vmax.f32 %v2549, 0.0
        %s2552 = scalar_lea.vmem %s835, 32 [#allocation32]
        %2553 = vst.msk [vmem:[%s2552] sm:$0xff] %vm1482, %v2550
        %2554 = vst.msk [vmem:[%s2552 + $0x8] sm:$0xff] %vm1482, %v2551
        %s2555 = sld [smem:[#allocation29 + $0xc]]
        %v2556 = vstv %s2555
        %v2557 = vmul.f32 %v1969, %v2556
        %v2558 = vmul.f32 %v1974, %v2556
        %s2559 = sld [smem:[#allocation29 + $0xd]]
        %v2560 = vstv %s2559
        %v2561 = vmul.f32 %v2131, %v2560
        %v2562 = vmul.f32 %v2136, %v2560
        %v2563 = vadd.f32 %v2557, %v2561
        %v2564 = vadd.f32 %v2558, %v2562
        %s2565 = sld [smem:[#allocation29 + $0xe]]
        %v2566 = vstv %s2565
        %v2567 = vmul.f32 %v2293, %v2566
        %v2568 = vmul.f32 %v2298, %v2566
        %v2569 = vadd.f32 %v2563, %v2567
        %v2570 = vadd.f32 %v2564, %v2568
        %s2571 = sld [smem:[#allocation29 + $0xf]]
        %v2572 = vstv %s2571
        %v2573 = vmul.f32 %v2455, %v2572
        %v2574 = vmul.f32 %v2460, %v2572
        %v2575 = vadd.f32 %v2569, %v2573
        %v2576 = vadd.f32 %v2570, %v2574
        %s2577 = sld [smem:[#allocation30 + $0x3]]
        %v2578 = vstv %s2577
        %v2579 = vadd.f32 %v2575, %v2578
        %v2580 = vadd.f32 %v2576, %v2578
        %v2581 = vmax.f32 %v2579, 0.0
        %v2582 = vmax.f32 %v2580, 0.0
        %s2583 = scalar_lea.vmem %s835, 48 [#allocation32]
        %2584 = vst.msk [vmem:[%s2583] sm:$0xff] %vm1482, %v2581
        %2585 = vst.msk [vmem:[%s2583 + $0x8] sm:$0xff] %vm1482, %v2582
        %s2586 = sld [smem:[#allocation29 + $0x10]]
        %v2587 = vstv %s2586
        %v2588 = vmul.f32 %v1969, %v2587
        %v2589 = vmul.f32 %v1974, %v2587
        %s2590 = sld [smem:[#allocation29 + $0x11]]
        %v2591 = vstv %s2590
        %v2592 = vmul.f32 %v2131, %v2591
        %v2593 = vmul.f32 %v2136, %v2591
        %v2594 = vadd.f32 %v2588, %v2592
        %v2595 = vadd.f32 %v2589, %v2593
        %s2596 = sld [smem:[#allocation29 + $0x12]]
        %v2597 = vstv %s2596
        %v2598 = vmul.f32 %v2293, %v2597
        %v2599 = vmul.f32 %v2298, %v2597
        %v2600 = vadd.f32 %v2594, %v2598
        %v2601 = vadd.f32 %v2595, %v2599
        %s2602 = sld [smem:[#allocation29 + $0x13]]
        %v2603 = vstv %s2602
        %v2604 = vmul.f32 %v2455, %v2603
        %v2605 = vmul.f32 %v2460, %v2603
        %v2606 = vadd.f32 %v2600, %v2604
        %v2607 = vadd.f32 %v2601, %v2605
        %s2608 = sld [smem:[#allocation30 + $0x4]]
        %v2609 = vstv %s2608
        %v2610 = vadd.f32 %v2606, %v2609
        %v2611 = vadd.f32 %v2607, %v2609
        %v2612 = vmax.f32 %v2610, 0.0
        %v2613 = vmax.f32 %v2611, 0.0
        %s2614 = scalar_lea.vmem %s835, 64 [#allocation32]
        %2615 = vst.msk [vmem:[%s2614] sm:$0xff] %vm1482, %v2612
        %2616 = vst.msk [vmem:[%s2614 + $0x8] sm:$0xff] %vm1482, %v2613
        %s2617 = sld [smem:[#allocation29 + $0x14]]
        %v2618 = vstv %s2617
        %v2619 = vmul.f32 %v1969, %v2618
        %v2620 = vmul.f32 %v1974, %v2618
        %s2621 = sld [smem:[#allocation29 + $0x15]]
        %v2622 = vstv %s2621
        %v2623 = vmul.f32 %v2131, %v2622
        %v2624 = vmul.f32 %v2136, %v2622
        %v2625 = vadd.f32 %v2619, %v2623
        %v2626 = vadd.f32 %v2620, %v2624
        %s2627 = sld [smem:[#allocation29 + $0x16]]
        %v2628 = vstv %s2627
        %v2629 = vmul.f32 %v2293, %v2628
        %v2630 = vmul.f32 %v2298, %v2628
        %v2631 = vadd.f32 %v2625, %v2629
        %v2632 = vadd.f32 %v2626, %v2630
        %s2633 = sld [smem:[#allocation29 + $0x17]]
        %v2634 = vstv %s2633
        %v2635 = vmul.f32 %v2455, %v2634
        %v2636 = vmul.f32 %v2460, %v2634
        %v2637 = vadd.f32 %v2631, %v2635
        %v2638 = vadd.f32 %v2632, %v2636
        %s2639 = sld [smem:[#allocation30 + $0x5]]
        %v2640 = vstv %s2639
        %v2641 = vadd.f32 %v2637, %v2640
        %v2642 = vadd.f32 %v2638, %v2640
        %v2643 = vmax.f32 %v2641, 0.0
        %v2644 = vmax.f32 %v2642, 0.0
        %s2645 = scalar_lea.vmem %s835, 80 [#allocation32]
        %2646 = vst.msk [vmem:[%s2645] sm:$0xff] %vm1482, %v2643
        %2647 = vst.msk [vmem:[%s2645 + $0x8] sm:$0xff] %vm1482, %v2644
        %s2648 = sld [smem:[#allocation29 + $0x18]]
        %v2649 = vstv %s2648
        %v2650 = vmul.f32 %v1969, %v2649
        %v2651 = vmul.f32 %v1974, %v2649
        %s2652 = sld [smem:[#allocation29 + $0x19]]
        %v2653 = vstv %s2652
        %v2654 = vmul.f32 %v2131, %v2653
        %v2655 = vmul.f32 %v2136, %v2653
        %v2656 = vadd.f32 %v2650, %v2654
        %v2657 = vadd.f32 %v2651, %v2655
        %s2658 = sld [smem:[#allocation29 + $0x1a]]
        %v2659 = vstv %s2658
        %v2660 = vmul.f32 %v2293, %v2659
        %v2661 = vmul.f32 %v2298, %v2659
        %v2662 = vadd.f32 %v2656, %v2660
        %v2663 = vadd.f32 %v2657, %v2661
        %s2664 = sld [smem:[#allocation29 + $0x1b]]
        %v2665 = vstv %s2664
        %v2666 = vmul.f32 %v2455, %v2665
        %v2667 = vmul.f32 %v2460, %v2665
        %v2668 = vadd.f32 %v2662, %v2666
        %v2669 = vadd.f32 %v2663, %v2667
        %s2670 = sld [smem:[#allocation30 + $0x6]]
        %v2671 = vstv %s2670
        %v2672 = vadd.f32 %v2668, %v2671
        %v2673 = vadd.f32 %v2669, %v2671
        %v2674 = vmax.f32 %v2672, 0.0
        %v2675 = vmax.f32 %v2673, 0.0
        %s2676 = scalar_lea.vmem %s835, 96 [#allocation32]
        %2677 = vst.msk [vmem:[%s2676] sm:$0xff] %vm1482, %v2674
        %2678 = vst.msk [vmem:[%s2676 + $0x8] sm:$0xff] %vm1482, %v2675
        %s2679 = sld [smem:[#allocation29 + $0x1c]]
        %v2680 = vstv %s2679
        %v2681 = vmul.f32 %v1969, %v2680
        %v2682 = vmul.f32 %v1974, %v2680
        %s2683 = sld [smem:[#allocation29 + $0x1d]]
        %v2684 = vstv %s2683
        %v2685 = vmul.f32 %v2131, %v2684
        %v2686 = vmul.f32 %v2136, %v2684
        %v2687 = vadd.f32 %v2681, %v2685
        %v2688 = vadd.f32 %v2682, %v2686
        %s2689 = sld [smem:[#allocation29 + $0x1e]]
        %v2690 = vstv %s2689
        %v2691 = vmul.f32 %v2293, %v2690
        %v2692 = vmul.f32 %v2298, %v2690
        %v2693 = vadd.f32 %v2687, %v2691
        %v2694 = vadd.f32 %v2688, %v2692
        %s2695 = sld [smem:[#allocation29 + $0x1f]]
        %v2696 = vstv %s2695
        %v2697 = vmul.f32 %v2455, %v2696
        %v2698 = vmul.f32 %v2460, %v2696
        %v2699 = vadd.f32 %v2693, %v2697
        %v2700 = vadd.f32 %v2694, %v2698
        %s2701 = sld [smem:[#allocation30 + $0x7]]
        %v2702 = vstv %s2701
        %v2703 = vadd.f32 %v2699, %v2702
        %v2704 = vadd.f32 %v2700, %v2702
        %v2705 = vmax.f32 %v2703, 0.0
        %v2706 = vmax.f32 %v2704, 0.0
        %s2707 = scalar_lea.vmem %s835, 112 [#allocation32]
        %2708 = vst.msk [vmem:[%s2707] sm:$0xff] %vm1482, %v2705
        %2709 = vst.msk [vmem:[%s2707 + $0x8] sm:$0xff] %vm1482, %v2706
        %s2710 = sand.u32 %s443, 1
        %s2711 = scalar_lea.sflag [#allocation4], %s2710
        %s2712 = sand.u32 %s443, 1
        %s2713 = smul.addr %s2712, 128
        %s2714 = scalar_lea.vmem [#allocation32], %s2713
        // Predicated region
        $region165: #{tpu_custom_call.1} parent=91 // pred_check
          %p2715 = pneg %p453
        $region166: #{tpu_custom_call.1} parent=91 // pred_check_branch
          %2717 = sbr.rel (%p2715) target = $region168
        $region167: #{tpu_custom_call.1} parent=91 // pred_region
          %s2719 = ssub.s32 2048, 2048
          %2720 = vsyncadd %s2711, %s2719
          %s2721 = smul.addr %s47, 16
          %s2722 = smul.addr %s2721, 128
          %s2723 = scalar_lea.hbm %s18, %s2722
          %s2724 = sshll.u32 %s2714, 4
          %s2725 = int_to_ptr.vmem [resolvable:$true] %s2724
          %2730 = dma.vmem_to_hbm [thread:$0]  %s2725, 2048, %s2723, %s2711, 128, 128, 8
        $region168: #{tpu_custom_call.1} parent=91 // pred_fallthru
          _
      $region92: #{tpu_custom_call.1} parent=5 // pred_fallthru
        _
      %p2731 = scmp.le.s32.totalorder 2, %s42
      // Predicated region
      $region169: #{tpu_custom_call.1} parent=5 // pred_check
        %p2732 = pneg %p2731
      $region170: #{tpu_custom_call.1} parent=5 // pred_check_branch
        %2734 = sbr.rel (%p2732) target = $region172
      $region171: #{tpu_custom_call.1} parent=5 // pred_region
        %s2735 = ssub.s32 %s42, 2
        // Predicated region
        $region173: #{tpu_custom_call.1} parent=171 // pred_check
          %p2736 = pneg %p459
        $region174: #{tpu_custom_call.1} parent=171 // pred_check_branch
          %2738 = sbr.rel (%p2736) target = $region176
        $region175: #{tpu_custom_call.1} parent=171 // pred_region
          %s2739 = sand.u32 %s444, 1
          %s2740 = scalar_lea.sflag [#allocation4], %s2739
          %s2741 = sand.u32 %s444, 1
          %s2742 = smul.addr %s2741, 128
          %s2743 = scalar_lea.vmem [#allocation32], %s2742
          %2744 = dma.done %s2740, 2048
        $region176: #{tpu_custom_call.1} parent=171 // pred_fallthru
          _
      $region172: #{tpu_custom_call.1} parent=5 // pred_fallthru
        _
    $region6: #{tpu_custom_call.1} parent=1 // loop_footer
      %s46 = sadd.s32 1, %s42
    $region7: #{tpu_custom_call.1} parent=1 // loop_footer_branch
      %41 = sbr.rel target = $region3
    $region8: #{tpu_custom_call.1} parent=1 // loop_exit
      _
    %2745 = vsyncpa [#allocation3], 1
    %s2746 = scalar_lea.sflag [#allocation3], 1
    %2747 = vsyncpa %s2746, 1
    %2748 = vsyncpa [#allocation7], 1
    %s2749 = scalar_lea.sflag [#allocation7], 1
    %2750 = vsyncpa %s2749, 1
    %2751 = vsyncpa [#allocation4], 1
    %s2752 = scalar_lea.sflag [#allocation4], 1
    %2753 = vsyncpa %s2752, 1
    %2754 = vsyncpa [#allocation5], 1
    %s2755 = scalar_lea.sflag [#allocation5], 1
    %2756 = vsyncpa %s2755, 1
    %2757 = vsyncpa [#allocation10], 1
    %2758 = vsyncpa [#allocation13], 1
    %2759 = vsyncpa [#allocation16], 1
    %2760 = vsyncpa [#allocation19], 1
    %2761 = vsyncpa [#allocation22], 1
    %2762 = vsyncpa [#allocation25], 1
    %2763 = vsyncpa [#allocation28], 1
    %2764 = vsyncpa [#allocation31], 1

</llo_original>
